<compile_context>
chip_gen: v5e
topology: v5e:2x2
jax: 0.10.0
libtpu: 0.0.40
codegen_flags: <defaults>
</compile_context>

<pallas_src>
import math

import numpy as np
import jax
import jax.numpy as jnp
from jax.experimental import pallas as pl
from jax.experimental.pallas import tpu as pltpu

_SQRT_2 = 1.4142135623730951
_MXU_DTYPE = jnp.bfloat16      # matmul input dtype (weights + activations)
_ACT_DTYPE = jnp.bfloat16      # inter-kernel activation dtype in HBM

_CompilerParams = getattr(pltpu, "CompilerParams", None) or getattr(pltpu, "TPUCompilerParams")


def _compiler_params():
    # vmem limit derived per TPU generation: v7x has 64 MiB/TC (leave headroom),
    # v5e/v6e have 128 MiB so a larger scoped limit is safe.
    try:
        kind = jax.devices()[0].device_kind.lower()
    except Exception:
        kind = ""
    vmem = 36 * 1024 * 1024 if ("v7" in kind or "7x" in kind) else 64 * 1024 * 1024
    return _CompilerParams(dimension_semantics=("parallel",), vmem_limit_bytes=vmem)


# ----------------------------------------------------------------------------
# In-kernel helpers (traced inside Pallas kernels)
# ----------------------------------------------------------------------------
def _gelu(y):
    # exact GELU (torch.nn.GELU default), f32 epilogue
    return 0.5 * y * (1.0 + jax.lax.erf(y / _SQRT_2))


def _pad_rows(x2d):
    """Prepend/append one zero row to a lane-dense (rows, W*C) slab (sublane concat)."""
    z = jnp.zeros((1, x2d.shape[1]), x2d.dtype)
    return jnp.concatenate([z, x2d, z], axis=0)


def _banded_conv(xp, w_ref, rows):
    """3x3 conv on the channel-flattened layout.

    xp: row-padded (rows+2, Win*Cin) bf16 slab.
    w_ref: (3, Win*Cin, Wout*Cout) banded weights (kx taps, zero width-padding and
           BN scale folded on the host).
    Returns an f32 (rows, Wout*Cout) accumulator."""
    return (jnp.dot(xp[0:rows], w_ref[0], preferred_element_type=jnp.float32)
            + jnp.dot(xp[1:rows + 1], w_ref[1], preferred_element_type=jnp.float32)
            + jnp.dot(xp[2:rows + 2], w_ref[2], preferred_element_type=jnp.float32))


# ----------------------------------------------------------------------------
# Pallas kernels
# ----------------------------------------------------------------------------
def _conv_more_kernel(x_ref, w_ref, b_ref, o_ref):
    """x: (1, H, W*Cin) bf16; w: (3, W*Cin, W*Cout) bf16; b: (1, W*Cout) f32;
    o: (1, H, W*Cout) bf16 lane-dense."""
    H = x_ref.shape[1]
    acc = _banded_conv(_pad_rows(x_ref[0]), w_ref, H)
    o_ref[0] = _gelu(acc + b_ref[...]).astype(o_ref.dtype)


def _make_decoder_block_kernel(has_skip):
    """Fused DecoderBlock: bilinear x2 upsample -> [+skip] -> conv1 -> conv2.

    The width interp is folded into conv1's banded weight, so the kernel performs one
    small height-interp matmul (zero-bordered interp matrix) plus 3 (+3 skip) + 3
    row-shifted banded matmuls; conv1's output never leaves VMEM."""

    def kernel(*refs):
        if has_skip:
            (x_ref, sk_ref, ah_ref, c1_ref, w1s_ref, b1_ref, w2_ref, b2_ref, o_ref) = refs
        else:
            (x_ref, ah_ref, c1_ref, b1_ref, w2_ref, b2_ref, o_ref) = refs
        H2 = o_ref.shape[1]

        # height interp (align_corners=True), zero border rows already in ah: (H2+2, W*Cin)
        t = jnp.dot(ah_ref[...], x_ref[0], preferred_element_type=jnp.float32)
        t = t.astype(c1_ref.dtype)

        # conv1: x branch (width interp + kx taps + BN scale folded into c1)
        acc = _banded_conv(t, c1_ref, H2)
        if has_skip:
            acc = acc + _banded_conv(_pad_rows(sk_ref[0]), w1s_ref, H2)
        y1 = _gelu(acc + b1_ref[...]).astype(w2_ref.dtype)          # (H2, W2*Cout) bf16

        # conv2 on the VMEM-resident conv1 output
        acc2 = _banded_conv(_pad_rows(y1), w2_ref, H2)
        o_ref[0] = _gelu(acc2 + b2_ref[...]).astype(o_ref.dtype)

    return kernel


# ----------------------------------------------------------------------------
# Host-side operator / weight construction
# ----------------------------------------------------------------------------
def _bilinear_matrix(n_out, n_in):
    """(n_out, n_in) align_corners=True bilinear resize operator."""
    m = np.zeros((n_out, n_in), np.float32)
    if n_in == 1:
        m[:, 0] = 1.0
        return m
    for i in range(n_out):
        src = i * (n_in - 1) / (n_out - 1)
        i0 = int(np.floor(src))
        i1 = min(i0 + 1, n_in - 1)
        f = src - i0
        m[i, i0] += 1.0 - f
        m[i, i1] += f
    return m


def _interp_rows_padded(n_out, n_in):
    """Height-interp operator with a zero row prepended/appended -> the interp result
    is already the 1-row zero-padded map the following conv needs."""
    m = np.zeros((n_out + 2, n_in), np.float32)
    m[1:-1] = _bilinear_matrix(n_out, n_in)
    return m


def _taps_same(w_sp):
    """(3, W, W) tap selector for a stride-1 'same' conv on the UNPADDED flat slab:
    taps[kx, wi, wo] = 1 iff wi == wo + kx - 1 (zero width-padding folded in)."""
    s = np.zeros((3, w_sp, w_sp), np.float32)
    for kx in range(3):
        for wo in range(w_sp):
            wi = wo + kx - 1
            if 0 <= wi < w_sp:
                s[kx, wi, wo] = 1.0
    return s


def _taps_upsample(w_in, w_out):
    """(3, w_in, w_out) operator folding the x2 width interp INTO the conv taps:
    taps[kx, w, wo] = Aw[wo + kx - 1, w] (zero outside), Aw = bilinear(w_out, w_in)."""
    aw = _bilinear_matrix(w_out, w_in)
    s = np.zeros((3, w_in, w_out), np.float32)
    for kx in range(3):
        for wo in range(w_out):
            wi = wo + kx - 1
            if 0 <= wi < w_out:
                s[kx, :, wo] = aw[wi, :]
    return s


def _banded_weight(w, taps):
    """w: (3, 3, Cin, Cout) f32 with BN scale already folded; taps: (3, Win, Wout).
    Returns (3, Win*Cin, Wout*Cout) bf16 with
      out[ky, wi*Cin + c, wo*Cout + co] = sum_kx taps[kx, wi, wo] * w[ky, kx, c, co]."""
    _, _, cin, cout = w.shape
    _, win, wout = taps.shape
    m = jnp.einsum("xio,yxcd->yicod", jnp.asarray(taps), w)
    return m.reshape(3, win * cin, wout * cout).astype(_MXU_DTYPE)


def _fold_bn(p, eps=1e-5):
    """Fold eval-mode BatchNorm (general running mean/var) into conv weight + bias."""
    scale = p["gamma"] / jnp.sqrt(p["var"] + eps)
    bias = p["beta"] - p["mean"] * scale
    return p["w"] * scale[None, None, None, :], bias


def _tile_bias(bias, w_sp):
    return jnp.tile(bias, w_sp).reshape(1, w_sp * bias.shape[0]).astype(jnp.float32)


# ----------------------------------------------------------------------------
# Pallas wrappers
# ----------------------------------------------------------------------------
def conv_more(x, p):
    """x: (B, H, W, Cin) -> (B, H, W, Cout) bf16.  Conv3x3(pad=1, no bias) + BN(eval) + GELU."""
    B, H, W, Cin = x.shape
    w, bias = _fold_bn(p)
    Cout = w.shape[-1]
    wb = _banded_weight(w, _taps_same(W))                 # (3, W*Cin, W*Cout)
    bf = _tile_bias(bias, W)                              # (1, W*Cout)
    xf = x.reshape(B, H, W * Cin).astype(_MXU_DTYPE)

    out = pl.pallas_call(
        _conv_more_kernel,
        out_shape=jax.ShapeDtypeStruct((B, H, W * Cout), _ACT_DTYPE),
        grid=(B,),
        in_specs=[
            pl.BlockSpec((1, H, W * Cin), lambda i: (i, 0, 0)),
            pl.BlockSpec((3, W * Cin, W * Cout), lambda i: (0, 0, 0)),
            pl.BlockSpec((1, W * Cout), lambda i: (0, 0)),
        ],
        out_specs=pl.BlockSpec((1, H, W * Cout), lambda i: (i, 0, 0)),
        compiler_params=_compiler_params(),
    )(xf, wb, bf)
    return out.reshape(B, H, W, Cout)


def decoder_block(x, skip, blk):
    """One DecoderBlock (bilinear x2 -> [concat skip] -> conv1 -> conv2) as ONE kernel."""
    B, H, W, Cin = x.shape
    H2, W2 = 2 * H, 2 * W
    w1, b1 = _fold_bn(blk["conv1"])
    w2, b2 = _fold_bn(blk["conv2"])
    Cout = w2.shape[-1]
    has_skip = skip is not None and skip.shape[-1] > 0
    Csk = skip.shape[-1] if has_skip else 0
    assert w1.shape[2] == Cin + Csk

    ah = jnp.asarray(_interp_rows_padded(H2, H)).astype(_MXU_DTYPE)      # (H2+2, H)
    # conv1 x-branch: width interp folded into the banded weight -> channel mixing
    # happens at the LOW width W, not W2 (PyTorch concat order is [x, skip]).
    c1 = _banded_weight(w1[:, :, :Cin, :], _taps_upsample(W, W2))        # (3, W*Cin, W2*Cout)
    w2b = _banded_weight(w2, _taps_same(W2))                             # (3, W2*Cout, W2*Cout)
    b1f = _tile_bias(b1, W2)
    b2f = _tile_bias(b2, W2)

    xf = x.reshape(B, H, W * Cin).astype(_MXU_DTYPE)
    inputs = [xf]
    in_specs = [pl.BlockSpec((1, H, W * Cin), lambda i: (i, 0, 0))]
    if has_skip:
        skf = skip.reshape(B, H2, W2 * Csk).astype(_MXU_DTYPE)
        w1s = _banded_weight(w1[:, :, Cin:, :], _taps_same(W2))          # (3, W2*Csk, W2*Cout)
        inputs.append(skf)
        in_specs.append(pl.BlockSpec((1, H2, W2 * Csk), lambda i: (i, 0, 0)))
    inputs += [ah, c1]
    in_specs += [
        pl.BlockSpec((H2 + 2, H), lambda i: (0, 0)),
        pl.BlockSpec((3, W * Cin, W2 * Cout), lambda i: (0, 0, 0)),
    ]
    if has_skip:
        inputs.append(w1s)
        in_specs.append(pl.BlockSpec((3, W2 * Csk, W2 * Cout), lambda i: (0, 0, 0)))
    inputs += [b1f, w2b, b2f]
    in_specs += [
        pl.BlockSpec((1, W2 * Cout), lambda i: (0, 0)),
        pl.BlockSpec((3, W2 * Cout, W2 * Cout), lambda i: (0, 0, 0)),
        pl.BlockSpec((1, W2 * Cout), lambda i: (0, 0)),
    ]

    out = pl.pallas_call(
        _make_decoder_block_kernel(has_skip),
        out_shape=jax.ShapeDtypeStruct((B, H2, W2 * Cout), _ACT_DTYPE),
        grid=(B,),
        in_specs=in_specs,
        out_specs=pl.BlockSpec((1, H2, W2 * Cout), lambda i: (i, 0, 0)),
        compiler_params=_compiler_params(),
    )(*inputs)
    return out.reshape(B, H2, W2, Cout)


# ----------------------------------------------------------------------------
# Parameter construction (deterministic, synthetic) and forward
# ----------------------------------------------------------------------------
def _init_conv_bn(key, cin, cout):
    k1, k2, k3, k4, k5 = jax.random.split(key, 5)
    return {
        "w": jax.random.normal(k1, (3, 3, cin, cout), jnp.float32) / np.sqrt(9.0 * cin),
        "gamma": 1.0 + 0.1 * jax.random.normal(k2, (cout,), jnp.float32),
        "beta": 0.05 * jax.random.normal(k3, (cout,), jnp.float32),
        "mean": 0.02 * jax.random.normal(k4, (cout,), jnp.float32),
        "var": 1.0 + 0.1 * jnp.abs(jax.random.normal(k5, (cout,), jnp.float32)),
    }


def make_decoder_cup_params(key, hidden_size, decoder_channels, skip_channels):
    head_channels = 64
    keys = jax.random.split(key, 1 + 2 * len(decoder_channels))
    params = {"conv_more": _init_conv_bn(keys[0], hidden_size, head_channels)}
    in_channels = [head_channels] + list(decoder_channels[:-1])
    blocks = []
    ki = 1
    for in_ch, out_ch, sk_ch in zip(in_channels, decoder_channels, skip_channels):
        conv1 = _init_conv_bn(keys[ki], in_ch + sk_ch, out_ch); ki += 1
        conv2 = _init_conv_bn(keys[ki], out_ch, out_ch); ki += 1
        blocks.append({"conv1": conv1, "conv2": conv2})
    params["blocks"] = blocks
    return params


def decoder_cup_forward(params, hidden_states, features=None):
    """hidden_states: (B, n_patch, hidden); features[i]: NHWC skip tensors.
    Returns the decoded feature map in NHWC, f32."""
    B, n_patch, hidden = hidden_states.shape
    h = w = int(math.sqrt(n_patch))
    # NHWC equivalent of permute(0, 2, 1).contiguous().view(B, hidden, h, w)
    x = hidden_states.reshape(B, h, w, hidden)
    x = conv_more(x, params["conv_more"])
    for i, blk in enumerate(params["blocks"]):
        skip = features[i] if (features is not None and i < len(features)) else None
        x = decoder_block(x, skip, blk)
    return x.astype(jnp.float32)


# ----------------------------------------------------------------------------
# Pure-JAX reference (same bf16 weight/activation quantization as the kernels)
# ----------------------------------------------------------------------------
def _q(x):
    return x.astype(jnp.bfloat16).astype(jnp.float32)


def _ref_conv_bn_gelu(x, p):
    w, bias = _fold_bn(p)
    y = jax.lax.conv_general_dilated(
        _q(x), _q(w), window_strides=(1, 1), padding=((1, 1), (1, 1)),
        dimension_numbers=("NHWC", "HWIO", "NHWC"))
    return _gelu(y + bias)


def _ref_upsample(x):
    B, H, W, C = x.shape
    ah = jnp.asarray(_bilinear_matrix(2 * H, H))
    aw = jnp.asarray(_bilinear_matrix(2 * W, W))
    y = jnp.einsum("ih,bhwc->biwc", ah, _q(x))
    return jnp.einsum("jw,biwc->bijc", aw, y)


def _ref_forward(params, hidden_states, features=None):
    B, n_patch, hidden = hidden_states.shape
    h = w = int(math.sqrt(n_patch))
    x = hidden_states.reshape(B, h, w, hidden)
    x = _ref_conv_bn_gelu(x, params["conv_more"])
    for i, blk in enumerate(params["blocks"]):
        skip = features[i] if (features is not None and i < len(features)) else None
        x = _ref_upsample(x)
        if skip is not None:
            x = jnp.concatenate([x, skip], axis=-1)
        x = _ref_conv_bn_gelu(x, blk["conv1"])
        x = _ref_conv_bn_gelu(x, blk["conv2"])
    return x


# ----------------------------------------------------------------------------
# Demo
# ----------------------------------------------------------------------------
if __name__ == "__main__":
    hidden_size = 32
    decoder_channels = (32, 16)
    skip_channels = (8, 0)

    B, h, w = 2, 4, 4
    n_patch = h * w

    key = jax.random.PRNGKey(0)
    k_param, k_x, k_skip = jax.random.split(key, 3)

    params = make_decoder_cup_params(k_param, hidden_size, decoder_channels, skip_channels)

    hidden_states = jax.random.normal(k_x, (B, n_patch, hidden_size), jnp.float32)
    # skip feature for block 0 (spatial matches the x2-upsampled map: 8x8), NHWC
    features = [jax.random.normal(k_skip, (B, 2 * h, 2 * w, skip_channels[0]), jnp.float32)]

    fwd = jax.jit(decoder_cup_forward)
    out = jax.block_until_ready(fwd(params, hidden_states, features))

    expected_shape = (B, 4 * h, 4 * w, decoder_channels[-1])
    assert out.shape == expected_shape, (out.shape, expected_shape)
    assert bool(jnp.all(jnp.isfinite(out)))

    # numerical check vs a pure-JAX reference with matching bf16 quantization
    ref = jax.block_until_ready(_ref_forward(params, hidden_states, features))
    rel = float(jnp.linalg.norm(out - ref) / (jnp.linalg.norm(ref) + 1e-12))
    assert rel < 3e-2, f"relative L2 error too large: {rel}"

    print("KERNEL_OK")
</pallas_src>

<mosaic_0001>
module attributes {stable_mosaic.version = 11 : i64} {
  func.func @_conv_more_kernel(%arg0: i32, %arg1: memref<1x4x128xbf16, #tpu.memory_space<vmem>>, %arg2: memref<3x128x256xbf16, #tpu.memory_space<vmem>>, %arg3: memref<1x256xf32, #tpu.memory_space<vmem>>, %arg4: memref<1x4x256xbf16, #tpu.memory_space<vmem>>) attributes {dimension_semantics = [#tpu.dimension_semantics<parallel>], iteration_bounds = array<i64: 2>, scalar_prefetch = 0 : i64, scratch_operands = 0 : i64, tpu.core_type = #tpu.core_type<tc>, window_params = [{transform_indices = @transform_0, window_bounds = array<i64: 1, 4, 128>}, {pipeline_mode = #tpu.pipeline_mode<synchronous>, transform_indices = @transform_1, window_bounds = array<i64: 3, 128, 256>}, {pipeline_mode = #tpu.pipeline_mode<synchronous>, transform_indices = @transform_2, window_bounds = array<i64: 1, 256>}, {transform_indices = @transform_3, window_bounds = array<i64: 1, 4, 256>}]} {
    %c0 = arith.constant 0 : index
    %c0_0 = arith.constant 0 : index
    %c0_1 = arith.constant 0 : index
    %0 = vector.load %arg1[%c0, %c0_0, %c0_1] : memref<1x4x128xbf16, #tpu.memory_space<vmem>>, vector<1x4x128xbf16>
    %1 = vector.shape_cast %0 : vector<1x4x128xbf16> to vector<4x128xbf16>
    %cst = arith.constant 0.000000e+00 : bf16
    %2 = vector.broadcast %cst : bf16 to vector<1x128xbf16>
    %3 = tpu.concatenate %2, %1, %2 in 0 : vector<1x128xbf16>, vector<4x128xbf16>, vector<1x128xbf16> -> vector<6x128xbf16>
    %4 = vector.extract_strided_slice %3 {offsets = [0, 0], sizes = [4, 128], strides = [1, 1]} : vector<6x128xbf16> to vector<4x128xbf16>
    %c0_2 = arith.constant 0 : index
    %c0_3 = arith.constant 0 : index
    %c0_4 = arith.constant 0 : index
    %5 = vector.load %arg2[%c0_2, %c0_3, %c0_4] : memref<3x128x256xbf16, #tpu.memory_space<vmem>>, vector<1x128x256xbf16>
    %6 = vector.shape_cast %5 : vector<1x128x256xbf16> to vector<128x256xbf16>
    %cst_5 = arith.constant dense<0.000000e+00> : vector<4x256xf32>
    %7 = tpu.matmul %4, %6, %cst_5 {dimension_numbers = #tpu.dot_dimension_numbers<[1], [0], [0], [1], [0, 0, 1, 1], [], []>} : vector<4x128xbf16>, vector<128x256xbf16>, vector<4x256xf32> -> vector<4x256xf32>
    %8 = vector.extract_strided_slice %3 {offsets = [1, 0], sizes = [4, 128], strides = [1, 1]} : vector<6x128xbf16> to vector<4x128xbf16>
    %c1 = arith.constant 1 : index
    %c0_6 = arith.constant 0 : index
    %c0_7 = arith.constant 0 : index
    %9 = vector.load %arg2[%c1, %c0_6, %c0_7] : memref<3x128x256xbf16, #tpu.memory_space<vmem>>, vector<1x128x256xbf16>
    %10 = vector.shape_cast %9 : vector<1x128x256xbf16> to vector<128x256xbf16>
    %cst_8 = arith.constant dense<0.000000e+00> : vector<4x256xf32>
    %11 = tpu.matmul %8, %10, %cst_8 {dimension_numbers = #tpu.dot_dimension_numbers<[1], [0], [0], [1], [0, 0, 1, 1], [], []>} : vector<4x128xbf16>, vector<128x256xbf16>, vector<4x256xf32> -> vector<4x256xf32>
    %12 = arith.addf %7, %11 : vector<4x256xf32>
    %13 = vector.extract_strided_slice %3 {offsets = [2, 0], sizes = [4, 128], strides = [1, 1]} : vector<6x128xbf16> to vector<4x128xbf16>
    %c2 = arith.constant 2 : index
    %c0_9 = arith.constant 0 : index
    %c0_10 = arith.constant 0 : index
    %14 = vector.load %arg2[%c2, %c0_9, %c0_10] : memref<3x128x256xbf16, #tpu.memory_space<vmem>>, vector<1x128x256xbf16>
    %15 = vector.shape_cast %14 : vector<1x128x256xbf16> to vector<128x256xbf16>
    %cst_11 = arith.constant dense<0.000000e+00> : vector<4x256xf32>
    %16 = tpu.matmul %13, %15, %cst_11 {dimension_numbers = #tpu.dot_dimension_numbers<[1], [0], [0], [1], [0, 0, 1, 1], [], []>} : vector<4x128xbf16>, vector<128x256xbf16>, vector<4x256xf32> -> vector<4x256xf32>
    %17 = arith.addf %12, %16 : vector<4x256xf32>
    %c0_12 = arith.constant 0 : index
    %c0_13 = arith.constant 0 : index
    %18 = vector.load %arg3[%c0_12, %c0_13] : memref<1x256xf32, #tpu.memory_space<vmem>>, vector<1x256xf32>
    %19 = vector.broadcast %18 : vector<1x256xf32> to vector<4x256xf32>
    %20 = arith.addf %17, %19 : vector<4x256xf32>
    %cst_14 = arith.constant 5.000000e-01 : f32
    %21 = vector.broadcast %cst_14 : f32 to vector<4x256xf32>
    %22 = arith.mulf %21, %20 : vector<4x256xf32>
    %cst_15 = arith.constant 1.41421354 : f32
    %23 = vector.broadcast %cst_15 : f32 to vector<4x256xf32>
    %24 = arith.divf %20, %23 : vector<4x256xf32>
    %25 = math.erf %24 : vector<4x256xf32>
    %cst_16 = arith.constant 1.000000e+00 : f32
    %26 = vector.broadcast %cst_16 : f32 to vector<4x256xf32>
    %27 = arith.addf %26, %25 : vector<4x256xf32>
    %28 = arith.mulf %22, %27 : vector<4x256xf32>
    %29 = arith.truncf %28 : vector<4x256xf32> to vector<4x256xbf16>
    %c0_17 = arith.constant 0 : index
    %c0_18 = arith.constant 0 : index
    %c0_19 = arith.constant 0 : index
    %30 = vector.load %arg4[%c0_17, %c0_18, %c0_19] : memref<1x4x256xbf16, #tpu.memory_space<vmem>>, vector<1x4x256xbf16>
    %31 = vector.shape_cast %30 : vector<1x4x256xbf16> to vector<4x256xbf16>
    %32 = vector.shape_cast %29 : vector<4x256xbf16> to vector<1x4x256xbf16>
    tpu.vector_store %arg4[%c0_17, %c0_18, %c0_19], %32 {strides = array<i32>} : memref<1x4x256xbf16, #tpu.memory_space<vmem>>, vector<1x4x256xbf16>,
    return
  }
  func.func @transform_0(%arg0: i32) -> (i32, i32, i32) {
    %c0_i32 = arith.constant 0 : i32
    %c0_i32_0 = arith.constant 0 : i32
    %c0_i32_1 = arith.constant 0 : i32
    return %arg0, %c0_i32, %c0_i32_0 : i32, i32, i32
  }
  func.func @transform_1(%arg0: i32) -> (i32, i32, i32) {
    %c0_i32 = arith.constant 0 : i32
    %c0_i32_0 = arith.constant 0 : i32
    %c0_i32_1 = arith.constant 0 : i32
    %c0_i32_2 = arith.constant 0 : i32
    return %c0_i32, %c0_i32_0, %c0_i32_1 : i32, i32, i32
  }
  func.func @transform_2(%arg0: i32) -> (i32, i32) {
    %c0_i32 = arith.constant 0 : i32
    %c0_i32_0 = arith.constant 0 : i32
    %c0_i32_1 = arith.constant 0 : i32
    return %c0_i32, %c0_i32_0 : i32, i32
  }
  func.func @transform_3(%arg0: i32) -> (i32, i32, i32) {
    %c0_i32 = arith.constant 0 : i32
    %c0_i32_0 = arith.constant 0 : i32
    %c0_i32_1 = arith.constant 0 : i32
    return %arg0, %c0_i32, %c0_i32_0 : i32, i32, i32
  }
}

module attributes {stable_mosaic.version = 11 : i64} {
  func.func @kernel(%arg0: i32, %arg1: memref<1x4x256xbf16, #tpu.memory_space<vmem>>, %arg2: memref<1x8x64xbf16, #tpu.memory_space<vmem>>, %arg3: memref<10x4xbf16, #tpu.memory_space<vmem>>, %arg4: memref<3x256x256xbf16, #tpu.memory_space<vmem>>, %arg5: memref<3x64x256xbf16, #tpu.memory_space<vmem>>, %arg6: memref<1x256xf32, #tpu.memory_space<vmem>>, %arg7: memref<3x256x256xbf16, #tpu.memory_space<vmem>>, %arg8: memref<1x256xf32, #tpu.memory_space<vmem>>, %arg9: memref<1x8x256xbf16, #tpu.memory_space<vmem>>) attributes {dimension_semantics = [#tpu.dimension_semantics<parallel>], iteration_bounds = array<i64: 2>, scalar_prefetch = 0 : i64, scratch_operands = 0 : i64, tpu.core_type = #tpu.core_type<tc>, window_params = [{transform_indices = @transform_0, window_bounds = array<i64: 1, 4, 256>}, {transform_indices = @transform_1, window_bounds = array<i64: 1, 8, 64>}, {pipeline_mode = #tpu.pipeline_mode<synchronous>, transform_indices = @transform_2, window_bounds = array<i64: 10, 4>}, {pipeline_mode = #tpu.pipeline_mode<synchronous>, transform_indices = @transform_3, window_bounds = array<i64: 3, 256, 256>}, {pipeline_mode = #tpu.pipeline_mode<synchronous>, transform_indices = @transform_4, window_bounds = array<i64: 3, 64, 256>}, {pipeline_mode = #tpu.pipeline_mode<synchronous>, transform_indices = @transform_5, window_bounds = array<i64: 1, 256>}, {pipeline_mode = #tpu.pipeline_mode<synchronous>, transform_indices = @transform_6, window_bounds = array<i64: 3, 256, 256>}, {pipeline_mode = #tpu.pipeline_mode<synchronous>, transform_indices = @transform_7, window_bounds = array<i64: 1, 256>}, {transform_indices = @transform_8, window_bounds = array<i64: 1, 8, 256>}]} {
    %c0 = arith.constant 0 : index
    %c0_0 = arith.constant 0 : index
    %0 = vector.load %arg3[%c0, %c0_0] : memref<10x4xbf16, #tpu.memory_space<vmem>>, vector<10x4xbf16>
    %c0_1 = arith.constant 0 : index
    %c0_2 = arith.constant 0 : index
    %c0_3 = arith.constant 0 : index
    %1 = vector.load %arg1[%c0_1, %c0_2, %c0_3] : memref<1x4x256xbf16, #tpu.memory_space<vmem>>, vector<1x4x256xbf16>
    %2 = vector.shape_cast %1 : vector<1x4x256xbf16> to vector<4x256xbf16>
    %cst = arith.constant dense<0.000000e+00> : vector<10x256xf32>
    %3 = tpu.matmul %0, %2, %cst {dimension_numbers = #tpu.dot_dimension_numbers<[1], [0], [0], [1], [0, 0, 1, 1], [], []>} : vector<10x4xbf16>, vector<4x256xbf16>, vector<10x256xf32> -> vector<10x256xf32>
    %4 = arith.truncf %3 : vector<10x256xf32> to vector<10x256xbf16>
    %5 = vector.extract_strided_slice %4 {offsets = [0, 0], sizes = [8, 256], strides = [1, 1]} : vector<10x256xbf16> to vector<8x256xbf16>
    %c0_4 = arith.constant 0 : index
    %c0_5 = arith.constant 0 : index
    %c0_6 = arith.constant 0 : index
    %6 = vector.load %arg4[%c0_4, %c0_5, %c0_6] : memref<3x256x256xbf16, #tpu.memory_space<vmem>>, vector<1x256x256xbf16>
    %7 = vector.shape_cast %6 : vector<1x256x256xbf16> to vector<256x256xbf16>
    %cst_7 = arith.constant dense<0.000000e+00> : vector<8x256xf32>
    %8 = tpu.matmul %5, %7, %cst_7 {dimension_numbers = #tpu.dot_dimension_numbers<[1], [0], [0], [1], [0, 0, 1, 1], [], []>} : vector<8x256xbf16>, vector<256x256xbf16>, vector<8x256xf32> -> vector<8x256xf32>
    %9 = vector.extract_strided_slice %4 {offsets = [1, 0], sizes = [8, 256], strides = [1, 1]} : vector<10x256xbf16> to vector<8x256xbf16>
    %c1 = arith.constant 1 : index
    %c0_8 = arith.constant 0 : index
    %c0_9 = arith.constant 0 : index
    %10 = vector.load %arg4[%c1, %c0_8, %c0_9] : memref<3x256x256xbf16, #tpu.memory_space<vmem>>, vector<1x256x256xbf16>
    %11 = vector.shape_cast %10 : vector<1x256x256xbf16> to vector<256x256xbf16>
    %cst_10 = arith.constant dense<0.000000e+00> : vector<8x256xf32>
    %12 = tpu.matmul %9, %11, %cst_10 {dimension_numbers = #tpu.dot_dimension_numbers<[1], [0], [0], [1], [0, 0, 1, 1], [], []>} : vector<8x256xbf16>, vector<256x256xbf16>, vector<8x256xf32> -> vector<8x256xf32>
    %13 = arith.addf %8, %12 : vector<8x256xf32>
    %14 = vector.extract_strided_slice %4 {offsets = [2, 0], sizes = [8, 256], strides = [1, 1]} : vector<10x256xbf16> to vector<8x256xbf16>
    %c2 = arith.constant 2 : index
    %c0_11 = arith.constant 0 : index
    %c0_12 = arith.constant 0 : index
    %15 = vector.load %arg4[%c2, %c0_11, %c0_12] : memref<3x256x256xbf16, #tpu.memory_space<vmem>>, vector<1x256x256xbf16>
    %16 = vector.shape_cast %15 : vector<1x256x256xbf16> to vector<256x256xbf16>
    %cst_13 = arith.constant dense<0.000000e+00> : vector<8x256xf32>
    %17 = tpu.matmul %14, %16, %cst_13 {dimension_numbers = #tpu.dot_dimension_numbers<[1], [0], [0], [1], [0, 0, 1, 1], [], []>} : vector<8x256xbf16>, vector<256x256xbf16>, vector<8x256xf32> -> vector<8x256xf32>
    %18 = arith.addf %13, %17 : vector<8x256xf32>
    %c0_14 = arith.constant 0 : index
    %c0_15 = arith.constant 0 : index
    %c0_16 = arith.constant 0 : index
    %19 = vector.load %arg2[%c0_14, %c0_15, %c0_16] : memref<1x8x64xbf16, #tpu.memory_space<vmem>>, vector<1x8x64xbf16>
    %20 = vector.shape_cast %19 : vector<1x8x64xbf16> to vector<8x64xbf16>
    %cst_17 = arith.constant 0.000000e+00 : bf16
    %21 = vector.broadcast %cst_17 : bf16 to vector<1x64xbf16>
    %22 = tpu.concatenate %21, %20, %21 in 0 : vector<1x64xbf16>, vector<8x64xbf16>, vector<1x64xbf16> -> vector<10x64xbf16>
    %23 = vector.extract_strided_slice %22 {offsets = [0, 0], sizes = [8, 64], strides = [1, 1]} : vector<10x64xbf16> to vector<8x64xbf16>
    %c0_18 = arith.constant 0 : index
    %c0_19 = arith.constant 0 : index
    %c0_20 = arith.constant 0 : index
    %24 = vector.load %arg5[%c0_18, %c0_19, %c0_20] : memref<3x64x256xbf16, #tpu.memory_space<vmem>>, vector<1x64x256xbf16>
    %25 = vector.shape_cast %24 : vector<1x64x256xbf16> to vector<64x256xbf16>
    %cst_21 = arith.constant dense<0.000000e+00> : vector<8x256xf32>
    %26 = tpu.matmul %23, %25, %cst_21 {dimension_numbers = #tpu.dot_dimension_numbers<[1], [0], [0], [1], [0, 0, 1, 1], [], []>} : vector<8x64xbf16>, vector<64x256xbf16>, vector<8x256xf32> -> vector<8x256xf32>
    %27 = vector.extract_strided_slice %22 {offsets = [1, 0], sizes = [8, 64], strides = [1, 1]} : vector<10x64xbf16> to vector<8x64xbf16>
    %c1_22 = arith.constant 1 : index
    %c0_23 = arith.constant 0 : index
    %c0_24 = arith.constant 0 : index
    %28 = vector.load %arg5[%c1_22, %c0_23, %c0_24] : memref<3x64x256xbf16, #tpu.memory_space<vmem>>, vector<1x64x256xbf16>
    %29 = vector.shape_cast %28 : vector<1x64x256xbf16> to vector<64x256xbf16>
    %cst_25 = arith.constant dense<0.000000e+00> : vector<8x256xf32>
    %30 = tpu.matmul %27, %29, %cst_25 {dimension_numbers = #tpu.dot_dimension_numbers<[1], [0], [0], [1], [0, 0, 1, 1], [], []>} : vector<8x64xbf16>, vector<64x256xbf16>, vector<8x256xf32> -> vector<8x256xf32>
    %31 = arith.addf %26, %30 : vector<8x256xf32>
    %32 = vector.extract_strided_slice %22 {offsets = [2, 0], sizes = [8, 64], strides = [1, 1]} : vector<10x64xbf16> to vector<8x64xbf16>
    %c2_26 = arith.constant 2 : index
    %c0_27 = arith.constant 0 : index
    %c0_28 = arith.constant 0 : index
    %33 = vector.load %arg5[%c2_26, %c0_27, %c0_28] : memref<3x64x256xbf16, #tpu.memory_space<vmem>>, vector<1x64x256xbf16>
    %34 = vector.shape_cast %33 : vector<1x64x256xbf16> to vector<64x256xbf16>
    %cst_29 = arith.constant dense<0.000000e+00> : vector<8x256xf32>
    %35 = tpu.matmul %32, %34, %cst_29 {dimension_numbers = #tpu.dot_dimension_numbers<[1], [0], [0], [1], [0, 0, 1, 1], [], []>} : vector<8x64xbf16>, vector<64x256xbf16>, vector<8x256xf32> -> vector<8x256xf32>
    %36 = arith.addf %31, %35 : vector<8x256xf32>
    %37 = arith.addf %18, %36 : vector<8x256xf32>
    %c0_30 = arith.constant 0 : index
    %c0_31 = arith.constant 0 : index
    %38 = vector.load %arg6[%c0_30, %c0_31] : memref<1x256xf32, #tpu.memory_space<vmem>>, vector<1x256xf32>
    %39 = vector.broadcast %38 : vector<1x256xf32> to vector<8x256xf32>
    %40 = arith.addf %37, %39 : vector<8x256xf32>
    %cst_32 = arith.constant 5.000000e-01 : f32
    %41 = vector.broadcast %cst_32 : f32 to vector<8x256xf32>
    %42 = arith.mulf %41, %40 : vector<8x256xf32>
    %cst_33 = arith.constant 1.41421354 : f32
    %43 = vector.broadcast %cst_33 : f32 to vector<8x256xf32>
    %44 = arith.divf %40, %43 : vector<8x256xf32>
    %45 = math.erf %44 : vector<8x256xf32>
    %cst_34 = arith.constant 1.000000e+00 : f32
    %46 = vector.broadcast %cst_34 : f32 to vector<8x256xf32>
    %47 = arith.addf %46, %45 : vector<8x256xf32>
    %48 = arith.mulf %42, %47 : vector<8x256xf32>
    %49 = arith.truncf %48 : vector<8x256xf32> to vector<8x256xbf16>
    %cst_35 = arith.constant 0.000000e+00 : bf16
    %50 = vector.broadcast %cst_35 : bf16 to vector<1x256xbf16>
    %51 = tpu.concatenate %50, %49, %50 in 0 : vector<1x256xbf16>, vector<8x256xbf16>, vector<1x256xbf16> -> vector<10x256xbf16>
    %52 = vector.extract_strided_slice %51 {offsets = [0, 0], sizes = [8, 256], strides = [1, 1]} : vector<10x256xbf16> to vector<8x256xbf16>
    %c0_36 = arith.constant 0 : index
    %c0_37 = arith.constant 0 : index
    %c0_38 = arith.constant 0 : index
    %53 = vector.load %arg7[%c0_36, %c0_37, %c0_38] : memref<3x256x256xbf16, #tpu.memory_space<vmem>>, vector<1x256x256xbf16>
    %54 = vector.shape_cast %53 : vector<1x256x256xbf16> to vector<256x256xbf16>
    %cst_39 = arith.constant dense<0.000000e+00> : vector<8x256xf32>
    %55 = tpu.matmul %52, %54, %cst_39 {dimension_numbers = #tpu.dot_dimension_numbers<[1], [0], [0], [1], [0, 0, 1, 1], [], []>} : vector<8x256xbf16>, vector<256x256xbf16>, vector<8x256xf32> -> vector<8x256xf32>
    %56 = vector.extract_strided_slice %51 {offsets = [1, 0], sizes = [8, 256], strides = [1, 1]} : vector<10x256xbf16> to vector<8x256xbf16>
    %c1_40 = arith.constant 1 : index
    %c0_41 = arith.constant 0 : index
    %c0_42 = arith.constant 0 : index
    %57 = vector.load %arg7[%c1_40, %c0_41, %c0_42] : memref<3x256x256xbf16, #tpu.memory_space<vmem>>, vector<1x256x256xbf16>
    %58 = vector.shape_cast %57 : vector<1x256x256xbf16> to vector<256x256xbf16>
    %cst_43 = arith.constant dense<0.000000e+00> : vector<8x256xf32>
    %59 = tpu.matmul %56, %58, %cst_43 {dimension_numbers = #tpu.dot_dimension_numbers<[1], [0], [0], [1], [0, 0, 1, 1], [], []>} : vector<8x256xbf16>, vector<256x256xbf16>, vector<8x256xf32> -> vector<8x256xf32>
    %60 = arith.addf %55, %59 : vector<8x256xf32>
    %61 = vector.extract_strided_slice %51 {offsets = [2, 0], sizes = [8, 256], strides = [1, 1]} : vector<10x256xbf16> to vector<8x256xbf16>
    %c2_44 = arith.constant 2 : index
    %c0_45 = arith.constant 0 : index
    %c0_46 = arith.constant 0 : index
    %62 = vector.load %arg7[%c2_44, %c0_45, %c0_46] : memref<3x256x256xbf16, #tpu.memory_space<vmem>>, vector<1x256x256xbf16>
    %63 = vector.shape_cast %62 : vector<1x256x256xbf16> to vector<256x256xbf16>
    %cst_47 = arith.constant dense<0.000000e+00> : vector<8x256xf32>
    %64 = tpu.matmul %61, %63, %cst_47 {dimension_numbers = #tpu.dot_dimension_numbers<[1], [0], [0], [1], [0, 0, 1, 1], [], []>} : vector<8x256xbf16>, vector<256x256xbf16>, vector<8x256xf32> -> vector<8x256xf32>
    %65 = arith.addf %60, %64 : vector<8x256xf32>
    %c0_48 = arith.constant 0 : index
    %c0_49 = arith.constant 0 : index
    %66 = vector.load %arg8[%c0_48, %c0_49] : memref<1x256xf32, #tpu.memory_space<vmem>>, vector<1x256xf32>
    %67 = vector.broadcast %66 : vector<1x256xf32> to vector<8x256xf32>
    %68 = arith.addf %65, %67 : vector<8x256xf32>
    %cst_50 = arith.constant 5.000000e-01 : f32
    %69 = vector.broadcast %cst_50 : f32 to vector<8x256xf32>
    %70 = arith.mulf %69, %68 : vector<8x256xf32>
    %cst_51 = arith.constant 1.41421354 : f32
    %71 = vector.broadcast %cst_51 : f32 to vector<8x256xf32>
    %72 = arith.divf %68, %71 : vector<8x256xf32>
    %73 = math.erf %72 : vector<8x256xf32>
    %cst_52 = arith.constant 1.000000e+00 : f32
    %74 = vector.broadcast %cst_52 : f32 to vector<8x256xf32>
    %75 = arith.addf %74, %73 : vector<8x256xf32>
    %76 = arith.mulf %70, %75 : vector<8x256xf32>
    %77 = arith.truncf %76 : vector<8x256xf32> to vector<8x256xbf16>
    %c0_53 = arith.constant 0 : index
    %c0_54 = arith.constant 0 : index
    %c0_55 = arith.constant 0 : index
    %78 = vector.load %arg9[%c0_53, %c0_54, %c0_55] : memref<1x8x256xbf16, #tpu.memory_space<vmem>>, vector<1x8x256xbf16>
    %79 = vector.shape_cast %78 : vector<1x8x256xbf16> to vector<8x256xbf16>
    %80 = vector.shape_cast %77 : vector<8x256xbf16> to vector<1x8x256xbf16>
    tpu.vector_store %arg9[%c0_53, %c0_54, %c0_55], %80 {strides = array<i32>} : memref<1x8x256xbf16, #tpu.memory_space<vmem>>, vector<1x8x256xbf16>,
    return
  }
  func.func @transform_0(%arg0: i32) -> (i32, i32, i32) {
    %c0_i32 = arith.constant 0 : i32
    %c0_i32_0 = arith.constant 0 : i32
    %c0_i32_1 = arith.constant 0 : i32
    return %arg0, %c0_i32, %c0_i32_0 : i32, i32, i32
  }
  func.func @transform_1(%arg0: i32) -> (i32, i32, i32) {
    %c0_i32 = arith.constant 0 : i32
    %c0_i32_0 = arith.constant 0 : i32
    %c0_i32_1 = arith.constant 0 : i32
    return %arg0, %c0_i32, %c0_i32_0 : i32, i32, i32
  }
  func.func @transform_2(%arg0: i32) -> (i32, i32) {
    %c0_i32 = arith.constant 0 : i32
    %c0_i32_0 = arith.constant 0 : i32
    %c0_i32_1 = arith.constant 0 : i32
    return %c0_i32, %c0_i32_0 : i32, i32
  }
  func.func @transform_3(%arg0: i32) -> (i32, i32, i32) {
    %c0_i32 = arith.constant 0 : i32
    %c0_i32_0 = arith.constant 0 : i32
    %c0_i32_1 = arith.constant 0 : i32
    %c0_i32_2 = arith.constant 0 : i32
    return %c0_i32, %c0_i32_0, %c0_i32_1 : i32, i32, i32
  }
  func.func @transform_4(%arg0: i32) -> (i32, i32, i32) {
    %c0_i32 = arith.constant 0 : i32
    %c0_i32_0 = arith.constant 0 : i32
    %c0_i32_1 = arith.constant 0 : i32
    %c0_i32_2 = arith.constant 0 : i32
    return %c0_i32, %c0_i32_0, %c0_i32_1 : i32, i32, i32
  }
  func.func @transform_5(%arg0: i32) -> (i32, i32) {
    %c0_i32 = arith.constant 0 : i32
    %c0_i32_0 = arith.constant 0 : i32
    %c0_i32_1 = arith.constant 0 : i32
    return %c0_i32, %c0_i32_0 : i32, i32
  }
  func.func @transform_6(%arg0: i32) -> (i32, i32, i32) {
    %c0_i32 = arith.constant 0 : i32
    %c0_i32_0 = arith.constant 0 : i32
    %c0_i32_1 = arith.constant 0 : i32
    %c0_i32_2 = arith.constant 0 : i32
    return %c0_i32, %c0_i32_0, %c0_i32_1 : i32, i32, i32
  }
  func.func @transform_7(%arg0: i32) -> (i32, i32) {
    %c0_i32 = arith.constant 0 : i32
    %c0_i32_0 = arith.constant 0 : i32
    %c0_i32_1 = arith.constant 0 : i32
    return %c0_i32, %c0_i32_0 : i32, i32
  }
  func.func @transform_8(%arg0: i32) -> (i32, i32, i32) {
    %c0_i32 = arith.constant 0 : i32
    %c0_i32_0 = arith.constant 0 : i32
    %c0_i32_1 = arith.constant 0 : i32
    return %arg0, %c0_i32, %c0_i32_0 : i32, i32, i32
  }
}

module attributes {stable_mosaic.version = 11 : i64} {
  func.func @kernel(%arg0: i32, %arg1: memref<1x8x256xbf16, #tpu.memory_space<vmem>>, %arg2: memref<18x8xbf16, #tpu.memory_space<vmem>>, %arg3: memref<3x256x256xbf16, #tpu.memory_space<vmem>>, %arg4: memref<1x256xf32, #tpu.memory_space<vmem>>, %arg5: memref<3x256x256xbf16, #tpu.memory_space<vmem>>, %arg6: memref<1x256xf32, #tpu.memory_space<vmem>>, %arg7: memref<1x16x256xbf16, #tpu.memory_space<vmem>>) attributes {dimension_semantics = [#tpu.dimension_semantics<parallel>], iteration_bounds = array<i64: 2>, scalar_prefetch = 0 : i64, scratch_operands = 0 : i64, tpu.core_type = #tpu.core_type<tc>, window_params = [{transform_indices = @transform_0, window_bounds = array<i64: 1, 8, 256>}, {pipeline_mode = #tpu.pipeline_mode<synchronous>, transform_indices = @transform_1, window_bounds = array<i64: 18, 8>}, {pipeline_mode = #tpu.pipeline_mode<synchronous>, transform_indices = @transform_2, window_bounds = array<i64: 3, 256, 256>}, {pipeline_mode = #tpu.pipeline_mode<synchronous>, transform_indices = @transform_3, window_bounds = array<i64: 1, 256>}, {pipeline_mode = #tpu.pipeline_mode<synchronous>, transform_indices = @transform_4, window_bounds = array<i64: 3, 256, 256>}, {pipeline_mode = #tpu.pipeline_mode<synchronous>, transform_indices = @transform_5, window_bounds = array<i64: 1, 256>}, {transform_indices = @transform_6, window_bounds = array<i64: 1, 16, 256>}]} {
    %c0 = arith.constant 0 : index
    %c0_0 = arith.constant 0 : index
    %0 = vector.load %arg2[%c0, %c0_0] : memref<18x8xbf16, #tpu.memory_space<vmem>>, vector<18x8xbf16>
    %c0_1 = arith.constant 0 : index
    %c0_2 = arith.constant 0 : index
    %c0_3 = arith.constant 0 : index
    %1 = vector.load %arg1[%c0_1, %c0_2, %c0_3] : memref<1x8x256xbf16, #tpu.memory_space<vmem>>, vector<1x8x256xbf16>
    %2 = vector.shape_cast %1 : vector<1x8x256xbf16> to vector<8x256xbf16>
    %cst = arith.constant dense<0.000000e+00> : vector<18x256xf32>
    %3 = tpu.matmul %0, %2, %cst {dimension_numbers = #tpu.dot_dimension_numbers<[1], [0], [0], [1], [0, 0, 1, 1], [], []>} : vector<18x8xbf16>, vector<8x256xbf16>, vector<18x256xf32> -> vector<18x256xf32>
    %4 = arith.truncf %3 : vector<18x256xf32> to vector<18x256xbf16>
    %5 = vector.extract_strided_slice %4 {offsets = [0, 0], sizes = [16, 256], strides = [1, 1]} : vector<18x256xbf16> to vector<16x256xbf16>
    %c0_4 = arith.constant 0 : index
    %c0_5 = arith.constant 0 : index
    %c0_6 = arith.constant 0 : index
    %6 = vector.load %arg3[%c0_4, %c0_5, %c0_6] : memref<3x256x256xbf16, #tpu.memory_space<vmem>>, vector<1x256x256xbf16>
    %7 = vector.shape_cast %6 : vector<1x256x256xbf16> to vector<256x256xbf16>
    %cst_7 = arith.constant dense<0.000000e+00> : vector<16x256xf32>
    %8 = tpu.matmul %5, %7, %cst_7 {dimension_numbers = #tpu.dot_dimension_numbers<[1], [0], [0], [1], [0, 0, 1, 1], [], []>} : vector<16x256xbf16>, vector<256x256xbf16>, vector<16x256xf32> -> vector<16x256xf32>
    %9 = vector.extract_strided_slice %4 {offsets = [1, 0], sizes = [16, 256], strides = [1, 1]} : vector<18x256xbf16> to vector<16x256xbf16>
    %c1 = arith.constant 1 : index
    %c0_8 = arith.constant 0 : index
    %c0_9 = arith.constant 0 : index
    %10 = vector.load %arg3[%c1, %c0_8, %c0_9] : memref<3x256x256xbf16, #tpu.memory_space<vmem>>, vector<1x256x256xbf16>
    %11 = vector.shape_cast %10 : vector<1x256x256xbf16> to vector<256x256xbf16>
    %cst_10 = arith.constant dense<0.000000e+00> : vector<16x256xf32>
    %12 = tpu.matmul %9, %11, %cst_10 {dimension_numbers = #tpu.dot_dimension_numbers<[1], [0], [0], [1], [0, 0, 1, 1], [], []>} : vector<16x256xbf16>, vector<256x256xbf16>, vector<16x256xf32> -> vector<16x256xf32>
    %13 = arith.addf %8, %12 : vector<16x256xf32>
    %14 = vector.extract_strided_slice %4 {offsets = [2, 0], sizes = [16, 256], strides = [1, 1]} : vector<18x256xbf16> to vector<16x256xbf16>
    %c2 = arith.constant 2 : index
    %c0_11 = arith.constant 0 : index
    %c0_12 = arith.constant 0 : index
    %15 = vector.load %arg3[%c2, %c0_11, %c0_12] : memref<3x256x256xbf16, #tpu.memory_space<vmem>>, vector<1x256x256xbf16>
    %16 = vector.shape_cast %15 : vector<1x256x256xbf16> to vector<256x256xbf16>
    %cst_13 = arith.constant dense<0.000000e+00> : vector<16x256xf32>
    %17 = tpu.matmul %14, %16, %cst_13 {dimension_numbers = #tpu.dot_dimension_numbers<[1], [0], [0], [1], [0, 0, 1, 1], [], []>} : vector<16x256xbf16>, vector<256x256xbf16>, vector<16x256xf32> -> vector<16x256xf32>
    %18 = arith.addf %13, %17 : vector<16x256xf32>
    %c0_14 = arith.constant 0 : index
    %c0_15 = arith.constant 0 : index
    %19 = vector.load %arg4[%c0_14, %c0_15] : memref<1x256xf32, #tpu.memory_space<vmem>>, vector<1x256xf32>
    %20 = vector.broadcast %19 : vector<1x256xf32> to vector<16x256xf32>
    %21 = arith.addf %18, %20 : vector<16x256xf32>
    %cst_16 = arith.constant 5.000000e-01 : f32
    %22 = vector.broadcast %cst_16 : f32 to vector<16x256xf32>
    %23 = arith.mulf %22, %21 : vector<16x256xf32>
    %cst_17 = arith.constant 1.41421354 : f32
    %24 = vector.broadcast %cst_17 : f32 to vector<16x256xf32>
    %25 = arith.divf %21, %24 : vector<16x256xf32>
    %26 = math.erf %25 : vector<16x256xf32>
    %cst_18 = arith.constant 1.000000e+00 : f32
    %27 = vector.broadcast %cst_18 : f32 to vector<16x256xf32>
    %28 = arith.addf %27, %26 : vector<16x256xf32>
    %29 = arith.mulf %23, %28 : vector<16x256xf32>
    %30 = arith.truncf %29 : vector<16x256xf32> to vector<16x256xbf16>
    %cst_19 = arith.constant 0.000000e+00 : bf16
    %31 = vector.broadcast %cst_19 : bf16 to vector<1x256xbf16>
    %32 = tpu.concatenate %31, %30, %31 in 0 : vector<1x256xbf16>, vector<16x256xbf16>, vector<1x256xbf16> -> vector<18x256xbf16>
    %33 = vector.extract_strided_slice %32 {offsets = [0, 0], sizes = [16, 256], strides = [1, 1]} : vector<18x256xbf16> to vector<16x256xbf16>
    %c0_20 = arith.constant 0 : index
    %c0_21 = arith.constant 0 : index
    %c0_22 = arith.constant 0 : index
    %34 = vector.load %arg5[%c0_20, %c0_21, %c0_22] : memref<3x256x256xbf16, #tpu.memory_space<vmem>>, vector<1x256x256xbf16>
    %35 = vector.shape_cast %34 : vector<1x256x256xbf16> to vector<256x256xbf16>
    %cst_23 = arith.constant dense<0.000000e+00> : vector<16x256xf32>
    %36 = tpu.matmul %33, %35, %cst_23 {dimension_numbers = #tpu.dot_dimension_numbers<[1], [0], [0], [1], [0, 0, 1, 1], [], []>} : vector<16x256xbf16>, vector<256x256xbf16>, vector<16x256xf32> -> vector<16x256xf32>
    %37 = vector.extract_strided_slice %32 {offsets = [1, 0], sizes = [16, 256], strides = [1, 1]} : vector<18x256xbf16> to vector<16x256xbf16>
    %c1_24 = arith.constant 1 : index
    %c0_25 = arith.constant 0 : index
    %c0_26 = arith.constant 0 : index
    %38 = vector.load %arg5[%c1_24, %c0_25, %c0_26] : memref<3x256x256xbf16, #tpu.memory_space<vmem>>, vector<1x256x256xbf16>
    %39 = vector.shape_cast %38 : vector<1x256x256xbf16> to vector<256x256xbf16>
    %cst_27 = arith.constant dense<0.000000e+00> : vector<16x256xf32>
    %40 = tpu.matmul %37, %39, %cst_27 {dimension_numbers = #tpu.dot_dimension_numbers<[1], [0], [0], [1], [0, 0, 1, 1], [], []>} : vector<16x256xbf16>, vector<256x256xbf16>, vector<16x256xf32> -> vector<16x256xf32>
    %41 = arith.addf %36, %40 : vector<16x256xf32>
    %42 = vector.extract_strided_slice %32 {offsets = [2, 0], sizes = [16, 256], strides = [1, 1]} : vector<18x256xbf16> to vector<16x256xbf16>
    %c2_28 = arith.constant 2 : index
    %c0_29 = arith.constant 0 : index
    %c0_30 = arith.constant 0 : index
    %43 = vector.load %arg5[%c2_28, %c0_29, %c0_30] : memref<3x256x256xbf16, #tpu.memory_space<vmem>>, vector<1x256x256xbf16>
    %44 = vector.shape_cast %43 : vector<1x256x256xbf16> to vector<256x256xbf16>
    %cst_31 = arith.constant dense<0.000000e+00> : vector<16x256xf32>
    %45 = tpu.matmul %42, %44, %cst_31 {dimension_numbers = #tpu.dot_dimension_numbers<[1], [0], [0], [1], [0, 0, 1, 1], [], []>} : vector<16x256xbf16>, vector<256x256xbf16>, vector<16x256xf32> -> vector<16x256xf32>
    %46 = arith.addf %41, %45 : vector<16x256xf32>
    %c0_32 = arith.constant 0 : index
    %c0_33 = arith.constant 0 : index
    %47 = vector.load %arg6[%c0_32, %c0_33] : memref<1x256xf32, #tpu.memory_space<vmem>>, vector<1x256xf32>
    %48 = vector.broadcast %47 : vector<1x256xf32> to vector<16x256xf32>
    %49 = arith.addf %46, %48 : vector<16x256xf32>
    %cst_34 = arith.constant 5.000000e-01 : f32
    %50 = vector.broadcast %cst_34 : f32 to vector<16x256xf32>
    %51 = arith.mulf %50, %49 : vector<16x256xf32>
    %cst_35 = arith.constant 1.41421354 : f32
    %52 = vector.broadcast %cst_35 : f32 to vector<16x256xf32>
    %53 = arith.divf %49, %52 : vector<16x256xf32>
    %54 = math.erf %53 : vector<16x256xf32>
    %cst_36 = arith.constant 1.000000e+00 : f32
    %55 = vector.broadcast %cst_36 : f32 to vector<16x256xf32>
    %56 = arith.addf %55, %54 : vector<16x256xf32>
    %57 = arith.mulf %51, %56 : vector<16x256xf32>
    %58 = arith.truncf %57 : vector<16x256xf32> to vector<16x256xbf16>
    %c0_37 = arith.constant 0 : index
    %c0_38 = arith.constant 0 : index
    %c0_39 = arith.constant 0 : index
    %59 = vector.load %arg7[%c0_37, %c0_38, %c0_39] : memref<1x16x256xbf16, #tpu.memory_space<vmem>>, vector<1x16x256xbf16>
    %60 = vector.shape_cast %59 : vector<1x16x256xbf16> to vector<16x256xbf16>
    %61 = vector.shape_cast %58 : vector<16x256xbf16> to vector<1x16x256xbf16>
    tpu.vector_store %arg7[%c0_37, %c0_38, %c0_39], %61 {strides = array<i32>} : memref<1x16x256xbf16, #tpu.memory_space<vmem>>, vector<1x16x256xbf16>,
    return
  }
  func.func @transform_0(%arg0: i32) -> (i32, i32, i32) {
    %c0_i32 = arith.constant 0 : i32
    %c0_i32_0 = arith.constant 0 : i32
    %c0_i32_1 = arith.constant 0 : i32
    return %arg0, %c0_i32, %c0_i32_0 : i32, i32, i32
  }
  func.func @transform_1(%arg0: i32) -> (i32, i32) {
    %c0_i32 = arith.constant 0 : i32
    %c0_i32_0 = arith.constant 0 : i32
    %c0_i32_1 = arith.constant 0 : i32
    return %c0_i32, %c0_i32_0 : i32, i32
  }
  func.func @transform_2(%arg0: i32) -> (i32, i32, i32) {
    %c0_i32 = arith.constant 0 : i32
    %c0_i32_0 = arith.constant 0 : i32
    %c0_i32_1 = arith.constant 0 : i32
    %c0_i32_2 = arith.constant 0 : i32
    return %c0_i32, %c0_i32_0, %c0_i32_1 : i32, i32, i32
  }
  func.func @transform_3(%arg0: i32) -> (i32, i32) {
    %c0_i32 = arith.constant 0 : i32
    %c0_i32_0 = arith.constant 0 : i32
    %c0_i32_1 = arith.constant 0 : i32
    return %c0_i32, %c0_i32_0 : i32, i32
  }
  func.func @transform_4(%arg0: i32) -> (i32, i32, i32) {
    %c0_i32 = arith.constant 0 : i32
    %c0_i32_0 = arith.constant 0 : i32
    %c0_i32_1 = arith.constant 0 : i32
    %c0_i32_2 = arith.constant 0 : i32
    return %c0_i32, %c0_i32_0, %c0_i32_1 : i32, i32, i32
  }
  func.func @transform_5(%arg0: i32) -> (i32, i32) {
    %c0_i32 = arith.constant 0 : i32
    %c0_i32_0 = arith.constant 0 : i32
    %c0_i32_1 = arith.constant 0 : i32
    return %c0_i32, %c0_i32_0 : i32, i32
  }
  func.func @transform_6(%arg0: i32) -> (i32, i32, i32) {
    %c0_i32 = arith.constant 0 : i32
    %c0_i32_0 = arith.constant 0 : i32
    %c0_i32_1 = arith.constant 0 : i32
    return %arg0, %c0_i32, %c0_i32_0 : i32, i32, i32
  }
}

</mosaic_0001>

<llo_original>
// kernel: tile.28
$region0: #{tile.28}
  #allocation0 [shape = 's32[1]{0}', space=sflag, size = 0x4, scoped, tag = 'scoped memory for tile.28']
  %s0 = inlined_call_operand.vmem [shape: f32[64], index: 0, kind: input, shape index: {}]
  %s1 = inlined_call_operand.vmem [shape: f32[4,64], index: 1, kind: output, shape index: {}]
  // Predicated region
  $region2: #{tile.28} parent=0 // pred_check
    _
  $region3: #{tile.28} parent=0 // pred_check_branch
    %3 = sbr.rel (0) target = $region5
  $region4: #{tile.28} parent=0 // pred_region
    _
  $region5: #{tile.28} parent=0 // pred_fallthru
    _
  %v4 = vld [vmem:[%s0] ss:$0 sm:$0xff]
  %5 = vst [vmem:[%s1] sm:$0xf] %v4

// kernel: tile.29
$region0: #{tile.29}
  %s0 = inlined_call_operand.vmem [shape: f32[4,64], index: 0, kind: input, shape index: {}]
  %s1 = inlined_call_operand.vmem [shape: f32[1,256], index: 1, kind: output, shape index: {}]
  $region1: #{tile.29} parent=0
    #allocation0 [shape = 'u8[8192]{0}', space=vmem, size = 0x2000, scoped, tag = 'scoped mem for output reshape']
    #allocation1 [shape = 'u8[4096]{0}', space=vmem, size = 0x1000, scoped, tag = 'scoped mem for input reshape']
    %s3 = ssub.s32 16, 1
    %v4 = vld [vmem:[%s0] sm:%s3]
    %5 = vst [vmem:[#allocation1] sm:%s3] %v4
    %s6 = smov 3
    %v7 = vld [vmem:[#allocation1] ss:$2 sm:%s6]
    %vm8 = vcmask 523264
    %9 = vst.msk [vmem:[#allocation0] ss:$8 sm:$0x3] %vm8, %v7
    %s10 = scalar_lea.vmem [#allocation1], 1
    %s11 = smov 3
    %v12 = vld [vmem:[%s10] ss:$2 sm:%s11]
    %13 = vrot.lane.b32.xlu0 %v12, 64
    %v14 = vpop.permute.xlu0 %13
    %vm15 = vcmask 1048064
    %16 = vst.msk [vmem:[#allocation0] ss:$8 sm:$0x3] %vm15, %v14
    %s18 = ssub.s32 2, 1
    %v19 = vld [vmem:[#allocation0] sm:%s18]
    %s21 = ssub.s32 2, 1
    %22 = vst [vmem:[%s1] sm:%s21] %v19
    %s23 = scalar_lea.vmem [#allocation0], 8
    %v24 = vld [vmem:[%s23] sm:%s18]
    %s26 = ssub.s32 2, 1
    %s27 = scalar_lea.vmem %s1, 1
    %28 = vst [vmem:[%s27] sm:%s26] %v24

// kernel: decoder_cup_forward.3
$region0: #{decoder_cup_forward.3}
  #allocation0 [shape = 'u32[]', space=smem, size = 0x4, offset = 0x4, fixed_abs, tag = 'smem constant byte address 0x4 - core index']
  #allocation1 [shape = 'u32[72,128]{1,0:T(1,128)}', space=vmem, size = 0x9000, scoped, tag = 'internal scratch']
  %s0 = inlined_call_operand.vmem [shape: bf16[2,4,128], index: 0, kind: input, shape index: {}]
  %s1 = inlined_call_operand.vmem [shape: bf16[3,128,256], index: 1, kind: input, shape index: {}]
  %s2 = inlined_call_operand.vmem [shape: f32[1,256], index: 2, kind: input, shape index: {}]
  %s3 = inlined_call_operand.vmem [shape: bf16[2,4,256], index: 3, kind: output, shape index: {}]
  %s4 = sld [smem:[#allocation0]]
  $region45: #{decoder_cup_forward.3} parent=0
    _
  %s6 = ssub.s32 1, %s4
  %s7 = scalar_select 0, %s6, %s4
  loop: start=0, step=1, limit=4
  $region2: #{decoder_cup_forward.3} parent=0 // loop_pre_header
    _
  $region3: #{decoder_cup_forward.3} parent=0 // loop_header
    %s9 = sphi 0, %s13
    %p10 = scmp.ge.s32.totalorder %s9, 4
    %s19 = sphi 0, %s21
    %s22 = sphi 0, %s19
    %s23 = sphi 0, %s22
    %s39 = sphi 0, %s23
    %s43 = sphi 0, %s43
    %s45 = sphi 0, %s43
    %s46 = sphi 0, %s45
    %s60 = sphi 0, %s46
    %s64 = sphi 0, %s64
    %s66 = sphi 0, %s64
    %s67 = sphi 0, %s66
    %s81 = sphi 0, %s67
    %s87 = sphi 0, %s89
    %s90 = sphi 0, %s87
    %s91 = sphi 0, %s90
    %s107 = sphi 0, %s91
  $region4: #{decoder_cup_forward.3} parent=0 // loop_header_branch
    %12 = sbr.rel (%p10) target = $region8
  $region5: #{decoder_cup_forward.3} parent=0 // loop_body
    %s14 = ssub.s32 %s9, 1
    %s15 = ssub.s32 %s9, 2
    %s16 = sadd.s32 %s9, 1
    %s17 = ssub.s32 %s9, %s16
    %p18 = scmp.eq.s32.totalorder %s17, 0
    %s20 = sadd.s32 %s19, 1
    %s21 = scalar_select %p18, %s19, %s20
    %p24 = pneg %p18
    %p25 = scmp.eq.s32.totalorder %s9, 1
    %p26 = por %p24, %p25
    %p27 = scmp.ne.s32.totalorder %s19, %s22
    %p28 = scmp.eq.s32.totalorder %s9, 0
    %p29 = por %p27, %p28
    %p30 = scmp.ne.s32.totalorder %s19, %s22
    %p31 = scmp.eq.s32.totalorder %s14, 1
    %p32 = por %p30, %p31
    %p33 = scmp.ne.s32.totalorder %s22, %s23
    %p34 = scmp.eq.s32.totalorder %s14, 0
    %p35 = por %p33, %p34
    %p36 = scmp.ne.s32.totalorder %s22, %s23
    %p37 = scmp.eq.s32.totalorder %s15, 1
    %p38 = por %p36, %p37
    %p40 = scmp.ne.s32.totalorder %s23, %s39
    %p41 = scmp.eq.s32.totalorder %s15, 0
    %p42 = por %p40, %p41
    %s44 = sadd.s32 %s43, 1
    %p47 = scmp.eq.s32.totalorder %s9, 1
    %p48 = scmp.ne.s32.totalorder %s43, %s45
    %p49 = scmp.eq.s32.totalorder %s9, 0
    %p50 = por %p48, %p49
    %p51 = scmp.ne.s32.totalorder %s43, %s45
    %p52 = scmp.eq.s32.totalorder %s14, 1
    %p53 = por %p51, %p52
    %p54 = scmp.ne.s32.totalorder %s45, %s46
    %p55 = scmp.eq.s32.totalorder %s14, 0
    %p56 = por %p54, %p55
    %p57 = scmp.ne.s32.totalorder %s45, %s46
    %p58 = scmp.eq.s32.totalorder %s15, 1
    %p59 = por %p57, %p58
    %p61 = scmp.ne.s32.totalorder %s46, %s60
    %p62 = scmp.eq.s32.totalorder %s15, 0
    %p63 = por %p61, %p62
    %s65 = sadd.s32 %s64, 1
    %p68 = scmp.eq.s32.totalorder %s9, 1
    %p69 = scmp.ne.s32.totalorder %s64, %s66
    %p70 = scmp.eq.s32.totalorder %s9, 0
    %p71 = por %p69, %p70
    %p72 = scmp.ne.s32.totalorder %s64, %s66
    %p73 = scmp.eq.s32.totalorder %s14, 1
    %p74 = por %p72, %p73
    %p75 = scmp.ne.s32.totalorder %s66, %s67
    %p76 = scmp.eq.s32.totalorder %s14, 0
    %p77 = por %p75, %p76
    %p78 = scmp.ne.s32.totalorder %s66, %s67
    %p79 = scmp.eq.s32.totalorder %s15, 1
    %p80 = por %p78, %p79
    %p82 = scmp.ne.s32.totalorder %s67, %s81
    %p83 = scmp.eq.s32.totalorder %s15, 0
    %p84 = por %p82, %p83
    %s85 = ssub.s32 %s9, %s16
    %p86 = scmp.eq.s32.totalorder %s85, 0
    %s88 = sadd.s32 %s87, 1
    %s89 = scalar_select %p86, %s87, %s88
    %p92 = pneg %p86
    %p93 = scmp.eq.s32.totalorder %s9, 1
    %p94 = por %p92, %p93
    %p95 = scmp.ne.s32.totalorder %s87, %s90
    %p96 = scmp.eq.s32.totalorder %s9, 0
    %p97 = por %p95, %p96
    %p98 = scmp.ne.s32.totalorder %s87, %s90
    %p99 = scmp.eq.s32.totalorder %s14, 1
    %p100 = por %p98, %p99
    %p101 = scmp.ne.s32.totalorder %s90, %s91
    %p102 = scmp.eq.s32.totalorder %s14, 0
    %p103 = por %p101, %p102
    %p104 = scmp.ne.s32.totalorder %s90, %s91
    %p105 = scmp.eq.s32.totalorder %s15, 1
    %p106 = por %p104, %p105
    %p108 = scmp.ne.s32.totalorder %s91, %s107
    %p109 = scmp.eq.s32.totalorder %s15, 0
    %p110 = por %p108, %p109
    %p111 = scmp.le.s32.totalorder 1, %s9
    %p112 = scmp.lt.s32.totalorder %s9, 3
    %p113 = pnand %p111, %p112
    %p114 = pneg %p113
    // Predicated region
    $region9: #{decoder_cup_forward.3} parent=5 // pred_check
      _
    $region10: #{decoder_cup_forward.3} parent=5 // pred_check_branch
      %116 = sbr.rel (%p113) target = $region12
    $region11: #{decoder_cup_forward.3} parent=5 // pred_region
      %s117 = ssub.s32 %s9, 1
      // Predicated region
      $region13: #{decoder_cup_forward.3} parent=11 // pred_check
        %p118 = pneg %p56
      $region14: #{decoder_cup_forward.3} parent=11 // pred_check_branch
        %120 = sbr.rel (%p118) target = $region16
      $region15: #{decoder_cup_forward.3} parent=11 // pred_region
        _
      $region16: #{decoder_cup_forward.3} parent=11 // pred_fallthru
        _
      // Predicated region
      $region17: #{decoder_cup_forward.3} parent=11 // pred_check
        %p121 = pneg %p77
      $region18: #{decoder_cup_forward.3} parent=11 // pred_check_branch
        %123 = sbr.rel (%p121) target = $region20
      $region19: #{decoder_cup_forward.3} parent=11 // pred_region
        _
      $region20: #{decoder_cup_forward.3} parent=11 // pred_fallthru
        _
    $region12: #{decoder_cup_forward.3} parent=5 // pred_fallthru
      _
    %p124 = scmp.lt.s32.totalorder %s9, 2
    // Predicated region
    $region21: #{decoder_cup_forward.3} parent=5 // pred_check
      %p125 = pneg %p124
    $region22: #{decoder_cup_forward.3} parent=5 // pred_check_branch
      %127 = sbr.rel (%p125) target = $region24
    $region23: #{decoder_cup_forward.3} parent=5 // pred_region
      // Predicated region
      $region25: #{decoder_cup_forward.3} parent=23 // pred_check
        %p128 = pneg %p29
      $region26: #{decoder_cup_forward.3} parent=23 // pred_check_branch
        %130 = sbr.rel (%p128) target = $region28
      $region27: #{decoder_cup_forward.3} parent=23 // pred_region
        %p131 = scmp.lt.s32.totalorder %s9, 1
        %s132 = scalar_select %p131, %s9, 1
        %s133 = smul.addr %s132, 2
        %s134 = scalar_lea.vmem %s0, %s133
      $region28: #{decoder_cup_forward.3} parent=23 // pred_fallthru
        _
    $region24: #{decoder_cup_forward.3} parent=5 // pred_fallthru
      _
    %p135 = scmp.le.s32.totalorder 1, %s9
    %p136 = scmp.lt.s32.totalorder %s9, 3
    %p137 = pnand %p135, %p136
    %p138 = pneg %p137
    // Predicated region
    $region29: #{decoder_cup_forward.3} parent=5 // pred_check
      _
    $region30: #{decoder_cup_forward.3} parent=5 // pred_check_branch
      %140 = sbr.rel (%p137) target = $region32
    $region31: #{decoder_cup_forward.3} parent=5 // pred_region
      %s141 = ssub.s32 %s9, 1
      %p142 = scmp.lt.s32.totalorder %s14, 1
      %s143 = scalar_select %p142, %s14, 1
      %s144 = smul.addr %s143, 2
      %s145 = scalar_lea.vmem %s0, %s144
      %p146 = pneg %p35
      %p147 = pneg %p32
      %p148 = pneg %p56
      %p149 = pneg %p53
      %p150 = pneg %p77
      %p151 = pneg %p74
      %p152 = pneg %p103
      %p153 = pneg %p100
      %p154 = scmp.lt.s32.totalorder %s14, 1
      %s155 = scalar_select %p154, %s14, 1
      %s156 = smul.addr %s155, 2
      %s157 = smul.addr %s156, 2
      %s158 = scalar_lea.vmem %s3, %s157
      %p159 = scmp.lt.s32.totalorder %s14, 1
      %s160 = scalar_select %p159, %s14, 1
      %s161 = smul.addr %s160, 2
      %s162 = scalar_lea.vmem %s0, %s161
      %p163 = scmp.lt.s32.totalorder %s14, 1
      %s164 = scalar_select %p163, %s14, 1
      %s165 = smul.addr %s164, 2
      %s166 = smul.addr %s165, 2
      %s167 = scalar_lea.vmem %s3, %s166
      %v169 = vld [vmem:[%s162] sm:$0x3]
      %171 = vst [vmem:[#allocation1] ss:$4 sm:$0xff] %v169
      %v172 = vld.sshfl [vmem:[#allocation1] sm:$0xff pattern:$0x73625140]
      %v173 = vshrl.u32 %v172, 16
      %v175 = vrot.slane %v173, 7
      %v176 = vshll.u32 %v172, 16
      %v178 = vor.u32 %v175, %v176
      %vm180 = vcmask 1040384
      %vm181 = vsmask.f32 256
      %vm182 = vmand %vm180, %vm181
      %v183 = vsel %vm182, 0, %v178
      %vm184 = vcmask 1042432
      %vm185 = vsmask.f32 2304
      %vm186 = vmand %vm184, %vm185
      %v187 = vsel %vm186, %v183, 0
      %v188 = vld [vmem:[%s1] sm:$0xff]
      %v189 = vld [vmem:[%s1 + $0x8] sm:$0xff]
      %v190 = vld [vmem:[%s1 + $0x10] sm:$0xff]
      %v191 = vld [vmem:[%s1 + $0x18] sm:$0xff]
      %v192 = vld [vmem:[%s1 + $0x20] sm:$0xff]
      %v193 = vld [vmem:[%s1 + $0x28] sm:$0xff]
      %v194 = vld [vmem:[%s1 + $0x30] sm:$0xff]
      %v195 = vld [vmem:[%s1 + $0x38] sm:$0xff]
      %v196 = vld [vmem:[%s1 + $0x40] sm:$0xff]
      %v197 = vld [vmem:[%s1 + $0x48] sm:$0xff]
      %v198 = vld [vmem:[%s1 + $0x50] sm:$0xff]
      %v199 = vld [vmem:[%s1 + $0x58] sm:$0xff]
      %v200 = vld [vmem:[%s1 + $0x60] sm:$0xff]
      %v201 = vld [vmem:[%s1 + $0x68] sm:$0xff]
      %v202 = vld [vmem:[%s1 + $0x70] sm:$0xff]
      %v203 = vld [vmem:[%s1 + $0x78] sm:$0xff]
      %s204 = scalar_lea.vmem %s1, 128
      %v205 = vld [vmem:[%s204] sm:$0xff]
      %v206 = vld [vmem:[%s204 + $0x8] sm:$0xff]
      %v207 = vld [vmem:[%s204 + $0x10] sm:$0xff]
      %v208 = vld [vmem:[%s204 + $0x18] sm:$0xff]
      %v209 = vld [vmem:[%s204 + $0x20] sm:$0xff]
      %v210 = vld [vmem:[%s204 + $0x28] sm:$0xff]
      %v211 = vld [vmem:[%s204 + $0x30] sm:$0xff]
      %v212 = vld [vmem:[%s204 + $0x38] sm:$0xff]
      %v213 = vld [vmem:[%s204 + $0x40] sm:$0xff]
      %v214 = vld [vmem:[%s204 + $0x48] sm:$0xff]
      %v215 = vld [vmem:[%s204 + $0x50] sm:$0xff]
      %v216 = vld [vmem:[%s204 + $0x58] sm:$0xff]
      %v217 = vld [vmem:[%s204 + $0x60] sm:$0xff]
      %v218 = vld [vmem:[%s204 + $0x68] sm:$0xff]
      %v219 = vld [vmem:[%s204 + $0x70] sm:$0xff]
      %v220 = vld [vmem:[%s204 + $0x78] sm:$0xff]
      %v222 = vshrl.u32 %v187, 16
      %v224 = vshll.u32 %v187, 16
      %v226 = vrot.slane %v224, 1
      %v227 = vor.u32 %v222, %v226
      %v245 = vunpack.c.l.b16 %v205
      %v246 = vunpack.c.h.b16 %v205
      %v247 = vunpack.c.l.b16 %v206
      %v248 = vunpack.c.h.b16 %v206
      %v249 = vunpack.c.l.b16 %v207
      %v250 = vunpack.c.h.b16 %v207
      %v251 = vunpack.c.l.b16 %v208
      %v252 = vunpack.c.h.b16 %v208
      %v253 = vunpack.c.l.b16 %v209
      %v254 = vunpack.c.h.b16 %v209
      %v255 = vunpack.c.l.b16 %v210
      %v256 = vunpack.c.h.b16 %v210
      %v257 = vunpack.c.l.b16 %v211
      %v258 = vunpack.c.h.b16 %v211
      %v259 = vunpack.c.l.b16 %v212
      %v260 = vunpack.c.h.b16 %v212
      %v261 = vunpack.c.l.b16 %v213
      %v262 = vunpack.c.h.b16 %v213
      %v263 = vunpack.c.l.b16 %v214
      %v264 = vunpack.c.h.b16 %v214
      %v265 = vunpack.c.l.b16 %v215
      %v266 = vunpack.c.h.b16 %v215
      %v267 = vunpack.c.l.b16 %v216
      %v268 = vunpack.c.h.b16 %v216
      %v269 = vunpack.c.l.b16 %v217
      %v270 = vunpack.c.h.b16 %v217
      %v271 = vunpack.c.l.b16 %v218
      %v272 = vunpack.c.h.b16 %v218
      %v273 = vunpack.c.l.b16 %v219
      %v274 = vunpack.c.h.b16 %v219
      %v275 = vunpack.c.l.b16 %v220
      %v276 = vunpack.c.h.b16 %v220
      %v277 = vpack.c.b16 %v247, %v245
      %v278 = vpack.c.b16 %v248, %v246
      %v279 = vpack.c.b16 %v251, %v249
      %v280 = vpack.c.b16 %v252, %v250
      %v281 = vpack.c.b16 %v255, %v253
      %v282 = vpack.c.b16 %v256, %v254
      %v283 = vpack.c.b16 %v259, %v257
      %v284 = vpack.c.b16 %v260, %v258
      %v285 = vpack.c.b16 %v263, %v261
      %v286 = vpack.c.b16 %v264, %v262
      %v287 = vpack.c.b16 %v267, %v265
      %v288 = vpack.c.b16 %v268, %v266
      %v289 = vpack.c.b16 %v271, %v269
      %v290 = vpack.c.b16 %v272, %v270
      %v291 = vpack.c.b16 %v275, %v273
      %v292 = vpack.c.b16 %v276, %v274
      %309 = vmatpush.bf16.msra.mxu0 %v291
      %310 = vmatpush.bf16.msra.mxu0 %v289
      %311 = vmatpush.bf16.msra.mxu0 %v287
      %312 = vmatpush.bf16.msra.mxu0 %v285
      %313 = vmatpush.bf16.msra.mxu0 %v283
      %314 = vmatpush.bf16.msra.mxu0 %v281
      %315 = vmatpush.bf16.msra.mxu0 %v279
      %316 = vmatpush.bf16.msra.mxu0 %v277
      %317 = vmatmul.bf16.gmra.mxu0 %v227
      %v318 = vpop.f32.mrf.mxu0
      %v319 = vadd.f32 0.0, %v318
      %v320 = vpop.f32.mrf.mxu0
      %321 = vdwg.mxu0
      %322 = vmatpush.bf16.msra.mxu0 %v292
      %323 = vmatpush.bf16.msra.mxu0 %v290
      %324 = vmatpush.bf16.msra.mxu0 %v288
      %325 = vmatpush.bf16.msra.mxu0 %v286
      %326 = vmatpush.bf16.msra.mxu0 %v284
      %327 = vmatpush.bf16.msra.mxu0 %v282
      %328 = vmatpush.bf16.msra.mxu0 %v280
      %329 = vmatpush.bf16.msra.mxu0 %v278
      %330 = vmatmul.bf16.gmra.mxu0 %v227
      %v331 = vpop.f32.mrf.mxu0
      %v332 = vadd.f32 0.0, %v331
      %v333 = vpop.f32.mrf.mxu0
      %334 = vdwg.mxu0
      %v351 = vunpack.c.l.b16 %v188
      %v352 = vunpack.c.h.b16 %v188
      %v353 = vunpack.c.l.b16 %v189
      %v354 = vunpack.c.h.b16 %v189
      %v355 = vunpack.c.l.b16 %v190
      %v356 = vunpack.c.h.b16 %v190
      %v357 = vunpack.c.l.b16 %v191
      %v358 = vunpack.c.h.b16 %v191
      %v359 = vunpack.c.l.b16 %v192
      %v360 = vunpack.c.h.b16 %v192
      %v361 = vunpack.c.l.b16 %v193
      %v362 = vunpack.c.h.b16 %v193
      %v363 = vunpack.c.l.b16 %v194
      %v364 = vunpack.c.h.b16 %v194
      %v365 = vunpack.c.l.b16 %v195
      %v366 = vunpack.c.h.b16 %v195
      %v367 = vunpack.c.l.b16 %v196
      %v368 = vunpack.c.h.b16 %v196
      %v369 = vunpack.c.l.b16 %v197
      %v370 = vunpack.c.h.b16 %v197
      %v371 = vunpack.c.l.b16 %v198
      %v372 = vunpack.c.h.b16 %v198
      %v373 = vunpack.c.l.b16 %v199
      %v374 = vunpack.c.h.b16 %v199
      %v375 = vunpack.c.l.b16 %v200
      %v376 = vunpack.c.h.b16 %v200
      %v377 = vunpack.c.l.b16 %v201
      %v378 = vunpack.c.h.b16 %v201
      %v379 = vunpack.c.l.b16 %v202
      %v380 = vunpack.c.h.b16 %v202
      %v381 = vunpack.c.l.b16 %v203
      %v382 = vunpack.c.h.b16 %v203
      %v383 = vpack.c.b16 %v353, %v351
      %v384 = vpack.c.b16 %v354, %v352
      %v385 = vpack.c.b16 %v357, %v355
      %v386 = vpack.c.b16 %v358, %v356
      %v387 = vpack.c.b16 %v361, %v359
      %v388 = vpack.c.b16 %v362, %v360
      %v389 = vpack.c.b16 %v365, %v363
      %v390 = vpack.c.b16 %v366, %v364
      %v391 = vpack.c.b16 %v369, %v367
      %v392 = vpack.c.b16 %v370, %v368
      %v393 = vpack.c.b16 %v373, %v371
      %v394 = vpack.c.b16 %v374, %v372
      %v395 = vpack.c.b16 %v377, %v375
      %v396 = vpack.c.b16 %v378, %v376
      %v397 = vpack.c.b16 %v381, %v379
      %v398 = vpack.c.b16 %v382, %v380
      %415 = vmatpush.bf16.msra.mxu0 %v397
      %416 = vmatpush.bf16.msra.mxu0 %v395
      %417 = vmatpush.bf16.msra.mxu0 %v393
      %418 = vmatpush.bf16.msra.mxu0 %v391
      %419 = vmatpush.bf16.msra.mxu0 %v389
      %420 = vmatpush.bf16.msra.mxu0 %v387
      %421 = vmatpush.bf16.msra.mxu0 %v385
      %422 = vmatpush.bf16.msra.mxu0 %v383
      %423 = vmatmul.bf16.gmra.mxu0 %v187
      %v424 = vpop.f32.mrf.mxu0
      %v425 = vadd.f32 %v319, %v424
      %v426 = vpop.f32.mrf.mxu0
      %427 = vdwg.mxu0
      %428 = vmatpush.bf16.msra.mxu0 %v398
      %429 = vmatpush.bf16.msra.mxu0 %v396
      %430 = vmatpush.bf16.msra.mxu0 %v394
      %431 = vmatpush.bf16.msra.mxu0 %v392
      %432 = vmatpush.bf16.msra.mxu0 %v390
      %433 = vmatpush.bf16.msra.mxu0 %v388
      %434 = vmatpush.bf16.msra.mxu0 %v386
      %435 = vmatpush.bf16.msra.mxu0 %v384
      %436 = vmatmul.bf16.gmra.mxu0 %v187
      %v437 = vpop.f32.mrf.mxu0
      %v438 = vadd.f32 %v332, %v437
      %v439 = vpop.f32.mrf.mxu0
      %440 = vdwg.mxu0
      %s441 = scalar_lea.vmem %s1, 256
      %v442 = vld [vmem:[%s441] sm:$0xff]
      %v443 = vld [vmem:[%s441 + $0x8] sm:$0xff]
      %v444 = vld [vmem:[%s441 + $0x10] sm:$0xff]
      %v445 = vld [vmem:[%s441 + $0x18] sm:$0xff]
      %v446 = vld [vmem:[%s441 + $0x20] sm:$0xff]
      %v447 = vld [vmem:[%s441 + $0x28] sm:$0xff]
      %v448 = vld [vmem:[%s441 + $0x30] sm:$0xff]
      %v449 = vld [vmem:[%s441 + $0x38] sm:$0xff]
      %v450 = vld [vmem:[%s441 + $0x40] sm:$0xff]
      %v451 = vld [vmem:[%s441 + $0x48] sm:$0xff]
      %v452 = vld [vmem:[%s441 + $0x50] sm:$0xff]
      %v453 = vld [vmem:[%s441 + $0x58] sm:$0xff]
      %v454 = vld [vmem:[%s441 + $0x60] sm:$0xff]
      %v455 = vld [vmem:[%s441 + $0x68] sm:$0xff]
      %v456 = vld [vmem:[%s441 + $0x70] sm:$0xff]
      %v457 = vld [vmem:[%s441 + $0x78] sm:$0xff]
      %v459 = vrot.slane %v187, 1
      %v477 = vunpack.c.l.b16 %v442
      %v478 = vunpack.c.h.b16 %v442
      %v479 = vunpack.c.l.b16 %v443
      %v480 = vunpack.c.h.b16 %v443
      %v481 = vunpack.c.l.b16 %v444
      %v482 = vunpack.c.h.b16 %v444
      %v483 = vunpack.c.l.b16 %v445
      %v484 = vunpack.c.h.b16 %v445
      %v485 = vunpack.c.l.b16 %v446
      %v486 = vunpack.c.h.b16 %v446
      %v487 = vunpack.c.l.b16 %v447
      %v488 = vunpack.c.h.b16 %v447
      %v489 = vunpack.c.l.b16 %v448
      %v490 = vunpack.c.h.b16 %v448
      %v491 = vunpack.c.l.b16 %v449
      %v492 = vunpack.c.h.b16 %v449
      %v493 = vunpack.c.l.b16 %v450
      %v494 = vunpack.c.h.b16 %v450
      %v495 = vunpack.c.l.b16 %v451
      %v496 = vunpack.c.h.b16 %v451
      %v497 = vunpack.c.l.b16 %v452
      %v498 = vunpack.c.h.b16 %v452
      %v499 = vunpack.c.l.b16 %v453
      %v500 = vunpack.c.h.b16 %v453
      %v501 = vunpack.c.l.b16 %v454
      %v502 = vunpack.c.h.b16 %v454
      %v503 = vunpack.c.l.b16 %v455
      %v504 = vunpack.c.h.b16 %v455
      %v505 = vunpack.c.l.b16 %v456
      %v506 = vunpack.c.h.b16 %v456
      %v507 = vunpack.c.l.b16 %v457
      %v508 = vunpack.c.h.b16 %v457
      %v509 = vpack.c.b16 %v479, %v477
      %v510 = vpack.c.b16 %v480, %v478
      %v511 = vpack.c.b16 %v483, %v481
      %v512 = vpack.c.b16 %v484, %v482
      %v513 = vpack.c.b16 %v487, %v485
      %v514 = vpack.c.b16 %v488, %v486
      %v515 = vpack.c.b16 %v491, %v489
      %v516 = vpack.c.b16 %v492, %v490
      %v517 = vpack.c.b16 %v495, %v493
      %v518 = vpack.c.b16 %v496, %v494
      %v519 = vpack.c.b16 %v499, %v497
      %v520 = vpack.c.b16 %v500, %v498
      %v521 = vpack.c.b16 %v503, %v501
      %v522 = vpack.c.b16 %v504, %v502
      %v523 = vpack.c.b16 %v507, %v505
      %v524 = vpack.c.b16 %v508, %v506
      %541 = vmatpush.bf16.msra.mxu0 %v523
      %542 = vmatpush.bf16.msra.mxu0 %v521
      %543 = vmatpush.bf16.msra.mxu0 %v519
      %544 = vmatpush.bf16.msra.mxu0 %v517
      %545 = vmatpush.bf16.msra.mxu0 %v515
      %546 = vmatpush.bf16.msra.mxu0 %v513
      %547 = vmatpush.bf16.msra.mxu0 %v511
      %548 = vmatpush.bf16.msra.mxu0 %v509
      %549 = vmatmul.bf16.gmra.mxu0 %v459
      %v550 = vpop.f32.mrf.mxu0
      %v551 = vadd.f32 0.0, %v550
      %v552 = vpop.f32.mrf.mxu0
      %553 = vdwg.mxu0
      %554 = vmatpush.bf16.msra.mxu0 %v524
      %555 = vmatpush.bf16.msra.mxu0 %v522
      %556 = vmatpush.bf16.msra.mxu0 %v520
      %557 = vmatpush.bf16.msra.mxu0 %v518
      %558 = vmatpush.bf16.msra.mxu0 %v516
      %559 = vmatpush.bf16.msra.mxu0 %v514
      %560 = vmatpush.bf16.msra.mxu0 %v512
      %561 = vmatpush.bf16.msra.mxu0 %v510
      %562 = vmatmul.bf16.gmra.mxu0 %v459
      %v563 = vpop.f32.mrf.mxu0
      %v564 = vadd.f32 0.0, %v563
      %v565 = vpop.f32.mrf.mxu0
      %566 = vdwg.mxu0
      %v567 = vadd.f32 %v425, %v551
      %v568 = vadd.f32 %v438, %v564
      %v569 = vld [vmem:[%s2] sm:$0x3]
      %v571 = vperm.slane %v569, 0
      %v572 = vperm.slane %v569, 1
      %v575 = vadd.f32 %v567, %v571
      %v576 = vadd.f32 %v568, %v572
      %v577 = vmul.f32 %v575, 0.5
      %v578 = vmul.f32 %v576, 0.5
      %v579 = vrcp.pop 1.4142135
      %v580 = vmul.f32 1.4142135, %v579
      %v581 = vsub.f32 1.0, %v580
      %v582 = vmul.f32 %v579, %v581
      %v583 = vadd.f32 %v579, %v582
      %vm584 = vweird.f32 %v579
      %v585 = vsel %vm584, %v579, %v583
      %v586 = vmul.f32 %v575, %v585
      %v587 = vmul.f32 %v576, %v585
      %v588 = vmul.f32 %v586, %v586
      %v589 = vmin.f32 16.0, %v588
      %v590 = vmul.f32 %v589, 2.1237322e-06
      %v591 = vadd.f32 %v590, 0.00028619796
      %v592 = vmul.f32 %v589, %v591
      %v593 = vadd.f32 %v592, 0.0036580483
      %v594 = vmul.f32 %v589, %v593
      %v595 = vadd.f32 %v594, 0.05243302
      %v596 = vmul.f32 %v589, %v595
      %v597 = vadd.f32 %v596, 0.18741608
      %v598 = vmul.f32 %v589, %v597
      %v599 = vadd.f32 %v598, 1.1283791
      %v600 = vmul.f32 %v586, %v599
      %v601 = vmul.f32 %v589, 3.8918573e-05
      %v602 = vadd.f32 %v601, 0.001143296
      %v603 = vmul.f32 %v589, %v602
      %v604 = vadd.f32 %v603, 0.014752088
      %v605 = vmul.f32 %v589, %v604
      %v606 = vadd.f32 %v605, 0.112945676
      %v607 = vmul.f32 %v589, %v606
      %v608 = vadd.f32 %v607, 0.4994258
      %v609 = vmul.f32 %v589, %v608
      %v610 = vadd.f32 %v609, 1.0
      %v611 = vrcp.pop %v610
      %v612 = vmul.f32 %v610, %v611
      %v613 = vsub.f32 1.0, %v612
      %v614 = vmul.f32 %v611, %v613
      %v615 = vadd.f32 %v611, %v614
      %vm616 = vweird.f32 %v610
      %vm617 = vweird.f32 %v611
      %vm618 = vmor %vm616, %vm617
      %v619 = vsel %vm618, %v611, %v615
      %v620 = vand.u32 2147483647, %v610
      %vm621 = vcmp.eq.f32.partialorder %v620, 8.507059e+37
      %v622 = vand.u32 %v610, 2147483648
      %v623 = vor.u32 1.1754944e-38, %v622
      %v624 = vsel %vm621, %v623, %v619
      %v625 = vmul.f32 %v600, %v624
      %v626 = vmin.f32 %v625, 1.0
      %v627 = vmax.f32 %v626, -1.0
      %v628 = vmul.f32 %v587, %v587
      %v629 = vmin.f32 16.0, %v628
      %v630 = vmul.f32 %v629, 2.1237322e-06
      %v631 = vadd.f32 %v630, 0.00028619796
      %v632 = vmul.f32 %v629, %v631
      %v633 = vadd.f32 %v632, 0.0036580483
      %v634 = vmul.f32 %v629, %v633
      %v635 = vadd.f32 %v634, 0.05243302
      %v636 = vmul.f32 %v629, %v635
      %v637 = vadd.f32 %v636, 0.18741608
      %v638 = vmul.f32 %v629, %v637
      %v639 = vadd.f32 %v638, 1.1283791
      %v640 = vmul.f32 %v587, %v639
      %v641 = vmul.f32 %v629, 3.8918573e-05
      %v642 = vadd.f32 %v641, 0.001143296
      %v643 = vmul.f32 %v629, %v642
      %v644 = vadd.f32 %v643, 0.014752088
      %v645 = vmul.f32 %v629, %v644
      %v646 = vadd.f32 %v645, 0.112945676
      %v647 = vmul.f32 %v629, %v646
      %v648 = vadd.f32 %v647, 0.4994258
      %v649 = vmul.f32 %v629, %v648
      %v650 = vadd.f32 %v649, 1.0
      %v651 = vrcp.pop %v650
      %v652 = vmul.f32 %v650, %v651
      %v653 = vsub.f32 1.0, %v652
      %v654 = vmul.f32 %v651, %v653
      %v655 = vadd.f32 %v651, %v654
      %vm656 = vweird.f32 %v650
      %vm657 = vweird.f32 %v651
      %vm658 = vmor %vm656, %vm657
      %v659 = vsel %vm658, %v651, %v655
      %v660 = vand.u32 2147483647, %v650
      %vm661 = vcmp.eq.f32.partialorder %v660, 8.507059e+37
      %v662 = vand.u32 %v650, 2147483648
      %v663 = vor.u32 1.1754944e-38, %v662
      %v664 = vsel %vm661, %v663, %v659
      %v665 = vmul.f32 %v640, %v664
      %v666 = vmin.f32 %v665, 1.0
      %v667 = vmax.f32 %v666, -1.0
      %v668 = vadd.f32 %v627, 1.0
      %v669 = vadd.f32 %v667, 1.0
      %v670 = vmul.f32 %v577, %v668
      %v671 = vmul.f32 %v578, %v669
      %v672 = vpack.c.bf16 %v671, %v670
      %v674 = vrot.slane %v672, 2
      %vm675 = vcmask 1041408
      %v678 = vsel %vm675, %v672, %v674
      %680 = vst [vmem:[%s167] sm:$0xf] %v678
      %p681 = scmp.lt.s32.totalorder %s14, 1
      %s682 = scalar_select %p681, %s14, 1
      %s683 = smul.addr %s682, 2
      %s684 = smul.addr %s683, 2
      %s685 = scalar_lea.vmem %s3, %s684
      // Predicated region
      $region33: #{decoder_cup_forward.3} parent=31 // pred_check
        %p686 = pneg %p100
      $region34: #{decoder_cup_forward.3} parent=31 // pred_check_branch
        %688 = sbr.rel (%p686) target = $region36
      $region35: #{decoder_cup_forward.3} parent=31 // pred_region
        _
      $region36: #{decoder_cup_forward.3} parent=31 // pred_fallthru
        _
    $region32: #{decoder_cup_forward.3} parent=5 // pred_fallthru
      _
    %p689 = scmp.le.s32.totalorder 2, %s9
    // Predicated region
    $region37: #{decoder_cup_forward.3} parent=5 // pred_check
      %p690 = pneg %p689
    $region38: #{decoder_cup_forward.3} parent=5 // pred_check_branch
      %692 = sbr.rel (%p690) target = $region40
    $region39: #{decoder_cup_forward.3} parent=5 // pred_region
      %s693 = ssub.s32 %s9, 2
      // Predicated region
      $region41: #{decoder_cup_forward.3} parent=39 // pred_check
        %p694 = pneg %p106
      $region42: #{decoder_cup_forward.3} parent=39 // pred_check_branch
        %696 = sbr.rel (%p694) target = $region44
      $region43: #{decoder_cup_forward.3} parent=39 // pred_region
        %p697 = scmp.lt.s32.totalorder %s15, 1
        %s698 = scalar_select %p697, %s15, 1
        %s699 = smul.addr %s698, 2
        %s700 = smul.addr %s699, 2
        %s701 = scalar_lea.vmem %s3, %s700
      $region44: #{decoder_cup_forward.3} parent=39 // pred_fallthru
        _
    $region40: #{decoder_cup_forward.3} parent=5 // pred_fallthru
      _
  $region6: #{decoder_cup_forward.3} parent=0 // loop_footer
    %s13 = sadd.s32 1, %s9
  $region7: #{decoder_cup_forward.3} parent=0 // loop_footer_branch
    %8 = sbr.rel target = $region3
  $region8: #{decoder_cup_forward.3} parent=0 // loop_exit
    _

// kernel: tile.33
$region0: #{tile.33}
  #allocation0 [shape = 's32[1]{0}', space=sflag, size = 0x4, scoped, tag = 'scoped memory for tile.33']
  %s0 = inlined_call_operand.vmem [shape: f32[32], index: 0, kind: input, shape index: {}]
  %s1 = inlined_call_operand.vmem [shape: f32[8,32], index: 1, kind: output, shape index: {}]
  // Predicated region
  $region2: #{tile.33} parent=0 // pred_check
    _
  $region3: #{tile.33} parent=0 // pred_check_branch
    %3 = sbr.rel (0) target = $region5
  $region4: #{tile.33} parent=0 // pred_region
    _
  $region5: #{tile.33} parent=0 // pred_fallthru
    _
  %v4 = vld [vmem:[%s0] ss:$0 sm:$0xff]
  %5 = vst [vmem:[%s1] sm:$0xff] %v4

// kernel: tile.34
$region0: #{tile.34}
  %s0 = inlined_call_operand.vmem [shape: f32[8,32], index: 0, kind: input, shape index: {}]
  %s1 = inlined_call_operand.vmem [shape: f32[1,256], index: 1, kind: output, shape index: {}]
  $region1: #{tile.34} parent=0
    #allocation0 [shape = 'u8[8192]{0}', space=vmem, size = 0x2000, scoped, tag = 'scoped mem for output reshape']
    %s2 = smov 3
    %v3 = vld [vmem:[%s0] ss:$4 sm:%s2]
    %vm4 = vcmask 261120
    %5 = vst.msk [vmem:[#allocation0] ss:$8 sm:$0x3] %vm4, %v3
    %s6 = scalar_lea.vmem %s0, 3
    %s7 = smov 3
    %v8 = vld [vmem:[%s6] ss:$4 sm:%s7]
    %9 = vrot.lane.b32.xlu0 %v8, 96
    %v10 = vpop.permute.xlu0 %9
    %vm11 = vcmask 1048320
    %12 = vst.msk [vmem:[#allocation0] ss:$8 sm:$0x3] %vm11, %v10
    %s13 = scalar_lea.vmem %s0, 2
    %s14 = smov 3
    %v15 = vld [vmem:[%s13] ss:$4 sm:%s14]
    %16 = vrot.lane.b32.xlu0 %v15, 64
    %v17 = vpop.permute.xlu0 %16
    %vm18 = vcmask 785920
    %19 = vst.msk [vmem:[#allocation0] ss:$8 sm:$0x3] %vm18, %v17
    %s20 = scalar_lea.vmem %s0, 1
    %s21 = smov 3
    %v22 = vld [vmem:[%s20] ss:$4 sm:%s21]
    %23 = vrot.lane.b32.xlu0 %v22, 32
    %v24 = vpop.permute.xlu0 %23
    %vm25 = vcmask 523520
    %26 = vst.msk [vmem:[#allocation0] ss:$8 sm:$0x3] %vm25, %v24
    %s28 = ssub.s32 2, 1
    %v29 = vld [vmem:[#allocation0] sm:%s28]
    %s31 = ssub.s32 2, 1
    %32 = vst [vmem:[%s1] sm:%s31] %v29
    %s33 = scalar_lea.vmem [#allocation0], 8
    %v34 = vld [vmem:[%s33] sm:%s28]
    %s36 = ssub.s32 2, 1
    %s37 = scalar_lea.vmem %s1, 1
    %38 = vst [vmem:[%s37] sm:%s36] %v34

// kernel: decoder_cup_forward.4
$region0: #{decoder_cup_forward.4}
  #allocation0 [shape = 'u32[]', space=smem, size = 0x4, offset = 0x4, fixed_abs, tag = 'smem constant byte address 0x4 - core index']
  #allocation1 [shape = 'u32[72,128]{1,0:T(1,128)}', space=vmem, size = 0x9000, scoped, tag = 'internal scratch']
  %s0 = inlined_call_operand.vmem [shape: bf16[2,4,256], index: 0, kind: input, shape index: {}]
  %s1 = inlined_call_operand.vmem [shape: bf16[2,8,64], index: 1, kind: input, shape index: {}]
  %s2 = inlined_call_operand.vmem [shape: bf16[10,4], index: 2, kind: input, shape index: {}]
  %s3 = inlined_call_operand.vmem [shape: bf16[3,256,256], index: 3, kind: input, shape index: {}]
  %s4 = inlined_call_operand.vmem [shape: bf16[3,64,256], index: 4, kind: input, shape index: {}]
  %s5 = inlined_call_operand.vmem [shape: f32[1,256], index: 5, kind: input, shape index: {}]
  %s6 = inlined_call_operand.vmem [shape: bf16[3,256,256], index: 6, kind: input, shape index: {}]
  %s7 = inlined_call_operand.vmem [shape: f32[1,256], index: 7, kind: input, shape index: {}]
  %s8 = inlined_call_operand.vmem [shape: bf16[2,8,256], index: 8, kind: output, shape index: {}]
  %s9 = sld [smem:[#allocation0]]
  $region65: #{decoder_cup_forward.4} parent=0
    _
  %s11 = ssub.s32 1, %s9
  %s12 = scalar_select 0, %s11, %s9
  loop: start=0, step=1, limit=4
  $region2: #{decoder_cup_forward.4} parent=0 // loop_pre_header
    _
  $region3: #{decoder_cup_forward.4} parent=0 // loop_header
    %s14 = sphi 0, %s18
    %p15 = scmp.ge.s32.totalorder %s14, 4
    %s24 = sphi 0, %s26
    %s27 = sphi 0, %s24
    %s28 = sphi 0, %s27
    %s44 = sphi 0, %s28
    %s50 = sphi 0, %s52
    %s53 = sphi 0, %s50
    %s54 = sphi 0, %s53
    %s70 = sphi 0, %s54
    %s74 = sphi 0, %s74
    %s76 = sphi 0, %s74
    %s77 = sphi 0, %s76
    %s91 = sphi 0, %s77
    %s95 = sphi 0, %s95
    %s97 = sphi 0, %s95
    %s98 = sphi 0, %s97
    %s112 = sphi 0, %s98
    %s116 = sphi 0, %s116
    %s118 = sphi 0, %s116
    %s119 = sphi 0, %s118
    %s133 = sphi 0, %s119
    %s137 = sphi 0, %s137
    %s139 = sphi 0, %s137
    %s140 = sphi 0, %s139
    %s154 = sphi 0, %s140
    %s158 = sphi 0, %s158
    %s160 = sphi 0, %s158
    %s161 = sphi 0, %s160
    %s175 = sphi 0, %s161
    %s179 = sphi 0, %s179
    %s181 = sphi 0, %s179
    %s182 = sphi 0, %s181
    %s196 = sphi 0, %s182
    %s202 = sphi 0, %s204
    %s205 = sphi 0, %s202
    %s206 = sphi 0, %s205
    %s222 = sphi 0, %s206
  $region4: #{decoder_cup_forward.4} parent=0 // loop_header_branch
    %17 = sbr.rel (%p15) target = $region8
  $region5: #{decoder_cup_forward.4} parent=0 // loop_body
    %s19 = ssub.s32 %s14, 1
    %s20 = ssub.s32 %s14, 2
    %s21 = sadd.s32 %s14, 1
    %s22 = ssub.s32 %s14, %s21
    %p23 = scmp.eq.s32.totalorder %s22, 0
    %s25 = sadd.s32 %s24, 1
    %s26 = scalar_select %p23, %s24, %s25
    %p29 = pneg %p23
    %p30 = scmp.eq.s32.totalorder %s14, 1
    %p31 = por %p29, %p30
    %p32 = scmp.ne.s32.totalorder %s24, %s27
    %p33 = scmp.eq.s32.totalorder %s14, 0
    %p34 = por %p32, %p33
    %p35 = scmp.ne.s32.totalorder %s24, %s27
    %p36 = scmp.eq.s32.totalorder %s19, 1
    %p37 = por %p35, %p36
    %p38 = scmp.ne.s32.totalorder %s27, %s28
    %p39 = scmp.eq.s32.totalorder %s19, 0
    %p40 = por %p38, %p39
    %p41 = scmp.ne.s32.totalorder %s27, %s28
    %p42 = scmp.eq.s32.totalorder %s20, 1
    %p43 = por %p41, %p42
    %p45 = scmp.ne.s32.totalorder %s28, %s44
    %p46 = scmp.eq.s32.totalorder %s20, 0
    %p47 = por %p45, %p46
    %s48 = ssub.s32 %s14, %s21
    %p49 = scmp.eq.s32.totalorder %s48, 0
    %s51 = sadd.s32 %s50, 1
    %s52 = scalar_select %p49, %s50, %s51
    %p55 = pneg %p49
    %p56 = scmp.eq.s32.totalorder %s14, 1
    %p57 = por %p55, %p56
    %p58 = scmp.ne.s32.totalorder %s50, %s53
    %p59 = scmp.eq.s32.totalorder %s14, 0
    %p60 = por %p58, %p59
    %p61 = scmp.ne.s32.totalorder %s50, %s53
    %p62 = scmp.eq.s32.totalorder %s19, 1
    %p63 = por %p61, %p62
    %p64 = scmp.ne.s32.totalorder %s53, %s54
    %p65 = scmp.eq.s32.totalorder %s19, 0
    %p66 = por %p64, %p65
    %p67 = scmp.ne.s32.totalorder %s53, %s54
    %p68 = scmp.eq.s32.totalorder %s20, 1
    %p69 = por %p67, %p68
    %p71 = scmp.ne.s32.totalorder %s54, %s70
    %p72 = scmp.eq.s32.totalorder %s20, 0
    %p73 = por %p71, %p72
    %s75 = sadd.s32 %s74, 1
    %p78 = scmp.eq.s32.totalorder %s14, 1
    %p79 = scmp.ne.s32.totalorder %s74, %s76
    %p80 = scmp.eq.s32.totalorder %s14, 0
    %p81 = por %p79, %p80
    %p82 = scmp.ne.s32.totalorder %s74, %s76
    %p83 = scmp.eq.s32.totalorder %s19, 1
    %p84 = por %p82, %p83
    %p85 = scmp.ne.s32.totalorder %s76, %s77
    %p86 = scmp.eq.s32.totalorder %s19, 0
    %p87 = por %p85, %p86
    %p88 = scmp.ne.s32.totalorder %s76, %s77
    %p89 = scmp.eq.s32.totalorder %s20, 1
    %p90 = por %p88, %p89
    %p92 = scmp.ne.s32.totalorder %s77, %s91
    %p93 = scmp.eq.s32.totalorder %s20, 0
    %p94 = por %p92, %p93
    %s96 = sadd.s32 %s95, 1
    %p99 = scmp.eq.s32.totalorder %s14, 1
    %p100 = scmp.ne.s32.totalorder %s95, %s97
    %p101 = scmp.eq.s32.totalorder %s14, 0
    %p102 = por %p100, %p101
    %p103 = scmp.ne.s32.totalorder %s95, %s97
    %p104 = scmp.eq.s32.totalorder %s19, 1
    %p105 = por %p103, %p104
    %p106 = scmp.ne.s32.totalorder %s97, %s98
    %p107 = scmp.eq.s32.totalorder %s19, 0
    %p108 = por %p106, %p107
    %p109 = scmp.ne.s32.totalorder %s97, %s98
    %p110 = scmp.eq.s32.totalorder %s20, 1
    %p111 = por %p109, %p110
    %p113 = scmp.ne.s32.totalorder %s98, %s112
    %p114 = scmp.eq.s32.totalorder %s20, 0
    %p115 = por %p113, %p114
    %s117 = sadd.s32 %s116, 1
    %p120 = scmp.eq.s32.totalorder %s14, 1
    %p121 = scmp.ne.s32.totalorder %s116, %s118
    %p122 = scmp.eq.s32.totalorder %s14, 0
    %p123 = por %p121, %p122
    %p124 = scmp.ne.s32.totalorder %s116, %s118
    %p125 = scmp.eq.s32.totalorder %s19, 1
    %p126 = por %p124, %p125
    %p127 = scmp.ne.s32.totalorder %s118, %s119
    %p128 = scmp.eq.s32.totalorder %s19, 0
    %p129 = por %p127, %p128
    %p130 = scmp.ne.s32.totalorder %s118, %s119
    %p131 = scmp.eq.s32.totalorder %s20, 1
    %p132 = por %p130, %p131
    %p134 = scmp.ne.s32.totalorder %s119, %s133
    %p135 = scmp.eq.s32.totalorder %s20, 0
    %p136 = por %p134, %p135
    %s138 = sadd.s32 %s137, 1
    %p141 = scmp.eq.s32.totalorder %s14, 1
    %p142 = scmp.ne.s32.totalorder %s137, %s139
    %p143 = scmp.eq.s32.totalorder %s14, 0
    %p144 = por %p142, %p143
    %p145 = scmp.ne.s32.totalorder %s137, %s139
    %p146 = scmp.eq.s32.totalorder %s19, 1
    %p147 = por %p145, %p146
    %p148 = scmp.ne.s32.totalorder %s139, %s140
    %p149 = scmp.eq.s32.totalorder %s19, 0
    %p150 = por %p148, %p149
    %p151 = scmp.ne.s32.totalorder %s139, %s140
    %p152 = scmp.eq.s32.totalorder %s20, 1
    %p153 = por %p151, %p152
    %p155 = scmp.ne.s32.totalorder %s140, %s154
    %p156 = scmp.eq.s32.totalorder %s20, 0
    %p157 = por %p155, %p156
    %s159 = sadd.s32 %s158, 1
    %p162 = scmp.eq.s32.totalorder %s14, 1
    %p163 = scmp.ne.s32.totalorder %s158, %s160
    %p164 = scmp.eq.s32.totalorder %s14, 0
    %p165 = por %p163, %p164
    %p166 = scmp.ne.s32.totalorder %s158, %s160
    %p167 = scmp.eq.s32.totalorder %s19, 1
    %p168 = por %p166, %p167
    %p169 = scmp.ne.s32.totalorder %s160, %s161
    %p170 = scmp.eq.s32.totalorder %s19, 0
    %p171 = por %p169, %p170
    %p172 = scmp.ne.s32.totalorder %s160, %s161
    %p173 = scmp.eq.s32.totalorder %s20, 1
    %p174 = por %p172, %p173
    %p176 = scmp.ne.s32.totalorder %s161, %s175
    %p177 = scmp.eq.s32.totalorder %s20, 0
    %p178 = por %p176, %p177
    %s180 = sadd.s32 %s179, 1
    %p183 = scmp.eq.s32.totalorder %s14, 1
    %p184 = scmp.ne.s32.totalorder %s179, %s181
    %p185 = scmp.eq.s32.totalorder %s14, 0
    %p186 = por %p184, %p185
    %p187 = scmp.ne.s32.totalorder %s179, %s181
    %p188 = scmp.eq.s32.totalorder %s19, 1
    %p189 = por %p187, %p188
    %p190 = scmp.ne.s32.totalorder %s181, %s182
    %p191 = scmp.eq.s32.totalorder %s19, 0
    %p192 = por %p190, %p191
    %p193 = scmp.ne.s32.totalorder %s181, %s182
    %p194 = scmp.eq.s32.totalorder %s20, 1
    %p195 = por %p193, %p194
    %p197 = scmp.ne.s32.totalorder %s182, %s196
    %p198 = scmp.eq.s32.totalorder %s20, 0
    %p199 = por %p197, %p198
    %s200 = ssub.s32 %s14, %s21
    %p201 = scmp.eq.s32.totalorder %s200, 0
    %s203 = sadd.s32 %s202, 1
    %s204 = scalar_select %p201, %s202, %s203
    %p207 = pneg %p201
    %p208 = scmp.eq.s32.totalorder %s14, 1
    %p209 = por %p207, %p208
    %p210 = scmp.ne.s32.totalorder %s202, %s205
    %p211 = scmp.eq.s32.totalorder %s14, 0
    %p212 = por %p210, %p211
    %p213 = scmp.ne.s32.totalorder %s202, %s205
    %p214 = scmp.eq.s32.totalorder %s19, 1
    %p215 = por %p213, %p214
    %p216 = scmp.ne.s32.totalorder %s205, %s206
    %p217 = scmp.eq.s32.totalorder %s19, 0
    %p218 = por %p216, %p217
    %p219 = scmp.ne.s32.totalorder %s205, %s206
    %p220 = scmp.eq.s32.totalorder %s20, 1
    %p221 = por %p219, %p220
    %p223 = scmp.ne.s32.totalorder %s206, %s222
    %p224 = scmp.eq.s32.totalorder %s20, 0
    %p225 = por %p223, %p224
    %p226 = scmp.le.s32.totalorder 1, %s14
    %p227 = scmp.lt.s32.totalorder %s14, 3
    %p228 = pnand %p226, %p227
    %p229 = pneg %p228
    // Predicated region
    $region9: #{decoder_cup_forward.4} parent=5 // pred_check
      _
    $region10: #{decoder_cup_forward.4} parent=5 // pred_check_branch
      %231 = sbr.rel (%p228) target = $region12
    $region11: #{decoder_cup_forward.4} parent=5 // pred_region
      %s232 = ssub.s32 %s14, 1
      // Predicated region
      $region13: #{decoder_cup_forward.4} parent=11 // pred_check
        %p233 = pneg %p87
      $region14: #{decoder_cup_forward.4} parent=11 // pred_check_branch
        %235 = sbr.rel (%p233) target = $region16
      $region15: #{decoder_cup_forward.4} parent=11 // pred_region
        _
      $region16: #{decoder_cup_forward.4} parent=11 // pred_fallthru
        _
      // Predicated region
      $region17: #{decoder_cup_forward.4} parent=11 // pred_check
        %p236 = pneg %p108
      $region18: #{decoder_cup_forward.4} parent=11 // pred_check_branch
        %238 = sbr.rel (%p236) target = $region20
      $region19: #{decoder_cup_forward.4} parent=11 // pred_region
        _
      $region20: #{decoder_cup_forward.4} parent=11 // pred_fallthru
        _
      // Predicated region
      $region21: #{decoder_cup_forward.4} parent=11 // pred_check
        %p239 = pneg %p129
      $region22: #{decoder_cup_forward.4} parent=11 // pred_check_branch
        %241 = sbr.rel (%p239) target = $region24
      $region23: #{decoder_cup_forward.4} parent=11 // pred_region
        _
      $region24: #{decoder_cup_forward.4} parent=11 // pred_fallthru
        _
      // Predicated region
      $region25: #{decoder_cup_forward.4} parent=11 // pred_check
        %p242 = pneg %p150
      $region26: #{decoder_cup_forward.4} parent=11 // pred_check_branch
        %244 = sbr.rel (%p242) target = $region28
      $region27: #{decoder_cup_forward.4} parent=11 // pred_region
        _
      $region28: #{decoder_cup_forward.4} parent=11 // pred_fallthru
        _
      // Predicated region
      $region29: #{decoder_cup_forward.4} parent=11 // pred_check
        %p245 = pneg %p171
      $region30: #{decoder_cup_forward.4} parent=11 // pred_check_branch
        %247 = sbr.rel (%p245) target = $region32
      $region31: #{decoder_cup_forward.4} parent=11 // pred_region
        _
      $region32: #{decoder_cup_forward.4} parent=11 // pred_fallthru
        _
      // Predicated region
      $region33: #{decoder_cup_forward.4} parent=11 // pred_check
        %p248 = pneg %p192
      $region34: #{decoder_cup_forward.4} parent=11 // pred_check_branch
        %250 = sbr.rel (%p248) target = $region36
      $region35: #{decoder_cup_forward.4} parent=11 // pred_region
        _
      $region36: #{decoder_cup_forward.4} parent=11 // pred_fallthru
        _
    $region12: #{decoder_cup_forward.4} parent=5 // pred_fallthru
      _
    %p251 = scmp.lt.s32.totalorder %s14, 2
    // Predicated region
    $region37: #{decoder_cup_forward.4} parent=5 // pred_check
      %p252 = pneg %p251
    $region38: #{decoder_cup_forward.4} parent=5 // pred_check_branch
      %254 = sbr.rel (%p252) target = $region40
    $region39: #{decoder_cup_forward.4} parent=5 // pred_region
      // Predicated region
      $region41: #{decoder_cup_forward.4} parent=39 // pred_check
        %p255 = pneg %p34
      $region42: #{decoder_cup_forward.4} parent=39 // pred_check_branch
        %257 = sbr.rel (%p255) target = $region44
      $region43: #{decoder_cup_forward.4} parent=39 // pred_region
        %p258 = scmp.lt.s32.totalorder %s14, 1
        %s259 = scalar_select %p258, %s14, 1
        %s260 = smul.addr %s259, 2
        %s261 = smul.addr %s260, 2
        %s262 = scalar_lea.vmem %s0, %s261
      $region44: #{decoder_cup_forward.4} parent=39 // pred_fallthru
        _
      // Predicated region
      $region45: #{decoder_cup_forward.4} parent=39 // pred_check
        %p263 = pneg %p60
      $region46: #{decoder_cup_forward.4} parent=39 // pred_check_branch
        %265 = sbr.rel (%p263) target = $region48
      $region47: #{decoder_cup_forward.4} parent=39 // pred_region
        %p266 = scmp.lt.s32.totalorder %s14, 1
        %s267 = scalar_select %p266, %s14, 1
        %s268 = smul.addr %s267, 4
        %s269 = scalar_lea.vmem %s1, %s268
      $region48: #{decoder_cup_forward.4} parent=39 // pred_fallthru
        _
    $region40: #{decoder_cup_forward.4} parent=5 // pred_fallthru
      _
    %p270 = scmp.le.s32.totalorder 1, %s14
    %p271 = scmp.lt.s32.totalorder %s14, 3
    %p272 = pnand %p270, %p271
    %p273 = pneg %p272
    // Predicated region
    $region49: #{decoder_cup_forward.4} parent=5 // pred_check
      _
    $region50: #{decoder_cup_forward.4} parent=5 // pred_check_branch
      %275 = sbr.rel (%p272) target = $region52
    $region51: #{decoder_cup_forward.4} parent=5 // pred_region
      %s276 = ssub.s32 %s14, 1
      %p277 = scmp.lt.s32.totalorder %s19, 1
      %s278 = scalar_select %p277, %s19, 1
      %s279 = smul.addr %s278, 2
      %s280 = smul.addr %s279, 2
      %s281 = scalar_lea.vmem %s0, %s280
      %p282 = pneg %p40
      %p283 = pneg %p37
      %p284 = scmp.lt.s32.totalorder %s19, 1
      %s285 = scalar_select %p284, %s19, 1
      %s286 = smul.addr %s285, 4
      %s287 = scalar_lea.vmem %s1, %s286
      %p288 = pneg %p66
      %p289 = pneg %p63
      %p290 = pneg %p87
      %p291 = pneg %p84
      %p292 = pneg %p108
      %p293 = pneg %p105
      %p294 = pneg %p129
      %p295 = pneg %p126
      %p296 = pneg %p150
      %p297 = pneg %p147
      %p298 = pneg %p171
      %p299 = pneg %p168
      %p300 = pneg %p192
      %p301 = pneg %p189
      %p302 = pneg %p218
      %p303 = pneg %p215
      %p304 = scmp.lt.s32.totalorder %s19, 1
      %s305 = scalar_select %p304, %s19, 1
      %s306 = smul.addr %s305, 2
      %s307 = smul.addr %s306, 4
      %s308 = scalar_lea.vmem %s8, %s307
      %p309 = scmp.lt.s32.totalorder %s19, 1
      %s310 = scalar_select %p309, %s19, 1
      %s311 = smul.addr %s310, 2
      %s312 = smul.addr %s311, 2
      %s313 = scalar_lea.vmem %s0, %s312
      %p314 = scmp.lt.s32.totalorder %s19, 1
      %s315 = scalar_select %p314, %s19, 1
      %s316 = smul.addr %s315, 4
      %s317 = scalar_lea.vmem %s1, %s316
      %p318 = scmp.lt.s32.totalorder %s19, 1
      %s319 = scalar_select %p318, %s19, 1
      %s320 = smul.addr %s319, 2
      %s321 = smul.addr %s320, 4
      %s322 = scalar_lea.vmem %s8, %s321
      %v324 = vld [vmem:[%s2] sm:$0xf]
      %v325 = vld [vmem:[%s2 + $0x4] sm:$0x1]
      %v326 = vld [vmem:[%s313] sm:$0xf]
      %v329 = vunpack.c.l.b16 %v324
      %v330 = vunpack.c.l.b16 %v325
      %v331 = vpack.c.b16 %v330, %v329
      %333 = vst [vmem:[#allocation1] ss:$4 sm:$0xff] %v326
      %v334 = vld.sshfl [vmem:[#allocation1] sm:$0xff pattern:$0x73625140]
      %v335 = vld.sshfl [vmem:[#allocation1 + $0x8] sm:$0xff pattern:$0x73625140]
      %vm336 = vcmask 31744
      %v338 = vsel %vm336, %v331, 0
      %vm340 = vcmask 1041408
      %v341 = vsel %vm340, %v334, 0
      %v343 = vsel %vm340, %v335, 0
      %345 = vmatpush.bf16.msra.mxu0 0
      %346 = vmatpush.bf16.msra.mxu0 0
      %347 = vmatpush.bf16.msra.mxu0 0
      %348 = vmatpush.bf16.msra.mxu0 0
      %349 = vmatpush.bf16.msra.mxu0 0
      %350 = vmatpush.bf16.msra.mxu0 0
      %351 = vmatpush.bf16.msra.mxu0 0
      %352 = vmatpush.bf16.msra.mxu0 %v341
      %353 = vmatmul.bf16.gmra.mxu0 %v338
      %v354 = vpop.f32.mrf.mxu0
      %v355 = vadd.f32 0.0, %v354
      %v356 = vpop.f32.mrf.mxu0
      %v357 = vadd.f32 0.0, %v356
      %358 = vdwg.mxu0
      %359 = vmatpush.bf16.msra.mxu0 0
      %360 = vmatpush.bf16.msra.mxu0 0
      %361 = vmatpush.bf16.msra.mxu0 0
      %362 = vmatpush.bf16.msra.mxu0 0
      %363 = vmatpush.bf16.msra.mxu0 0
      %364 = vmatpush.bf16.msra.mxu0 0
      %365 = vmatpush.bf16.msra.mxu0 0
      %366 = vmatpush.bf16.msra.mxu0 %v343
      %367 = vmatmul.bf16.gmra.mxu0 %v338
      %v368 = vpop.f32.mrf.mxu0
      %v369 = vadd.f32 0.0, %v368
      %v370 = vpop.f32.mrf.mxu0
      %v371 = vadd.f32 0.0, %v370
      %372 = vdwg.mxu0
      %v373 = vpack.c.bf16 %v369, %v355
      %v374 = vpack.c.bf16 %v371, %v357
      %v375 = vld [vmem:[%s3] sm:$0xff]
      %v376 = vld [vmem:[%s3 + $0x8] sm:$0xff]
      %v377 = vld [vmem:[%s3 + $0x10] sm:$0xff]
      %v378 = vld [vmem:[%s3 + $0x18] sm:$0xff]
      %v379 = vld [vmem:[%s3 + $0x20] sm:$0xff]
      %v380 = vld [vmem:[%s3 + $0x28] sm:$0xff]
      %v381 = vld [vmem:[%s3 + $0x30] sm:$0xff]
      %v382 = vld [vmem:[%s3 + $0x38] sm:$0xff]
      %v383 = vld [vmem:[%s3 + $0x40] sm:$0xff]
      %v384 = vld [vmem:[%s3 + $0x48] sm:$0xff]
      %v385 = vld [vmem:[%s3 + $0x50] sm:$0xff]
      %v386 = vld [vmem:[%s3 + $0x58] sm:$0xff]
      %v387 = vld [vmem:[%s3 + $0x60] sm:$0xff]
      %v388 = vld [vmem:[%s3 + $0x68] sm:$0xff]
      %v389 = vld [vmem:[%s3 + $0x70] sm:$0xff]
      %v390 = vld [vmem:[%s3 + $0x78] sm:$0xff]
      %v391 = vld [vmem:[%s3 + $0x80] sm:$0xff]
      %v392 = vld [vmem:[%s3 + $0x88] sm:$0xff]
      %v393 = vld [vmem:[%s3 + $0x90] sm:$0xff]
      %v394 = vld [vmem:[%s3 + $0x98] sm:$0xff]
      %v395 = vld [vmem:[%s3 + $0xa0] sm:$0xff]
      %v396 = vld [vmem:[%s3 + $0xa8] sm:$0xff]
      %v397 = vld [vmem:[%s3 + $0xb0] sm:$0xff]
      %v398 = vld [vmem:[%s3 + $0xb8] sm:$0xff]
      %v399 = vld [vmem:[%s3 + $0xc0] sm:$0xff]
      %v400 = vld [vmem:[%s3 + $0xc8] sm:$0xff]
      %v401 = vld [vmem:[%s3 + $0xd0] sm:$0xff]
      %v402 = vld [vmem:[%s3 + $0xd8] sm:$0xff]
      %v403 = vld [vmem:[%s3 + $0xe0] sm:$0xff]
      %v404 = vld [vmem:[%s3 + $0xe8] sm:$0xff]
      %v405 = vld [vmem:[%s3 + $0xf0] sm:$0xff]
      %v406 = vld [vmem:[%s3 + $0xf8] sm:$0xff]
      %s407 = scalar_lea.vmem %s3, 256
      %v408 = vld [vmem:[%s407] sm:$0xff]
      %v409 = vld [vmem:[%s407 + $0x8] sm:$0xff]
      %v410 = vld [vmem:[%s407 + $0x10] sm:$0xff]
      %v411 = vld [vmem:[%s407 + $0x18] sm:$0xff]
      %v412 = vld [vmem:[%s407 + $0x20] sm:$0xff]
      %v413 = vld [vmem:[%s407 + $0x28] sm:$0xff]
      %v414 = vld [vmem:[%s407 + $0x30] sm:$0xff]
      %v415 = vld [vmem:[%s407 + $0x38] sm:$0xff]
      %v416 = vld [vmem:[%s407 + $0x40] sm:$0xff]
      %v417 = vld [vmem:[%s407 + $0x48] sm:$0xff]
      %v418 = vld [vmem:[%s407 + $0x50] sm:$0xff]
      %v419 = vld [vmem:[%s407 + $0x58] sm:$0xff]
      %v420 = vld [vmem:[%s407 + $0x60] sm:$0xff]
      %v421 = vld [vmem:[%s407 + $0x68] sm:$0xff]
      %v422 = vld [vmem:[%s407 + $0x70] sm:$0xff]
      %v423 = vld [vmem:[%s407 + $0x78] sm:$0xff]
      %v424 = vld [vmem:[%s407 + $0x80] sm:$0xff]
      %v425 = vld [vmem:[%s407 + $0x88] sm:$0xff]
      %v426 = vld [vmem:[%s407 + $0x90] sm:$0xff]
      %v427 = vld [vmem:[%s407 + $0x98] sm:$0xff]
      %v428 = vld [vmem:[%s407 + $0xa0] sm:$0xff]
      %v429 = vld [vmem:[%s407 + $0xa8] sm:$0xff]
      %v430 = vld [vmem:[%s407 + $0xb0] sm:$0xff]
      %v431 = vld [vmem:[%s407 + $0xb8] sm:$0xff]
      %v432 = vld [vmem:[%s407 + $0xc0] sm:$0xff]
      %v433 = vld [vmem:[%s407 + $0xc8] sm:$0xff]
      %v434 = vld [vmem:[%s407 + $0xd0] sm:$0xff]
      %v435 = vld [vmem:[%s407 + $0xd8] sm:$0xff]
      %v436 = vld [vmem:[%s407 + $0xe0] sm:$0xff]
      %v437 = vld [vmem:[%s407 + $0xe8] sm:$0xff]
      %v438 = vld [vmem:[%s407 + $0xf0] sm:$0xff]
      %v439 = vld [vmem:[%s407 + $0xf8] sm:$0xff]
      %v442 = vunpack.c.l.b16 %v373
      %v443 = vunpack.c.h.b16 %v373
      %v444 = vunpack.c.l.b16 %v374
      %v445 = vunpack.c.h.b16 %v374
      %v446 = vpack.c.b16 %v444, %v442
      %v447 = vpack.c.b16 %v445, %v443
      %v449 = vshrl.u32 %v446, 16
      %v451 = vshll.u32 %v446, 16
      %v453 = vrot.slane %v451, 1
      %v454 = vor.u32 %v449, %v453
      %v456 = vshrl.u32 %v447, 16
      %v458 = vshll.u32 %v447, 16
      %v460 = vrot.slane %v458, 1
      %v461 = vor.u32 %v456, %v460
      %v496 = vunpack.c.l.b16 %v408
      %v497 = vunpack.c.h.b16 %v408
      %v498 = vunpack.c.l.b16 %v409
      %v499 = vunpack.c.h.b16 %v409
      %v500 = vunpack.c.l.b16 %v410
      %v501 = vunpack.c.h.b16 %v410
      %v502 = vunpack.c.l.b16 %v411
      %v503 = vunpack.c.h.b16 %v411
      %v504 = vunpack.c.l.b16 %v412
      %v505 = vunpack.c.h.b16 %v412
      %v506 = vunpack.c.l.b16 %v413
      %v507 = vunpack.c.h.b16 %v413
      %v508 = vunpack.c.l.b16 %v414
      %v509 = vunpack.c.h.b16 %v414
      %v510 = vunpack.c.l.b16 %v415
      %v511 = vunpack.c.h.b16 %v415
      %v512 = vunpack.c.l.b16 %v416
      %v513 = vunpack.c.h.b16 %v416
      %v514 = vunpack.c.l.b16 %v417
      %v515 = vunpack.c.h.b16 %v417
      %v516 = vunpack.c.l.b16 %v418
      %v517 = vunpack.c.h.b16 %v418
      %v518 = vunpack.c.l.b16 %v419
      %v519 = vunpack.c.h.b16 %v419
      %v520 = vunpack.c.l.b16 %v420
      %v521 = vunpack.c.h.b16 %v420
      %v522 = vunpack.c.l.b16 %v421
      %v523 = vunpack.c.h.b16 %v421
      %v524 = vunpack.c.l.b16 %v422
      %v525 = vunpack.c.h.b16 %v422
      %v526 = vunpack.c.l.b16 %v423
      %v527 = vunpack.c.h.b16 %v423
      %v528 = vunpack.c.l.b16 %v424
      %v529 = vunpack.c.h.b16 %v424
      %v530 = vunpack.c.l.b16 %v425
      %v531 = vunpack.c.h.b16 %v425
      %v532 = vunpack.c.l.b16 %v426
      %v533 = vunpack.c.h.b16 %v426
      %v534 = vunpack.c.l.b16 %v427
      %v535 = vunpack.c.h.b16 %v427
      %v536 = vunpack.c.l.b16 %v428
      %v537 = vunpack.c.h.b16 %v428
      %v538 = vunpack.c.l.b16 %v429
      %v539 = vunpack.c.h.b16 %v429
      %v540 = vunpack.c.l.b16 %v430
      %v541 = vunpack.c.h.b16 %v430
      %v542 = vunpack.c.l.b16 %v431
      %v543 = vunpack.c.h.b16 %v431
      %v544 = vunpack.c.l.b16 %v432
      %v545 = vunpack.c.h.b16 %v432
      %v546 = vunpack.c.l.b16 %v433
      %v547 = vunpack.c.h.b16 %v433
      %v548 = vunpack.c.l.b16 %v434
      %v549 = vunpack.c.h.b16 %v434
      %v550 = vunpack.c.l.b16 %v435
      %v551 = vunpack.c.h.b16 %v435
      %v552 = vunpack.c.l.b16 %v436
      %v553 = vunpack.c.h.b16 %v436
      %v554 = vunpack.c.l.b16 %v437
      %v555 = vunpack.c.h.b16 %v437
      %v556 = vunpack.c.l.b16 %v438
      %v557 = vunpack.c.h.b16 %v438
      %v558 = vunpack.c.l.b16 %v439
      %v559 = vunpack.c.h.b16 %v439
      %v560 = vpack.c.b16 %v498, %v496
      %v561 = vpack.c.b16 %v499, %v497
      %v562 = vpack.c.b16 %v502, %v500
      %v563 = vpack.c.b16 %v503, %v501
      %v564 = vpack.c.b16 %v506, %v504
      %v565 = vpack.c.b16 %v507, %v505
      %v566 = vpack.c.b16 %v510, %v508
      %v567 = vpack.c.b16 %v511, %v509
      %v568 = vpack.c.b16 %v514, %v512
      %v569 = vpack.c.b16 %v515, %v513
      %v570 = vpack.c.b16 %v518, %v516
      %v571 = vpack.c.b16 %v519, %v517
      %v572 = vpack.c.b16 %v522, %v520
      %v573 = vpack.c.b16 %v523, %v521
      %v574 = vpack.c.b16 %v526, %v524
      %v575 = vpack.c.b16 %v527, %v525
      %v576 = vpack.c.b16 %v530, %v528
      %v577 = vpack.c.b16 %v531, %v529
      %v578 = vpack.c.b16 %v534, %v532
      %v579 = vpack.c.b16 %v535, %v533
      %v580 = vpack.c.b16 %v538, %v536
      %v581 = vpack.c.b16 %v539, %v537
      %v582 = vpack.c.b16 %v542, %v540
      %v583 = vpack.c.b16 %v543, %v541
      %v584 = vpack.c.b16 %v546, %v544
      %v585 = vpack.c.b16 %v547, %v545
      %v586 = vpack.c.b16 %v550, %v548
      %v587 = vpack.c.b16 %v551, %v549
      %v588 = vpack.c.b16 %v554, %v552
      %v589 = vpack.c.b16 %v555, %v553
      %v590 = vpack.c.b16 %v558, %v556
      %v591 = vpack.c.b16 %v559, %v557
      %624 = vmatpush.bf16.msra.mxu0 %v574
      %625 = vmatpush.bf16.msra.mxu0 %v572
      %626 = vmatpush.bf16.msra.mxu0 %v570
      %627 = vmatpush.bf16.msra.mxu0 %v568
      %628 = vmatpush.bf16.msra.mxu0 %v566
      %629 = vmatpush.bf16.msra.mxu0 %v564
      %630 = vmatpush.bf16.msra.mxu0 %v562
      %631 = vmatpush.bf16.msra.mxu0 %v560
      %632 = vmatmul.bf16.gmra.mxu0 %v454
      %v633 = vpop.f32.mrf.mxu0
      %v634 = vadd.f32 0.0, %v633
      %v635 = vpop.f32.mrf.mxu0
      %636 = vdwg.mxu0
      %637 = vmatpush.bf16.msra.mxu0 %v590
      %638 = vmatpush.bf16.msra.mxu0 %v588
      %639 = vmatpush.bf16.msra.mxu0 %v586
      %640 = vmatpush.bf16.msra.mxu0 %v584
      %641 = vmatpush.bf16.msra.mxu0 %v582
      %642 = vmatpush.bf16.msra.mxu0 %v580
      %643 = vmatpush.bf16.msra.mxu0 %v578
      %644 = vmatpush.bf16.msra.mxu0 %v576
      %645 = vmatmul.bf16.gmra.mxu0 %v461
      %v646 = vpop.f32.mrf.mxu0
      %v647 = vadd.f32 %v634, %v646
      %v648 = vpop.f32.mrf.mxu0
      %649 = vdwg.mxu0
      %650 = vmatpush.bf16.msra.mxu0 %v575
      %651 = vmatpush.bf16.msra.mxu0 %v573
      %652 = vmatpush.bf16.msra.mxu0 %v571
      %653 = vmatpush.bf16.msra.mxu0 %v569
      %654 = vmatpush.bf16.msra.mxu0 %v567
      %655 = vmatpush.bf16.msra.mxu0 %v565
      %656 = vmatpush.bf16.msra.mxu0 %v563
      %657 = vmatpush.bf16.msra.mxu0 %v561
      %658 = vmatmul.bf16.gmra.mxu0 %v454
      %v659 = vpop.f32.mrf.mxu0
      %v660 = vadd.f32 0.0, %v659
      %v661 = vpop.f32.mrf.mxu0
      %662 = vdwg.mxu0
      %663 = vmatpush.bf16.msra.mxu0 %v591
      %664 = vmatpush.bf16.msra.mxu0 %v589
      %665 = vmatpush.bf16.msra.mxu0 %v587
      %666 = vmatpush.bf16.msra.mxu0 %v585
      %667 = vmatpush.bf16.msra.mxu0 %v583
      %668 = vmatpush.bf16.msra.mxu0 %v581
      %669 = vmatpush.bf16.msra.mxu0 %v579
      %670 = vmatpush.bf16.msra.mxu0 %v577
      %671 = vmatmul.bf16.gmra.mxu0 %v461
      %v672 = vpop.f32.mrf.mxu0
      %v673 = vadd.f32 %v660, %v672
      %v674 = vpop.f32.mrf.mxu0
      %675 = vdwg.mxu0
      %v676 = vpack.c.b16 %v442, %v442
      %v677 = vpack.c.b16 %v443, %v443
      %v712 = vunpack.c.l.b16 %v375
      %v713 = vunpack.c.h.b16 %v375
      %v714 = vunpack.c.l.b16 %v376
      %v715 = vunpack.c.h.b16 %v376
      %v716 = vunpack.c.l.b16 %v377
      %v717 = vunpack.c.h.b16 %v377
      %v718 = vunpack.c.l.b16 %v378
      %v719 = vunpack.c.h.b16 %v378
      %v720 = vunpack.c.l.b16 %v379
      %v721 = vunpack.c.h.b16 %v379
      %v722 = vunpack.c.l.b16 %v380
      %v723 = vunpack.c.h.b16 %v380
      %v724 = vunpack.c.l.b16 %v381
      %v725 = vunpack.c.h.b16 %v381
      %v726 = vunpack.c.l.b16 %v382
      %v727 = vunpack.c.h.b16 %v382
      %v728 = vunpack.c.l.b16 %v383
      %v729 = vunpack.c.h.b16 %v383
      %v730 = vunpack.c.l.b16 %v384
      %v731 = vunpack.c.h.b16 %v384
      %v732 = vunpack.c.l.b16 %v385
      %v733 = vunpack.c.h.b16 %v385
      %v734 = vunpack.c.l.b16 %v386
      %v735 = vunpack.c.h.b16 %v386
      %v736 = vunpack.c.l.b16 %v387
      %v737 = vunpack.c.h.b16 %v387
      %v738 = vunpack.c.l.b16 %v388
      %v739 = vunpack.c.h.b16 %v388
      %v740 = vunpack.c.l.b16 %v389
      %v741 = vunpack.c.h.b16 %v389
      %v742 = vunpack.c.l.b16 %v390
      %v743 = vunpack.c.h.b16 %v390
      %v744 = vunpack.c.l.b16 %v391
      %v745 = vunpack.c.h.b16 %v391
      %v746 = vunpack.c.l.b16 %v392
      %v747 = vunpack.c.h.b16 %v392
      %v748 = vunpack.c.l.b16 %v393
      %v749 = vunpack.c.h.b16 %v393
      %v750 = vunpack.c.l.b16 %v394
      %v751 = vunpack.c.h.b16 %v394
      %v752 = vunpack.c.l.b16 %v395
      %v753 = vunpack.c.h.b16 %v395
      %v754 = vunpack.c.l.b16 %v396
      %v755 = vunpack.c.h.b16 %v396
      %v756 = vunpack.c.l.b16 %v397
      %v757 = vunpack.c.h.b16 %v397
      %v758 = vunpack.c.l.b16 %v398
      %v759 = vunpack.c.h.b16 %v398
      %v760 = vunpack.c.l.b16 %v399
      %v761 = vunpack.c.h.b16 %v399
      %v762 = vunpack.c.l.b16 %v400
      %v763 = vunpack.c.h.b16 %v400
      %v764 = vunpack.c.l.b16 %v401
      %v765 = vunpack.c.h.b16 %v401
      %v766 = vunpack.c.l.b16 %v402
      %v767 = vunpack.c.h.b16 %v402
      %v768 = vunpack.c.l.b16 %v403
      %v769 = vunpack.c.h.b16 %v403
      %v770 = vunpack.c.l.b16 %v404
      %v771 = vunpack.c.h.b16 %v404
      %v772 = vunpack.c.l.b16 %v405
      %v773 = vunpack.c.h.b16 %v405
      %v774 = vunpack.c.l.b16 %v406
      %v775 = vunpack.c.h.b16 %v406
      %v776 = vpack.c.b16 %v714, %v712
      %v777 = vpack.c.b16 %v715, %v713
      %v778 = vpack.c.b16 %v718, %v716
      %v779 = vpack.c.b16 %v719, %v717
      %v780 = vpack.c.b16 %v722, %v720
      %v781 = vpack.c.b16 %v723, %v721
      %v782 = vpack.c.b16 %v726, %v724
      %v783 = vpack.c.b16 %v727, %v725
      %v784 = vpack.c.b16 %v730, %v728
      %v785 = vpack.c.b16 %v731, %v729
      %v786 = vpack.c.b16 %v734, %v732
      %v787 = vpack.c.b16 %v735, %v733
      %v788 = vpack.c.b16 %v738, %v736
      %v789 = vpack.c.b16 %v739, %v737
      %v790 = vpack.c.b16 %v742, %v740
      %v791 = vpack.c.b16 %v743, %v741
      %v792 = vpack.c.b16 %v746, %v744
      %v793 = vpack.c.b16 %v747, %v745
      %v794 = vpack.c.b16 %v750, %v748
      %v795 = vpack.c.b16 %v751, %v749
      %v796 = vpack.c.b16 %v754, %v752
      %v797 = vpack.c.b16 %v755, %v753
      %v798 = vpack.c.b16 %v758, %v756
      %v799 = vpack.c.b16 %v759, %v757
      %v800 = vpack.c.b16 %v762, %v760
      %v801 = vpack.c.b16 %v763, %v761
      %v802 = vpack.c.b16 %v766, %v764
      %v803 = vpack.c.b16 %v767, %v765
      %v804 = vpack.c.b16 %v770, %v768
      %v805 = vpack.c.b16 %v771, %v769
      %v806 = vpack.c.b16 %v774, %v772
      %v807 = vpack.c.b16 %v775, %v773
      %840 = vmatpush.bf16.msra.mxu0 %v790
      %841 = vmatpush.bf16.msra.mxu0 %v788
      %842 = vmatpush.bf16.msra.mxu0 %v786
      %843 = vmatpush.bf16.msra.mxu0 %v784
      %844 = vmatpush.bf16.msra.mxu0 %v782
      %845 = vmatpush.bf16.msra.mxu0 %v780
      %846 = vmatpush.bf16.msra.mxu0 %v778
      %847 = vmatpush.bf16.msra.mxu0 %v776
      %848 = vmatmul.bf16.gmra.mxu0 %v676
      %v849 = vpop.f32.mrf.mxu0
      %v850 = vadd.f32 %v647, %v849
      %v851 = vpop.f32.mrf.mxu0
      %852 = vdwg.mxu0
      %853 = vmatpush.bf16.msra.mxu0 %v806
      %854 = vmatpush.bf16.msra.mxu0 %v804
      %855 = vmatpush.bf16.msra.mxu0 %v802
      %856 = vmatpush.bf16.msra.mxu0 %v800
      %857 = vmatpush.bf16.msra.mxu0 %v798
      %858 = vmatpush.bf16.msra.mxu0 %v796
      %859 = vmatpush.bf16.msra.mxu0 %v794
      %860 = vmatpush.bf16.msra.mxu0 %v792
      %861 = vmatmul.bf16.gmra.mxu0 %v677
      %v862 = vpop.f32.mrf.mxu0
      %v863 = vadd.f32 %v850, %v862
      %v864 = vpop.f32.mrf.mxu0
      %865 = vdwg.mxu0
      %866 = vmatpush.bf16.msra.mxu0 %v791
      %867 = vmatpush.bf16.msra.mxu0 %v789
      %868 = vmatpush.bf16.msra.mxu0 %v787
      %869 = vmatpush.bf16.msra.mxu0 %v785
      %870 = vmatpush.bf16.msra.mxu0 %v783
      %871 = vmatpush.bf16.msra.mxu0 %v781
      %872 = vmatpush.bf16.msra.mxu0 %v779
      %873 = vmatpush.bf16.msra.mxu0 %v777
      %874 = vmatmul.bf16.gmra.mxu0 %v676
      %v875 = vpop.f32.mrf.mxu0
      %v876 = vadd.f32 %v673, %v875
      %v877 = vpop.f32.mrf.mxu0
      %878 = vdwg.mxu0
      %879 = vmatpush.bf16.msra.mxu0 %v807
      %880 = vmatpush.bf16.msra.mxu0 %v805
      %881 = vmatpush.bf16.msra.mxu0 %v803
      %882 = vmatpush.bf16.msra.mxu0 %v801
      %883 = vmatpush.bf16.msra.mxu0 %v799
      %884 = vmatpush.bf16.msra.mxu0 %v797
      %885 = vmatpush.bf16.msra.mxu0 %v795
      %886 = vmatpush.bf16.msra.mxu0 %v793
      %887 = vmatmul.bf16.gmra.mxu0 %v677
      %v888 = vpop.f32.mrf.mxu0
      %v889 = vadd.f32 %v876, %v888
      %v890 = vpop.f32.mrf.mxu0
      %891 = vdwg.mxu0
      %s892 = scalar_lea.vmem %s3, 512
      %v893 = vld [vmem:[%s892] sm:$0xff]
      %v894 = vld [vmem:[%s892 + $0x8] sm:$0xff]
      %v895 = vld [vmem:[%s892 + $0x10] sm:$0xff]
      %v896 = vld [vmem:[%s892 + $0x18] sm:$0xff]
      %v897 = vld [vmem:[%s892 + $0x20] sm:$0xff]
      %v898 = vld [vmem:[%s892 + $0x28] sm:$0xff]
      %v899 = vld [vmem:[%s892 + $0x30] sm:$0xff]
      %v900 = vld [vmem:[%s892 + $0x38] sm:$0xff]
      %v901 = vld [vmem:[%s892 + $0x40] sm:$0xff]
      %v902 = vld [vmem:[%s892 + $0x48] sm:$0xff]
      %v903 = vld [vmem:[%s892 + $0x50] sm:$0xff]
      %v904 = vld [vmem:[%s892 + $0x58] sm:$0xff]
      %v905 = vld [vmem:[%s892 + $0x60] sm:$0xff]
      %v906 = vld [vmem:[%s892 + $0x68] sm:$0xff]
      %v907 = vld [vmem:[%s892 + $0x70] sm:$0xff]
      %v908 = vld [vmem:[%s892 + $0x78] sm:$0xff]
      %v909 = vld [vmem:[%s892 + $0x80] sm:$0xff]
      %v910 = vld [vmem:[%s892 + $0x88] sm:$0xff]
      %v911 = vld [vmem:[%s892 + $0x90] sm:$0xff]
      %v912 = vld [vmem:[%s892 + $0x98] sm:$0xff]
      %v913 = vld [vmem:[%s892 + $0xa0] sm:$0xff]
      %v914 = vld [vmem:[%s892 + $0xa8] sm:$0xff]
      %v915 = vld [vmem:[%s892 + $0xb0] sm:$0xff]
      %v916 = vld [vmem:[%s892 + $0xb8] sm:$0xff]
      %v917 = vld [vmem:[%s892 + $0xc0] sm:$0xff]
      %v918 = vld [vmem:[%s892 + $0xc8] sm:$0xff]
      %v919 = vld [vmem:[%s892 + $0xd0] sm:$0xff]
      %v920 = vld [vmem:[%s892 + $0xd8] sm:$0xff]
      %v921 = vld [vmem:[%s892 + $0xe0] sm:$0xff]
      %v922 = vld [vmem:[%s892 + $0xe8] sm:$0xff]
      %v923 = vld [vmem:[%s892 + $0xf0] sm:$0xff]
      %v924 = vld [vmem:[%s892 + $0xf8] sm:$0xff]
      %v925 = vrot.slane %v446, 1
      %v926 = vrot.slane %v447, 1
      %v961 = vunpack.c.l.b16 %v893
      %v962 = vunpack.c.h.b16 %v893
      %v963 = vunpack.c.l.b16 %v894
      %v964 = vunpack.c.h.b16 %v894
      %v965 = vunpack.c.l.b16 %v895
      %v966 = vunpack.c.h.b16 %v895
      %v967 = vunpack.c.l.b16 %v896
      %v968 = vunpack.c.h.b16 %v896
      %v969 = vunpack.c.l.b16 %v897
      %v970 = vunpack.c.h.b16 %v897
      %v971 = vunpack.c.l.b16 %v898
      %v972 = vunpack.c.h.b16 %v898
      %v973 = vunpack.c.l.b16 %v899
      %v974 = vunpack.c.h.b16 %v899
      %v975 = vunpack.c.l.b16 %v900
      %v976 = vunpack.c.h.b16 %v900
      %v977 = vunpack.c.l.b16 %v901
      %v978 = vunpack.c.h.b16 %v901
      %v979 = vunpack.c.l.b16 %v902
      %v980 = vunpack.c.h.b16 %v902
      %v981 = vunpack.c.l.b16 %v903
      %v982 = vunpack.c.h.b16 %v903
      %v983 = vunpack.c.l.b16 %v904
      %v984 = vunpack.c.h.b16 %v904
      %v985 = vunpack.c.l.b16 %v905
      %v986 = vunpack.c.h.b16 %v905
      %v987 = vunpack.c.l.b16 %v906
      %v988 = vunpack.c.h.b16 %v906
      %v989 = vunpack.c.l.b16 %v907
      %v990 = vunpack.c.h.b16 %v907
      %v991 = vunpack.c.l.b16 %v908
      %v992 = vunpack.c.h.b16 %v908
      %v993 = vunpack.c.l.b16 %v909
      %v994 = vunpack.c.h.b16 %v909
      %v995 = vunpack.c.l.b16 %v910
      %v996 = vunpack.c.h.b16 %v910
      %v997 = vunpack.c.l.b16 %v911
      %v998 = vunpack.c.h.b16 %v911
      %v999 = vunpack.c.l.b16 %v912
      %v1000 = vunpack.c.h.b16 %v912
      %v1001 = vunpack.c.l.b16 %v913
      %v1002 = vunpack.c.h.b16 %v913
      %v1003 = vunpack.c.l.b16 %v914
      %v1004 = vunpack.c.h.b16 %v914
      %v1005 = vunpack.c.l.b16 %v915
      %v1006 = vunpack.c.h.b16 %v915
      %v1007 = vunpack.c.l.b16 %v916
      %v1008 = vunpack.c.h.b16 %v916
      %v1009 = vunpack.c.l.b16 %v917
      %v1010 = vunpack.c.h.b16 %v917
      %v1011 = vunpack.c.l.b16 %v918
      %v1012 = vunpack.c.h.b16 %v918
      %v1013 = vunpack.c.l.b16 %v919
      %v1014 = vunpack.c.h.b16 %v919
      %v1015 = vunpack.c.l.b16 %v920
      %v1016 = vunpack.c.h.b16 %v920
      %v1017 = vunpack.c.l.b16 %v921
      %v1018 = vunpack.c.h.b16 %v921
      %v1019 = vunpack.c.l.b16 %v922
      %v1020 = vunpack.c.h.b16 %v922
      %v1021 = vunpack.c.l.b16 %v923
      %v1022 = vunpack.c.h.b16 %v923
      %v1023 = vunpack.c.l.b16 %v924
      %v1024 = vunpack.c.h.b16 %v924
      %v1025 = vpack.c.b16 %v963, %v961
      %v1026 = vpack.c.b16 %v964, %v962
      %v1027 = vpack.c.b16 %v967, %v965
      %v1028 = vpack.c.b16 %v968, %v966
      %v1029 = vpack.c.b16 %v971, %v969
      %v1030 = vpack.c.b16 %v972, %v970
      %v1031 = vpack.c.b16 %v975, %v973
      %v1032 = vpack.c.b16 %v976, %v974
      %v1033 = vpack.c.b16 %v979, %v977
      %v1034 = vpack.c.b16 %v980, %v978
      %v1035 = vpack.c.b16 %v983, %v981
      %v1036 = vpack.c.b16 %v984, %v982
      %v1037 = vpack.c.b16 %v987, %v985
      %v1038 = vpack.c.b16 %v988, %v986
      %v1039 = vpack.c.b16 %v991, %v989
      %v1040 = vpack.c.b16 %v992, %v990
      %v1041 = vpack.c.b16 %v995, %v993
      %v1042 = vpack.c.b16 %v996, %v994
      %v1043 = vpack.c.b16 %v999, %v997
      %v1044 = vpack.c.b16 %v1000, %v998
      %v1045 = vpack.c.b16 %v1003, %v1001
      %v1046 = vpack.c.b16 %v1004, %v1002
      %v1047 = vpack.c.b16 %v1007, %v1005
      %v1048 = vpack.c.b16 %v1008, %v1006
      %v1049 = vpack.c.b16 %v1011, %v1009
      %v1050 = vpack.c.b16 %v1012, %v1010
      %v1051 = vpack.c.b16 %v1015, %v1013
      %v1052 = vpack.c.b16 %v1016, %v1014
      %v1053 = vpack.c.b16 %v1019, %v1017
      %v1054 = vpack.c.b16 %v1020, %v1018
      %v1055 = vpack.c.b16 %v1023, %v1021
      %v1056 = vpack.c.b16 %v1024, %v1022
      %1089 = vmatpush.bf16.msra.mxu0 %v1039
      %1090 = vmatpush.bf16.msra.mxu0 %v1037
      %1091 = vmatpush.bf16.msra.mxu0 %v1035
      %1092 = vmatpush.bf16.msra.mxu0 %v1033
      %1093 = vmatpush.bf16.msra.mxu0 %v1031
      %1094 = vmatpush.bf16.msra.mxu0 %v1029
      %1095 = vmatpush.bf16.msra.mxu0 %v1027
      %1096 = vmatpush.bf16.msra.mxu0 %v1025
      %1097 = vmatmul.bf16.gmra.mxu0 %v925
      %v1098 = vpop.f32.mrf.mxu0
      %v1099 = vadd.f32 0.0, %v1098
      %v1100 = vpop.f32.mrf.mxu0
      %1101 = vdwg.mxu0
      %1102 = vmatpush.bf16.msra.mxu0 %v1055
      %1103 = vmatpush.bf16.msra.mxu0 %v1053
      %1104 = vmatpush.bf16.msra.mxu0 %v1051
      %1105 = vmatpush.bf16.msra.mxu0 %v1049
      %1106 = vmatpush.bf16.msra.mxu0 %v1047
      %1107 = vmatpush.bf16.msra.mxu0 %v1045
      %1108 = vmatpush.bf16.msra.mxu0 %v1043
      %1109 = vmatpush.bf16.msra.mxu0 %v1041
      %1110 = vmatmul.bf16.gmra.mxu0 %v926
      %v1111 = vpop.f32.mrf.mxu0
      %v1112 = vadd.f32 %v1099, %v1111
      %v1113 = vpop.f32.mrf.mxu0
      %1114 = vdwg.mxu0
      %1115 = vmatpush.bf16.msra.mxu0 %v1040
      %1116 = vmatpush.bf16.msra.mxu0 %v1038
      %1117 = vmatpush.bf16.msra.mxu0 %v1036
      %1118 = vmatpush.bf16.msra.mxu0 %v1034
      %1119 = vmatpush.bf16.msra.mxu0 %v1032
      %1120 = vmatpush.bf16.msra.mxu0 %v1030
      %1121 = vmatpush.bf16.msra.mxu0 %v1028
      %1122 = vmatpush.bf16.msra.mxu0 %v1026
      %1123 = vmatmul.bf16.gmra.mxu0 %v925
      %v1124 = vpop.f32.mrf.mxu0
      %v1125 = vadd.f32 0.0, %v1124
      %v1126 = vpop.f32.mrf.mxu0
      %1127 = vdwg.mxu0
      %1128 = vmatpush.bf16.msra.mxu0 %v1056
      %1129 = vmatpush.bf16.msra.mxu0 %v1054
      %1130 = vmatpush.bf16.msra.mxu0 %v1052
      %1131 = vmatpush.bf16.msra.mxu0 %v1050
      %1132 = vmatpush.bf16.msra.mxu0 %v1048
      %1133 = vmatpush.bf16.msra.mxu0 %v1046
      %1134 = vmatpush.bf16.msra.mxu0 %v1044
      %1135 = vmatpush.bf16.msra.mxu0 %v1042
      %1136 = vmatmul.bf16.gmra.mxu0 %v926
      %v1137 = vpop.f32.mrf.mxu0
      %v1138 = vadd.f32 %v1125, %v1137
      %v1139 = vpop.f32.mrf.mxu0
      %1140 = vdwg.mxu0
      %v1141 = vadd.f32 %v863, %v1112
      %v1142 = vadd.f32 %v889, %v1138
      %v1143 = vld [vmem:[%s317] sm:$0xf]
      %v1145 = vunpack.c.l.b16 %v1143
      %v1146 = vpack.c.b16 %v1145, %v1145
      %v1148 = vshrl.u32 %v1146, 16
      %v1150 = vrot.slane %v1148, 7
      %v1151 = vshll.u32 %v1146, 16
      %v1153 = vor.u32 %v1150, %v1151
      %vm1155 = vcmask 1040384
      %vm1156 = vsmask.f32 256
      %vm1157 = vmand %vm1155, %vm1156
      %v1158 = vsel %vm1157, 0, %v1153
      %vm1159 = vcmask 1044480
      %vm1160 = vsmask.f32 4352
      %vm1161 = vmand %vm1159, %vm1160
      %v1162 = vsel %vm1161, %v1158, 0
      %v1163 = vld [vmem:[%s4] sm:$0xff]
      %v1164 = vld [vmem:[%s4 + $0x8] sm:$0xff]
      %v1165 = vld [vmem:[%s4 + $0x10] sm:$0xff]
      %v1166 = vld [vmem:[%s4 + $0x18] sm:$0xff]
      %v1167 = vld [vmem:[%s4 + $0x20] sm:$0xff]
      %v1168 = vld [vmem:[%s4 + $0x28] sm:$0xff]
      %v1169 = vld [vmem:[%s4 + $0x30] sm:$0xff]
      %v1170 = vld [vmem:[%s4 + $0x38] sm:$0xff]
      %s1171 = scalar_lea.vmem %s4, 64
      %v1172 = vld [vmem:[%s1171] sm:$0xff]
      %v1173 = vld [vmem:[%s1171 + $0x8] sm:$0xff]
      %v1174 = vld [vmem:[%s1171 + $0x10] sm:$0xff]
      %v1175 = vld [vmem:[%s1171 + $0x18] sm:$0xff]
      %v1176 = vld [vmem:[%s1171 + $0x20] sm:$0xff]
      %v1177 = vld [vmem:[%s1171 + $0x28] sm:$0xff]
      %v1178 = vld [vmem:[%s1171 + $0x30] sm:$0xff]
      %v1179 = vld [vmem:[%s1171 + $0x38] sm:$0xff]
      %v1181 = vshrl.u32 %v1162, 16
      %v1183 = vshll.u32 %v1162, 16
      %v1185 = vrot.slane %v1183, 1
      %v1186 = vor.u32 %v1181, %v1185
      %v1195 = vunpack.c.l.b16 %v1172
      %v1196 = vunpack.c.h.b16 %v1172
      %v1197 = vunpack.c.l.b16 %v1173
      %v1198 = vunpack.c.h.b16 %v1173
      %v1199 = vunpack.c.l.b16 %v1174
      %v1200 = vunpack.c.h.b16 %v1174
      %v1201 = vunpack.c.l.b16 %v1175
      %v1202 = vunpack.c.h.b16 %v1175
      %v1203 = vunpack.c.l.b16 %v1176
      %v1204 = vunpack.c.h.b16 %v1176
      %v1205 = vunpack.c.l.b16 %v1177
      %v1206 = vunpack.c.h.b16 %v1177
      %v1207 = vunpack.c.l.b16 %v1178
      %v1208 = vunpack.c.h.b16 %v1178
      %v1209 = vunpack.c.l.b16 %v1179
      %v1210 = vunpack.c.h.b16 %v1179
      %v1211 = vpack.c.b16 %v1197, %v1195
      %v1212 = vpack.c.b16 %v1198, %v1196
      %v1213 = vpack.c.b16 %v1201, %v1199
      %v1214 = vpack.c.b16 %v1202, %v1200
      %v1215 = vpack.c.b16 %v1205, %v1203
      %v1216 = vpack.c.b16 %v1206, %v1204
      %v1217 = vpack.c.b16 %v1209, %v1207
      %v1218 = vpack.c.b16 %v1210, %v1208
      %vm1227 = vcmask 523264
      %v1229 = vsel %vm1227, %v1186, 0
      %1231 = vmatpush.bf16.msra.mxu0 0
      %1232 = vmatpush.bf16.msra.mxu0 0
      %1233 = vmatpush.bf16.msra.mxu0 0
      %1234 = vmatpush.bf16.msra.mxu0 0
      %1235 = vmatpush.bf16.msra.mxu0 %v1217
      %1236 = vmatpush.bf16.msra.mxu0 %v1215
      %1237 = vmatpush.bf16.msra.mxu0 %v1213
      %1238 = vmatpush.bf16.msra.mxu0 %v1211
      %1239 = vmatmul.bf16.gmra.mxu0 %v1229
      %v1240 = vpop.f32.mrf.mxu0
      %v1241 = vadd.f32 0.0, %v1240
      %v1242 = vpop.f32.mrf.mxu0
      %1243 = vdwg.mxu0
      %1244 = vmatpush.bf16.msra.mxu0 0
      %1245 = vmatpush.bf16.msra.mxu0 0
      %1246 = vmatpush.bf16.msra.mxu0 0
      %1247 = vmatpush.bf16.msra.mxu0 0
      %1248 = vmatpush.bf16.msra.mxu0 %v1218
      %1249 = vmatpush.bf16.msra.mxu0 %v1216
      %1250 = vmatpush.bf16.msra.mxu0 %v1214
      %1251 = vmatpush.bf16.msra.mxu0 %v1212
      %1252 = vmatmul.bf16.gmra.mxu0 %v1229
      %v1253 = vpop.f32.mrf.mxu0
      %v1254 = vadd.f32 0.0, %v1253
      %v1255 = vpop.f32.mrf.mxu0
      %1256 = vdwg.mxu0
      %v1265 = vunpack.c.l.b16 %v1163
      %v1266 = vunpack.c.h.b16 %v1163
      %v1267 = vunpack.c.l.b16 %v1164
      %v1268 = vunpack.c.h.b16 %v1164
      %v1269 = vunpack.c.l.b16 %v1165
      %v1270 = vunpack.c.h.b16 %v1165
      %v1271 = vunpack.c.l.b16 %v1166
      %v1272 = vunpack.c.h.b16 %v1166
      %v1273 = vunpack.c.l.b16 %v1167
      %v1274 = vunpack.c.h.b16 %v1167
      %v1275 = vunpack.c.l.b16 %v1168
      %v1276 = vunpack.c.h.b16 %v1168
      %v1277 = vunpack.c.l.b16 %v1169
      %v1278 = vunpack.c.h.b16 %v1169
      %v1279 = vunpack.c.l.b16 %v1170
      %v1280 = vunpack.c.h.b16 %v1170
      %v1281 = vpack.c.b16 %v1267, %v1265
      %v1282 = vpack.c.b16 %v1268, %v1266
      %v1283 = vpack.c.b16 %v1271, %v1269
      %v1284 = vpack.c.b16 %v1272, %v1270
      %v1285 = vpack.c.b16 %v1275, %v1273
      %v1286 = vpack.c.b16 %v1276, %v1274
      %v1287 = vpack.c.b16 %v1279, %v1277
      %v1288 = vpack.c.b16 %v1280, %v1278
      %v1297 = vsel %vm1227, %v1162, 0
      %1299 = vmatpush.bf16.msra.mxu0 0
      %1300 = vmatpush.bf16.msra.mxu0 0
      %1301 = vmatpush.bf16.msra.mxu0 0
      %1302 = vmatpush.bf16.msra.mxu0 0
      %1303 = vmatpush.bf16.msra.mxu0 %v1287
      %1304 = vmatpush.bf16.msra.mxu0 %v1285
      %1305 = vmatpush.bf16.msra.mxu0 %v1283
      %1306 = vmatpush.bf16.msra.mxu0 %v1281
      %1307 = vmatmul.bf16.gmra.mxu0 %v1297
      %v1308 = vpop.f32.mrf.mxu0
      %v1309 = vadd.f32 %v1241, %v1308
      %v1310 = vpop.f32.mrf.mxu0
      %1311 = vdwg.mxu0
      %1312 = vmatpush.bf16.msra.mxu0 0
      %1313 = vmatpush.bf16.msra.mxu0 0
      %1314 = vmatpush.bf16.msra.mxu0 0
      %1315 = vmatpush.bf16.msra.mxu0 0
      %1316 = vmatpush.bf16.msra.mxu0 %v1288
      %1317 = vmatpush.bf16.msra.mxu0 %v1286
      %1318 = vmatpush.bf16.msra.mxu0 %v1284
      %1319 = vmatpush.bf16.msra.mxu0 %v1282
      %1320 = vmatmul.bf16.gmra.mxu0 %v1297
      %v1321 = vpop.f32.mrf.mxu0
      %v1322 = vadd.f32 %v1254, %v1321
      %v1323 = vpop.f32.mrf.mxu0
      %1324 = vdwg.mxu0
      %s1325 = scalar_lea.vmem %s4, 128
      %v1326 = vld [vmem:[%s1325] sm:$0xff]
      %v1327 = vld [vmem:[%s1325 + $0x8] sm:$0xff]
      %v1328 = vld [vmem:[%s1325 + $0x10] sm:$0xff]
      %v1329 = vld [vmem:[%s1325 + $0x18] sm:$0xff]
      %v1330 = vld [vmem:[%s1325 + $0x20] sm:$0xff]
      %v1331 = vld [vmem:[%s1325 + $0x28] sm:$0xff]
      %v1332 = vld [vmem:[%s1325 + $0x30] sm:$0xff]
      %v1333 = vld [vmem:[%s1325 + $0x38] sm:$0xff]
      %v1335 = vrot.slane %v1162, 1
      %v1344 = vunpack.c.l.b16 %v1326
      %v1345 = vunpack.c.h.b16 %v1326
      %v1346 = vunpack.c.l.b16 %v1327
      %v1347 = vunpack.c.h.b16 %v1327
      %v1348 = vunpack.c.l.b16 %v1328
      %v1349 = vunpack.c.h.b16 %v1328
      %v1350 = vunpack.c.l.b16 %v1329
      %v1351 = vunpack.c.h.b16 %v1329
      %v1352 = vunpack.c.l.b16 %v1330
      %v1353 = vunpack.c.h.b16 %v1330
      %v1354 = vunpack.c.l.b16 %v1331
      %v1355 = vunpack.c.h.b16 %v1331
      %v1356 = vunpack.c.l.b16 %v1332
      %v1357 = vunpack.c.h.b16 %v1332
      %v1358 = vunpack.c.l.b16 %v1333
      %v1359 = vunpack.c.h.b16 %v1333
      %v1360 = vpack.c.b16 %v1346, %v1344
      %v1361 = vpack.c.b16 %v1347, %v1345
      %v1362 = vpack.c.b16 %v1350, %v1348
      %v1363 = vpack.c.b16 %v1351, %v1349
      %v1364 = vpack.c.b16 %v1354, %v1352
      %v1365 = vpack.c.b16 %v1355, %v1353
      %v1366 = vpack.c.b16 %v1358, %v1356
      %v1367 = vpack.c.b16 %v1359, %v1357
      %v1377 = vsel %vm1227, %v1335, 0
      %1379 = vmatpush.bf16.msra.mxu0 0
      %1380 = vmatpush.bf16.msra.mxu0 0
      %1381 = vmatpush.bf16.msra.mxu0 0
      %1382 = vmatpush.bf16.msra.mxu0 0
      %1383 = vmatpush.bf16.msra.mxu0 %v1366
      %1384 = vmatpush.bf16.msra.mxu0 %v1364
      %1385 = vmatpush.bf16.msra.mxu0 %v1362
      %1386 = vmatpush.bf16.msra.mxu0 %v1360
      %1387 = vmatmul.bf16.gmra.mxu0 %v1377
      %v1388 = vpop.f32.mrf.mxu0
      %v1389 = vadd.f32 0.0, %v1388
      %v1390 = vpop.f32.mrf.mxu0
      %1391 = vdwg.mxu0
      %1392 = vmatpush.bf16.msra.mxu0 0
      %1393 = vmatpush.bf16.msra.mxu0 0
      %1394 = vmatpush.bf16.msra.mxu0 0
      %1395 = vmatpush.bf16.msra.mxu0 0
      %1396 = vmatpush.bf16.msra.mxu0 %v1367
      %1397 = vmatpush.bf16.msra.mxu0 %v1365
      %1398 = vmatpush.bf16.msra.mxu0 %v1363
      %1399 = vmatpush.bf16.msra.mxu0 %v1361
      %1400 = vmatmul.bf16.gmra.mxu0 %v1377
      %v1401 = vpop.f32.mrf.mxu0
      %v1402 = vadd.f32 0.0, %v1401
      %v1403 = vpop.f32.mrf.mxu0
      %1404 = vdwg.mxu0
      %v1405 = vadd.f32 %v1309, %v1389
      %v1406 = vadd.f32 %v1322, %v1402
      %v1407 = vadd.f32 %v1141, %v1405
      %v1408 = vadd.f32 %v1142, %v1406
      %v1409 = vld [vmem:[%s5] sm:$0x3]
      %v1411 = vperm.slane %v1409, 0
      %v1412 = vperm.slane %v1409, 1
      %v1415 = vadd.f32 %v1407, %v1411
      %v1416 = vadd.f32 %v1408, %v1412
      %v1417 = vmul.f32 %v1415, 0.5
      %v1418 = vmul.f32 %v1416, 0.5
      %v1419 = vrcp.pop 1.4142135
      %v1420 = vmul.f32 1.4142135, %v1419
      %v1421 = vsub.f32 1.0, %v1420
      %v1422 = vmul.f32 %v1419, %v1421
      %v1423 = vadd.f32 %v1419, %v1422
      %vm1424 = vweird.f32 %v1419
      %v1425 = vsel %vm1424, %v1419, %v1423
      %v1426 = vmul.f32 %v1415, %v1425
      %v1427 = vmul.f32 %v1416, %v1425
      %v1428 = vmul.f32 %v1426, %v1426
      %v1429 = vmin.f32 16.0, %v1428
      %v1430 = vmul.f32 %v1429, 2.1237322e-06
      %v1431 = vadd.f32 %v1430, 0.00028619796
      %v1432 = vmul.f32 %v1429, %v1431
      %v1433 = vadd.f32 %v1432, 0.0036580483
      %v1434 = vmul.f32 %v1429, %v1433
      %v1435 = vadd.f32 %v1434, 0.05243302
      %v1436 = vmul.f32 %v1429, %v1435
      %v1437 = vadd.f32 %v1436, 0.18741608
      %v1438 = vmul.f32 %v1429, %v1437
      %v1439 = vadd.f32 %v1438, 1.1283791
      %v1440 = vmul.f32 %v1426, %v1439
      %v1441 = vmul.f32 %v1429, 3.8918573e-05
      %v1442 = vadd.f32 %v1441, 0.001143296
      %v1443 = vmul.f32 %v1429, %v1442
      %v1444 = vadd.f32 %v1443, 0.014752088
      %v1445 = vmul.f32 %v1429, %v1444
      %v1446 = vadd.f32 %v1445, 0.112945676
      %v1447 = vmul.f32 %v1429, %v1446
      %v1448 = vadd.f32 %v1447, 0.4994258
      %v1449 = vmul.f32 %v1429, %v1448
      %v1450 = vadd.f32 %v1449, 1.0
      %v1451 = vrcp.pop %v1450
      %v1452 = vmul.f32 %v1450, %v1451
      %v1453 = vsub.f32 1.0, %v1452
      %v1454 = vmul.f32 %v1451, %v1453
      %v1455 = vadd.f32 %v1451, %v1454
      %vm1456 = vweird.f32 %v1450
      %vm1457 = vweird.f32 %v1451
      %vm1458 = vmor %vm1456, %vm1457
      %v1459 = vsel %vm1458, %v1451, %v1455
      %v1460 = vand.u32 2147483647, %v1450
      %vm1461 = vcmp.eq.f32.partialorder %v1460, 8.507059e+37
      %v1462 = vand.u32 %v1450, 2147483648
      %v1463 = vor.u32 1.1754944e-38, %v1462
      %v1464 = vsel %vm1461, %v1463, %v1459
      %v1465 = vmul.f32 %v1440, %v1464
      %v1466 = vmin.f32 %v1465, 1.0
      %v1467 = vmax.f32 %v1466, -1.0
      %v1468 = vmul.f32 %v1427, %v1427
      %v1469 = vmin.f32 16.0, %v1468
      %v1470 = vmul.f32 %v1469, 2.1237322e-06
      %v1471 = vadd.f32 %v1470, 0.00028619796
      %v1472 = vmul.f32 %v1469, %v1471
      %v1473 = vadd.f32 %v1472, 0.0036580483
      %v1474 = vmul.f32 %v1469, %v1473
      %v1475 = vadd.f32 %v1474, 0.05243302
      %v1476 = vmul.f32 %v1469, %v1475
      %v1477 = vadd.f32 %v1476, 0.18741608
      %v1478 = vmul.f32 %v1469, %v1477
      %v1479 = vadd.f32 %v1478, 1.1283791
      %v1480 = vmul.f32 %v1427, %v1479
      %v1481 = vmul.f32 %v1469, 3.8918573e-05
      %v1482 = vadd.f32 %v1481, 0.001143296
      %v1483 = vmul.f32 %v1469, %v1482
      %v1484 = vadd.f32 %v1483, 0.014752088
      %v1485 = vmul.f32 %v1469, %v1484
      %v1486 = vadd.f32 %v1485, 0.112945676
      %v1487 = vmul.f32 %v1469, %v1486
      %v1488 = vadd.f32 %v1487, 0.4994258
      %v1489 = vmul.f32 %v1469, %v1488
      %v1490 = vadd.f32 %v1489, 1.0
      %v1491 = vrcp.pop %v1490
      %v1492 = vmul.f32 %v1490, %v1491
      %v1493 = vsub.f32 1.0, %v1492
      %v1494 = vmul.f32 %v1491, %v1493
      %v1495 = vadd.f32 %v1491, %v1494
      %vm1496 = vweird.f32 %v1490
      %vm1497 = vweird.f32 %v1491
      %vm1498 = vmor %vm1496, %vm1497
      %v1499 = vsel %vm1498, %v1491, %v1495
      %v1500 = vand.u32 2147483647, %v1490
      %vm1501 = vcmp.eq.f32.partialorder %v1500, 8.507059e+37
      %v1502 = vand.u32 %v1490, 2147483648
      %v1503 = vor.u32 1.1754944e-38, %v1502
      %v1504 = vsel %vm1501, %v1503, %v1499
      %v1505 = vmul.f32 %v1480, %v1504
      %v1506 = vmin.f32 %v1505, 1.0
      %v1507 = vmax.f32 %v1506, -1.0
      %v1508 = vadd.f32 %v1467, 1.0
      %v1509 = vadd.f32 %v1507, 1.0
      %v1510 = vmul.f32 %v1417, %v1508
      %v1511 = vmul.f32 %v1418, %v1509
      %v1512 = vpack.c.bf16 %v1511, %v1510
      %v1514 = vunpack.c.l.b16 %v1512
      %v1515 = vunpack.c.h.b16 %v1512
      %v1516 = vpack.c.b16 %v1514, %v1514
      %v1517 = vpack.c.b16 %v1515, %v1515
      %v1519 = vshrl.u32 %v1516, 16
      %v1521 = vrot.slane %v1519, 7
      %v1522 = vshll.u32 %v1516, 16
      %v1524 = vor.u32 %v1521, %v1522
      %v1526 = vshrl.u32 %v1517, 16
      %v1528 = vrot.slane %v1526, 7
      %v1529 = vshll.u32 %v1517, 16
      %v1531 = vor.u32 %v1528, %v1529
      %v1534 = vsel %vm1157, 0, %v1524
      %v1535 = vsel %vm1157, 0, %v1531
      %v1536 = vsel %vm1161, %v1534, 0
      %v1537 = vsel %vm1161, %v1535, 0
      %v1538 = vld [vmem:[%s6] sm:$0xff]
      %v1539 = vld [vmem:[%s6 + $0x8] sm:$0xff]
      %v1540 = vld [vmem:[%s6 + $0x10] sm:$0xff]
      %v1541 = vld [vmem:[%s6 + $0x18] sm:$0xff]
      %v1542 = vld [vmem:[%s6 + $0x20] sm:$0xff]
      %v1543 = vld [vmem:[%s6 + $0x28] sm:$0xff]
      %v1544 = vld [vmem:[%s6 + $0x30] sm:$0xff]
      %v1545 = vld [vmem:[%s6 + $0x38] sm:$0xff]
      %v1546 = vld [vmem:[%s6 + $0x40] sm:$0xff]
      %v1547 = vld [vmem:[%s6 + $0x48] sm:$0xff]
      %v1548 = vld [vmem:[%s6 + $0x50] sm:$0xff]
      %v1549 = vld [vmem:[%s6 + $0x58] sm:$0xff]
      %v1550 = vld [vmem:[%s6 + $0x60] sm:$0xff]
      %v1551 = vld [vmem:[%s6 + $0x68] sm:$0xff]
      %v1552 = vld [vmem:[%s6 + $0x70] sm:$0xff]
      %v1553 = vld [vmem:[%s6 + $0x78] sm:$0xff]
      %v1554 = vld [vmem:[%s6 + $0x80] sm:$0xff]
      %v1555 = vld [vmem:[%s6 + $0x88] sm:$0xff]
      %v1556 = vld [vmem:[%s6 + $0x90] sm:$0xff]
      %v1557 = vld [vmem:[%s6 + $0x98] sm:$0xff]
      %v1558 = vld [vmem:[%s6 + $0xa0] sm:$0xff]
      %v1559 = vld [vmem:[%s6 + $0xa8] sm:$0xff]
      %v1560 = vld [vmem:[%s6 + $0xb0] sm:$0xff]
      %v1561 = vld [vmem:[%s6 + $0xb8] sm:$0xff]
      %v1562 = vld [vmem:[%s6 + $0xc0] sm:$0xff]
      %v1563 = vld [vmem:[%s6 + $0xc8] sm:$0xff]
      %v1564 = vld [vmem:[%s6 + $0xd0] sm:$0xff]
      %v1565 = vld [vmem:[%s6 + $0xd8] sm:$0xff]
      %v1566 = vld [vmem:[%s6 + $0xe0] sm:$0xff]
      %v1567 = vld [vmem:[%s6 + $0xe8] sm:$0xff]
      %v1568 = vld [vmem:[%s6 + $0xf0] sm:$0xff]
      %v1569 = vld [vmem:[%s6 + $0xf8] sm:$0xff]
      %s1570 = scalar_lea.vmem %s6, 256
      %v1571 = vld [vmem:[%s1570] sm:$0xff]
      %v1572 = vld [vmem:[%s1570 + $0x8] sm:$0xff]
      %v1573 = vld [vmem:[%s1570 + $0x10] sm:$0xff]
      %v1574 = vld [vmem:[%s1570 + $0x18] sm:$0xff]
      %v1575 = vld [vmem:[%s1570 + $0x20] sm:$0xff]
      %v1576 = vld [vmem:[%s1570 + $0x28] sm:$0xff]
      %v1577 = vld [vmem:[%s1570 + $0x30] sm:$0xff]
      %v1578 = vld [vmem:[%s1570 + $0x38] sm:$0xff]
      %v1579 = vld [vmem:[%s1570 + $0x40] sm:$0xff]
      %v1580 = vld [vmem:[%s1570 + $0x48] sm:$0xff]
      %v1581 = vld [vmem:[%s1570 + $0x50] sm:$0xff]
      %v1582 = vld [vmem:[%s1570 + $0x58] sm:$0xff]
      %v1583 = vld [vmem:[%s1570 + $0x60] sm:$0xff]
      %v1584 = vld [vmem:[%s1570 + $0x68] sm:$0xff]
      %v1585 = vld [vmem:[%s1570 + $0x70] sm:$0xff]
      %v1586 = vld [vmem:[%s1570 + $0x78] sm:$0xff]
      %v1587 = vld [vmem:[%s1570 + $0x80] sm:$0xff]
      %v1588 = vld [vmem:[%s1570 + $0x88] sm:$0xff]
      %v1589 = vld [vmem:[%s1570 + $0x90] sm:$0xff]
      %v1590 = vld [vmem:[%s1570 + $0x98] sm:$0xff]
      %v1591 = vld [vmem:[%s1570 + $0xa0] sm:$0xff]
      %v1592 = vld [vmem:[%s1570 + $0xa8] sm:$0xff]
      %v1593 = vld [vmem:[%s1570 + $0xb0] sm:$0xff]
      %v1594 = vld [vmem:[%s1570 + $0xb8] sm:$0xff]
      %v1595 = vld [vmem:[%s1570 + $0xc0] sm:$0xff]
      %v1596 = vld [vmem:[%s1570 + $0xc8] sm:$0xff]
      %v1597 = vld [vmem:[%s1570 + $0xd0] sm:$0xff]
      %v1598 = vld [vmem:[%s1570 + $0xd8] sm:$0xff]
      %v1599 = vld [vmem:[%s1570 + $0xe0] sm:$0xff]
      %v1600 = vld [vmem:[%s1570 + $0xe8] sm:$0xff]
      %v1601 = vld [vmem:[%s1570 + $0xf0] sm:$0xff]
      %v1602 = vld [vmem:[%s1570 + $0xf8] sm:$0xff]
      %v1604 = vshrl.u32 %v1536, 16
      %v1606 = vshll.u32 %v1536, 16
      %v1608 = vrot.slane %v1606, 1
      %v1609 = vor.u32 %v1604, %v1608
      %v1611 = vshrl.u32 %v1537, 16
      %v1613 = vshll.u32 %v1537, 16
      %v1615 = vrot.slane %v1613, 1
      %v1616 = vor.u32 %v1611, %v1615
      %v1651 = vunpack.c.l.b16 %v1571
      %v1652 = vunpack.c.h.b16 %v1571
      %v1653 = vunpack.c.l.b16 %v1572
      %v1654 = vunpack.c.h.b16 %v1572
      %v1655 = vunpack.c.l.b16 %v1573
      %v1656 = vunpack.c.h.b16 %v1573
      %v1657 = vunpack.c.l.b16 %v1574
      %v1658 = vunpack.c.h.b16 %v1574
      %v1659 = vunpack.c.l.b16 %v1575
      %v1660 = vunpack.c.h.b16 %v1575
      %v1661 = vunpack.c.l.b16 %v1576
      %v1662 = vunpack.c.h.b16 %v1576
      %v1663 = vunpack.c.l.b16 %v1577
      %v1664 = vunpack.c.h.b16 %v1577
      %v1665 = vunpack.c.l.b16 %v1578
      %v1666 = vunpack.c.h.b16 %v1578
      %v1667 = vunpack.c.l.b16 %v1579
      %v1668 = vunpack.c.h.b16 %v1579
      %v1669 = vunpack.c.l.b16 %v1580
      %v1670 = vunpack.c.h.b16 %v1580
      %v1671 = vunpack.c.l.b16 %v1581
      %v1672 = vunpack.c.h.b16 %v1581
      %v1673 = vunpack.c.l.b16 %v1582
      %v1674 = vunpack.c.h.b16 %v1582
      %v1675 = vunpack.c.l.b16 %v1583
      %v1676 = vunpack.c.h.b16 %v1583
      %v1677 = vunpack.c.l.b16 %v1584
      %v1678 = vunpack.c.h.b16 %v1584
      %v1679 = vunpack.c.l.b16 %v1585
      %v1680 = vunpack.c.h.b16 %v1585
      %v1681 = vunpack.c.l.b16 %v1586
      %v1682 = vunpack.c.h.b16 %v1586
      %v1683 = vunpack.c.l.b16 %v1587
      %v1684 = vunpack.c.h.b16 %v1587
      %v1685 = vunpack.c.l.b16 %v1588
      %v1686 = vunpack.c.h.b16 %v1588
      %v1687 = vunpack.c.l.b16 %v1589
      %v1688 = vunpack.c.h.b16 %v1589
      %v1689 = vunpack.c.l.b16 %v1590
      %v1690 = vunpack.c.h.b16 %v1590
      %v1691 = vunpack.c.l.b16 %v1591
      %v1692 = vunpack.c.h.b16 %v1591
      %v1693 = vunpack.c.l.b16 %v1592
      %v1694 = vunpack.c.h.b16 %v1592
      %v1695 = vunpack.c.l.b16 %v1593
      %v1696 = vunpack.c.h.b16 %v1593
      %v1697 = vunpack.c.l.b16 %v1594
      %v1698 = vunpack.c.h.b16 %v1594
      %v1699 = vunpack.c.l.b16 %v1595
      %v1700 = vunpack.c.h.b16 %v1595
      %v1701 = vunpack.c.l.b16 %v1596
      %v1702 = vunpack.c.h.b16 %v1596
      %v1703 = vunpack.c.l.b16 %v1597
      %v1704 = vunpack.c.h.b16 %v1597
      %v1705 = vunpack.c.l.b16 %v1598
      %v1706 = vunpack.c.h.b16 %v1598
      %v1707 = vunpack.c.l.b16 %v1599
      %v1708 = vunpack.c.h.b16 %v1599
      %v1709 = vunpack.c.l.b16 %v1600
      %v1710 = vunpack.c.h.b16 %v1600
      %v1711 = vunpack.c.l.b16 %v1601
      %v1712 = vunpack.c.h.b16 %v1601
      %v1713 = vunpack.c.l.b16 %v1602
      %v1714 = vunpack.c.h.b16 %v1602
      %v1715 = vpack.c.b16 %v1653, %v1651
      %v1716 = vpack.c.b16 %v1654, %v1652
      %v1717 = vpack.c.b16 %v1657, %v1655
      %v1718 = vpack.c.b16 %v1658, %v1656
      %v1719 = vpack.c.b16 %v1661, %v1659
      %v1720 = vpack.c.b16 %v1662, %v1660
      %v1721 = vpack.c.b16 %v1665, %v1663
      %v1722 = vpack.c.b16 %v1666, %v1664
      %v1723 = vpack.c.b16 %v1669, %v1667
      %v1724 = vpack.c.b16 %v1670, %v1668
      %v1725 = vpack.c.b16 %v1673, %v1671
      %v1726 = vpack.c.b16 %v1674, %v1672
      %v1727 = vpack.c.b16 %v1677, %v1675
      %v1728 = vpack.c.b16 %v1678, %v1676
      %v1729 = vpack.c.b16 %v1681, %v1679
      %v1730 = vpack.c.b16 %v1682, %v1680
      %v1731 = vpack.c.b16 %v1685, %v1683
      %v1732 = vpack.c.b16 %v1686, %v1684
      %v1733 = vpack.c.b16 %v1689, %v1687
      %v1734 = vpack.c.b16 %v1690, %v1688
      %v1735 = vpack.c.b16 %v1693, %v1691
      %v1736 = vpack.c.b16 %v1694, %v1692
      %v1737 = vpack.c.b16 %v1697, %v1695
      %v1738 = vpack.c.b16 %v1698, %v1696
      %v1739 = vpack.c.b16 %v1701, %v1699
      %v1740 = vpack.c.b16 %v1702, %v1700
      %v1741 = vpack.c.b16 %v1705, %v1703
      %v1742 = vpack.c.b16 %v1706, %v1704
      %v1743 = vpack.c.b16 %v1709, %v1707
      %v1744 = vpack.c.b16 %v1710, %v1708
      %v1745 = vpack.c.b16 %v1713, %v1711
      %v1746 = vpack.c.b16 %v1714, %v1712
      %1779 = vmatpush.bf16.msra.mxu0 %v1729
      %1780 = vmatpush.bf16.msra.mxu0 %v1727
      %1781 = vmatpush.bf16.msra.mxu0 %v1725
      %1782 = vmatpush.bf16.msra.mxu0 %v1723
      %1783 = vmatpush.bf16.msra.mxu0 %v1721
      %1784 = vmatpush.bf16.msra.mxu0 %v1719
      %1785 = vmatpush.bf16.msra.mxu0 %v1717
      %1786 = vmatpush.bf16.msra.mxu0 %v1715
      %1787 = vmatmul.bf16.gmra.mxu0 %v1609
      %v1788 = vpop.f32.mrf.mxu0
      %v1789 = vadd.f32 0.0, %v1788
      %v1790 = vpop.f32.mrf.mxu0
      %1791 = vdwg.mxu0
      %1792 = vmatpush.bf16.msra.mxu0 %v1745
      %1793 = vmatpush.bf16.msra.mxu0 %v1743
      %1794 = vmatpush.bf16.msra.mxu0 %v1741
      %1795 = vmatpush.bf16.msra.mxu0 %v1739
      %1796 = vmatpush.bf16.msra.mxu0 %v1737
      %1797 = vmatpush.bf16.msra.mxu0 %v1735
      %1798 = vmatpush.bf16.msra.mxu0 %v1733
      %1799 = vmatpush.bf16.msra.mxu0 %v1731
      %1800 = vmatmul.bf16.gmra.mxu0 %v1616
      %v1801 = vpop.f32.mrf.mxu0
      %v1802 = vadd.f32 %v1789, %v1801
      %v1803 = vpop.f32.mrf.mxu0
      %1804 = vdwg.mxu0
      %1805 = vmatpush.bf16.msra.mxu0 %v1730
      %1806 = vmatpush.bf16.msra.mxu0 %v1728
      %1807 = vmatpush.bf16.msra.mxu0 %v1726
      %1808 = vmatpush.bf16.msra.mxu0 %v1724
      %1809 = vmatpush.bf16.msra.mxu0 %v1722
      %1810 = vmatpush.bf16.msra.mxu0 %v1720
      %1811 = vmatpush.bf16.msra.mxu0 %v1718
      %1812 = vmatpush.bf16.msra.mxu0 %v1716
      %1813 = vmatmul.bf16.gmra.mxu0 %v1609
      %v1814 = vpop.f32.mrf.mxu0
      %v1815 = vadd.f32 0.0, %v1814
      %v1816 = vpop.f32.mrf.mxu0
      %1817 = vdwg.mxu0
      %1818 = vmatpush.bf16.msra.mxu0 %v1746
      %1819 = vmatpush.bf16.msra.mxu0 %v1744
      %1820 = vmatpush.bf16.msra.mxu0 %v1742
      %1821 = vmatpush.bf16.msra.mxu0 %v1740
      %1822 = vmatpush.bf16.msra.mxu0 %v1738
      %1823 = vmatpush.bf16.msra.mxu0 %v1736
      %1824 = vmatpush.bf16.msra.mxu0 %v1734
      %1825 = vmatpush.bf16.msra.mxu0 %v1732
      %1826 = vmatmul.bf16.gmra.mxu0 %v1616
      %v1827 = vpop.f32.mrf.mxu0
      %v1828 = vadd.f32 %v1815, %v1827
      %v1829 = vpop.f32.mrf.mxu0
      %1830 = vdwg.mxu0
      %v1863 = vunpack.c.l.b16 %v1538
      %v1864 = vunpack.c.h.b16 %v1538
      %v1865 = vunpack.c.l.b16 %v1539
      %v1866 = vunpack.c.h.b16 %v1539
      %v1867 = vunpack.c.l.b16 %v1540
      %v1868 = vunpack.c.h.b16 %v1540
      %v1869 = vunpack.c.l.b16 %v1541
      %v1870 = vunpack.c.h.b16 %v1541
      %v1871 = vunpack.c.l.b16 %v1542
      %v1872 = vunpack.c.h.b16 %v1542
      %v1873 = vunpack.c.l.b16 %v1543
      %v1874 = vunpack.c.h.b16 %v1543
      %v1875 = vunpack.c.l.b16 %v1544
      %v1876 = vunpack.c.h.b16 %v1544
      %v1877 = vunpack.c.l.b16 %v1545
      %v1878 = vunpack.c.h.b16 %v1545
      %v1879 = vunpack.c.l.b16 %v1546
      %v1880 = vunpack.c.h.b16 %v1546
      %v1881 = vunpack.c.l.b16 %v1547
      %v1882 = vunpack.c.h.b16 %v1547
      %v1883 = vunpack.c.l.b16 %v1548
      %v1884 = vunpack.c.h.b16 %v1548
      %v1885 = vunpack.c.l.b16 %v1549
      %v1886 = vunpack.c.h.b16 %v1549
      %v1887 = vunpack.c.l.b16 %v1550
      %v1888 = vunpack.c.h.b16 %v1550
      %v1889 = vunpack.c.l.b16 %v1551
      %v1890 = vunpack.c.h.b16 %v1551
      %v1891 = vunpack.c.l.b16 %v1552
      %v1892 = vunpack.c.h.b16 %v1552
      %v1893 = vunpack.c.l.b16 %v1553
      %v1894 = vunpack.c.h.b16 %v1553
      %v1895 = vunpack.c.l.b16 %v1554
      %v1896 = vunpack.c.h.b16 %v1554
      %v1897 = vunpack.c.l.b16 %v1555
      %v1898 = vunpack.c.h.b16 %v1555
      %v1899 = vunpack.c.l.b16 %v1556
      %v1900 = vunpack.c.h.b16 %v1556
      %v1901 = vunpack.c.l.b16 %v1557
      %v1902 = vunpack.c.h.b16 %v1557
      %v1903 = vunpack.c.l.b16 %v1558
      %v1904 = vunpack.c.h.b16 %v1558
      %v1905 = vunpack.c.l.b16 %v1559
      %v1906 = vunpack.c.h.b16 %v1559
      %v1907 = vunpack.c.l.b16 %v1560
      %v1908 = vunpack.c.h.b16 %v1560
      %v1909 = vunpack.c.l.b16 %v1561
      %v1910 = vunpack.c.h.b16 %v1561
      %v1911 = vunpack.c.l.b16 %v1562
      %v1912 = vunpack.c.h.b16 %v1562
      %v1913 = vunpack.c.l.b16 %v1563
      %v1914 = vunpack.c.h.b16 %v1563
      %v1915 = vunpack.c.l.b16 %v1564
      %v1916 = vunpack.c.h.b16 %v1564
      %v1917 = vunpack.c.l.b16 %v1565
      %v1918 = vunpack.c.h.b16 %v1565
      %v1919 = vunpack.c.l.b16 %v1566
      %v1920 = vunpack.c.h.b16 %v1566
      %v1921 = vunpack.c.l.b16 %v1567
      %v1922 = vunpack.c.h.b16 %v1567
      %v1923 = vunpack.c.l.b16 %v1568
      %v1924 = vunpack.c.h.b16 %v1568
      %v1925 = vunpack.c.l.b16 %v1569
      %v1926 = vunpack.c.h.b16 %v1569
      %v1927 = vpack.c.b16 %v1865, %v1863
      %v1928 = vpack.c.b16 %v1866, %v1864
      %v1929 = vpack.c.b16 %v1869, %v1867
      %v1930 = vpack.c.b16 %v1870, %v1868
      %v1931 = vpack.c.b16 %v1873, %v1871
      %v1932 = vpack.c.b16 %v1874, %v1872
      %v1933 = vpack.c.b16 %v1877, %v1875
      %v1934 = vpack.c.b16 %v1878, %v1876
      %v1935 = vpack.c.b16 %v1881, %v1879
      %v1936 = vpack.c.b16 %v1882, %v1880
      %v1937 = vpack.c.b16 %v1885, %v1883
      %v1938 = vpack.c.b16 %v1886, %v1884
      %v1939 = vpack.c.b16 %v1889, %v1887
      %v1940 = vpack.c.b16 %v1890, %v1888
      %v1941 = vpack.c.b16 %v1893, %v1891
      %v1942 = vpack.c.b16 %v1894, %v1892
      %v1943 = vpack.c.b16 %v1897, %v1895
      %v1944 = vpack.c.b16 %v1898, %v1896
      %v1945 = vpack.c.b16 %v1901, %v1899
      %v1946 = vpack.c.b16 %v1902, %v1900
      %v1947 = vpack.c.b16 %v1905, %v1903
      %v1948 = vpack.c.b16 %v1906, %v1904
      %v1949 = vpack.c.b16 %v1909, %v1907
      %v1950 = vpack.c.b16 %v1910, %v1908
      %v1951 = vpack.c.b16 %v1913, %v1911
      %v1952 = vpack.c.b16 %v1914, %v1912
      %v1953 = vpack.c.b16 %v1917, %v1915
      %v1954 = vpack.c.b16 %v1918, %v1916
      %v1955 = vpack.c.b16 %v1921, %v1919
      %v1956 = vpack.c.b16 %v1922, %v1920
      %v1957 = vpack.c.b16 %v1925, %v1923
      %v1958 = vpack.c.b16 %v1926, %v1924
      %1991 = vmatpush.bf16.msra.mxu0 %v1941
      %1992 = vmatpush.bf16.msra.mxu0 %v1939
      %1993 = vmatpush.bf16.msra.mxu0 %v1937
      %1994 = vmatpush.bf16.msra.mxu0 %v1935
      %1995 = vmatpush.bf16.msra.mxu0 %v1933
      %1996 = vmatpush.bf16.msra.mxu0 %v1931
      %1997 = vmatpush.bf16.msra.mxu0 %v1929
      %1998 = vmatpush.bf16.msra.mxu0 %v1927
      %1999 = vmatmul.bf16.gmra.mxu0 %v1536
      %v2000 = vpop.f32.mrf.mxu0
      %v2001 = vadd.f32 %v1802, %v2000
      %v2002 = vpop.f32.mrf.mxu0
      %2003 = vdwg.mxu0
      %2004 = vmatpush.bf16.msra.mxu0 %v1957
      %2005 = vmatpush.bf16.msra.mxu0 %v1955
      %2006 = vmatpush.bf16.msra.mxu0 %v1953
      %2007 = vmatpush.bf16.msra.mxu0 %v1951
      %2008 = vmatpush.bf16.msra.mxu0 %v1949
      %2009 = vmatpush.bf16.msra.mxu0 %v1947
      %2010 = vmatpush.bf16.msra.mxu0 %v1945
      %2011 = vmatpush.bf16.msra.mxu0 %v1943
      %2012 = vmatmul.bf16.gmra.mxu0 %v1537
      %v2013 = vpop.f32.mrf.mxu0
      %v2014 = vadd.f32 %v2001, %v2013
      %v2015 = vpop.f32.mrf.mxu0
      %2016 = vdwg.mxu0
      %2017 = vmatpush.bf16.msra.mxu0 %v1942
      %2018 = vmatpush.bf16.msra.mxu0 %v1940
      %2019 = vmatpush.bf16.msra.mxu0 %v1938
      %2020 = vmatpush.bf16.msra.mxu0 %v1936
      %2021 = vmatpush.bf16.msra.mxu0 %v1934
      %2022 = vmatpush.bf16.msra.mxu0 %v1932
      %2023 = vmatpush.bf16.msra.mxu0 %v1930
      %2024 = vmatpush.bf16.msra.mxu0 %v1928
      %2025 = vmatmul.bf16.gmra.mxu0 %v1536
      %v2026 = vpop.f32.mrf.mxu0
      %v2027 = vadd.f32 %v1828, %v2026
      %v2028 = vpop.f32.mrf.mxu0
      %2029 = vdwg.mxu0
      %2030 = vmatpush.bf16.msra.mxu0 %v1958
      %2031 = vmatpush.bf16.msra.mxu0 %v1956
      %2032 = vmatpush.bf16.msra.mxu0 %v1954
      %2033 = vmatpush.bf16.msra.mxu0 %v1952
      %2034 = vmatpush.bf16.msra.mxu0 %v1950
      %2035 = vmatpush.bf16.msra.mxu0 %v1948
      %2036 = vmatpush.bf16.msra.mxu0 %v1946
      %2037 = vmatpush.bf16.msra.mxu0 %v1944
      %2038 = vmatmul.bf16.gmra.mxu0 %v1537
      %v2039 = vpop.f32.mrf.mxu0
      %v2040 = vadd.f32 %v2027, %v2039
      %v2041 = vpop.f32.mrf.mxu0
      %2042 = vdwg.mxu0
      %s2043 = scalar_lea.vmem %s6, 512
      %v2044 = vld [vmem:[%s2043] sm:$0xff]
      %v2045 = vld [vmem:[%s2043 + $0x8] sm:$0xff]
      %v2046 = vld [vmem:[%s2043 + $0x10] sm:$0xff]
      %v2047 = vld [vmem:[%s2043 + $0x18] sm:$0xff]
      %v2048 = vld [vmem:[%s2043 + $0x20] sm:$0xff]
      %v2049 = vld [vmem:[%s2043 + $0x28] sm:$0xff]
      %v2050 = vld [vmem:[%s2043 + $0x30] sm:$0xff]
      %v2051 = vld [vmem:[%s2043 + $0x38] sm:$0xff]
      %v2052 = vld [vmem:[%s2043 + $0x40] sm:$0xff]
      %v2053 = vld [vmem:[%s2043 + $0x48] sm:$0xff]
      %v2054 = vld [vmem:[%s2043 + $0x50] sm:$0xff]
      %v2055 = vld [vmem:[%s2043 + $0x58] sm:$0xff]
      %v2056 = vld [vmem:[%s2043 + $0x60] sm:$0xff]
      %v2057 = vld [vmem:[%s2043 + $0x68] sm:$0xff]
      %v2058 = vld [vmem:[%s2043 + $0x70] sm:$0xff]
      %v2059 = vld [vmem:[%s2043 + $0x78] sm:$0xff]
      %v2060 = vld [vmem:[%s2043 + $0x80] sm:$0xff]
      %v2061 = vld [vmem:[%s2043 + $0x88] sm:$0xff]
      %v2062 = vld [vmem:[%s2043 + $0x90] sm:$0xff]
      %v2063 = vld [vmem:[%s2043 + $0x98] sm:$0xff]
      %v2064 = vld [vmem:[%s2043 + $0xa0] sm:$0xff]
      %v2065 = vld [vmem:[%s2043 + $0xa8] sm:$0xff]
      %v2066 = vld [vmem:[%s2043 + $0xb0] sm:$0xff]
      %v2067 = vld [vmem:[%s2043 + $0xb8] sm:$0xff]
      %v2068 = vld [vmem:[%s2043 + $0xc0] sm:$0xff]
      %v2069 = vld [vmem:[%s2043 + $0xc8] sm:$0xff]
      %v2070 = vld [vmem:[%s2043 + $0xd0] sm:$0xff]
      %v2071 = vld [vmem:[%s2043 + $0xd8] sm:$0xff]
      %v2072 = vld [vmem:[%s2043 + $0xe0] sm:$0xff]
      %v2073 = vld [vmem:[%s2043 + $0xe8] sm:$0xff]
      %v2074 = vld [vmem:[%s2043 + $0xf0] sm:$0xff]
      %v2075 = vld [vmem:[%s2043 + $0xf8] sm:$0xff]
      %v2078 = vrot.slane %v1536, 1
      %v2079 = vrot.slane %v1537, 1
      %v2114 = vunpack.c.l.b16 %v2044
      %v2115 = vunpack.c.h.b16 %v2044
      %v2116 = vunpack.c.l.b16 %v2045
      %v2117 = vunpack.c.h.b16 %v2045
      %v2118 = vunpack.c.l.b16 %v2046
      %v2119 = vunpack.c.h.b16 %v2046
      %v2120 = vunpack.c.l.b16 %v2047
      %v2121 = vunpack.c.h.b16 %v2047
      %v2122 = vunpack.c.l.b16 %v2048
      %v2123 = vunpack.c.h.b16 %v2048
      %v2124 = vunpack.c.l.b16 %v2049
      %v2125 = vunpack.c.h.b16 %v2049
      %v2126 = vunpack.c.l.b16 %v2050
      %v2127 = vunpack.c.h.b16 %v2050
      %v2128 = vunpack.c.l.b16 %v2051
      %v2129 = vunpack.c.h.b16 %v2051
      %v2130 = vunpack.c.l.b16 %v2052
      %v2131 = vunpack.c.h.b16 %v2052
      %v2132 = vunpack.c.l.b16 %v2053
      %v2133 = vunpack.c.h.b16 %v2053
      %v2134 = vunpack.c.l.b16 %v2054
      %v2135 = vunpack.c.h.b16 %v2054
      %v2136 = vunpack.c.l.b16 %v2055
      %v2137 = vunpack.c.h.b16 %v2055
      %v2138 = vunpack.c.l.b16 %v2056
      %v2139 = vunpack.c.h.b16 %v2056
      %v2140 = vunpack.c.l.b16 %v2057
      %v2141 = vunpack.c.h.b16 %v2057
      %v2142 = vunpack.c.l.b16 %v2058
      %v2143 = vunpack.c.h.b16 %v2058
      %v2144 = vunpack.c.l.b16 %v2059
      %v2145 = vunpack.c.h.b16 %v2059
      %v2146 = vunpack.c.l.b16 %v2060
      %v2147 = vunpack.c.h.b16 %v2060
      %v2148 = vunpack.c.l.b16 %v2061
      %v2149 = vunpack.c.h.b16 %v2061
      %v2150 = vunpack.c.l.b16 %v2062
      %v2151 = vunpack.c.h.b16 %v2062
      %v2152 = vunpack.c.l.b16 %v2063
      %v2153 = vunpack.c.h.b16 %v2063
      %v2154 = vunpack.c.l.b16 %v2064
      %v2155 = vunpack.c.h.b16 %v2064
      %v2156 = vunpack.c.l.b16 %v2065
      %v2157 = vunpack.c.h.b16 %v2065
      %v2158 = vunpack.c.l.b16 %v2066
      %v2159 = vunpack.c.h.b16 %v2066
      %v2160 = vunpack.c.l.b16 %v2067
      %v2161 = vunpack.c.h.b16 %v2067
      %v2162 = vunpack.c.l.b16 %v2068
      %v2163 = vunpack.c.h.b16 %v2068
      %v2164 = vunpack.c.l.b16 %v2069
      %v2165 = vunpack.c.h.b16 %v2069
      %v2166 = vunpack.c.l.b16 %v2070
      %v2167 = vunpack.c.h.b16 %v2070
      %v2168 = vunpack.c.l.b16 %v2071
      %v2169 = vunpack.c.h.b16 %v2071
      %v2170 = vunpack.c.l.b16 %v2072
      %v2171 = vunpack.c.h.b16 %v2072
      %v2172 = vunpack.c.l.b16 %v2073
      %v2173 = vunpack.c.h.b16 %v2073
      %v2174 = vunpack.c.l.b16 %v2074
      %v2175 = vunpack.c.h.b16 %v2074
      %v2176 = vunpack.c.l.b16 %v2075
      %v2177 = vunpack.c.h.b16 %v2075
      %v2178 = vpack.c.b16 %v2116, %v2114
      %v2179 = vpack.c.b16 %v2117, %v2115
      %v2180 = vpack.c.b16 %v2120, %v2118
      %v2181 = vpack.c.b16 %v2121, %v2119
      %v2182 = vpack.c.b16 %v2124, %v2122
      %v2183 = vpack.c.b16 %v2125, %v2123
      %v2184 = vpack.c.b16 %v2128, %v2126
      %v2185 = vpack.c.b16 %v2129, %v2127
      %v2186 = vpack.c.b16 %v2132, %v2130
      %v2187 = vpack.c.b16 %v2133, %v2131
      %v2188 = vpack.c.b16 %v2136, %v2134
      %v2189 = vpack.c.b16 %v2137, %v2135
      %v2190 = vpack.c.b16 %v2140, %v2138
      %v2191 = vpack.c.b16 %v2141, %v2139
      %v2192 = vpack.c.b16 %v2144, %v2142
      %v2193 = vpack.c.b16 %v2145, %v2143
      %v2194 = vpack.c.b16 %v2148, %v2146
      %v2195 = vpack.c.b16 %v2149, %v2147
      %v2196 = vpack.c.b16 %v2152, %v2150
      %v2197 = vpack.c.b16 %v2153, %v2151
      %v2198 = vpack.c.b16 %v2156, %v2154
      %v2199 = vpack.c.b16 %v2157, %v2155
      %v2200 = vpack.c.b16 %v2160, %v2158
      %v2201 = vpack.c.b16 %v2161, %v2159
      %v2202 = vpack.c.b16 %v2164, %v2162
      %v2203 = vpack.c.b16 %v2165, %v2163
      %v2204 = vpack.c.b16 %v2168, %v2166
      %v2205 = vpack.c.b16 %v2169, %v2167
      %v2206 = vpack.c.b16 %v2172, %v2170
      %v2207 = vpack.c.b16 %v2173, %v2171
      %v2208 = vpack.c.b16 %v2176, %v2174
      %v2209 = vpack.c.b16 %v2177, %v2175
      %2242 = vmatpush.bf16.msra.mxu0 %v2192
      %2243 = vmatpush.bf16.msra.mxu0 %v2190
      %2244 = vmatpush.bf16.msra.mxu0 %v2188
      %2245 = vmatpush.bf16.msra.mxu0 %v2186
      %2246 = vmatpush.bf16.msra.mxu0 %v2184
      %2247 = vmatpush.bf16.msra.mxu0 %v2182
      %2248 = vmatpush.bf16.msra.mxu0 %v2180
      %2249 = vmatpush.bf16.msra.mxu0 %v2178
      %2250 = vmatmul.bf16.gmra.mxu0 %v2078
      %v2251 = vpop.f32.mrf.mxu0
      %v2252 = vadd.f32 0.0, %v2251
      %v2253 = vpop.f32.mrf.mxu0
      %2254 = vdwg.mxu0
      %2255 = vmatpush.bf16.msra.mxu0 %v2208
      %2256 = vmatpush.bf16.msra.mxu0 %v2206
      %2257 = vmatpush.bf16.msra.mxu0 %v2204
      %2258 = vmatpush.bf16.msra.mxu0 %v2202
      %2259 = vmatpush.bf16.msra.mxu0 %v2200
      %2260 = vmatpush.bf16.msra.mxu0 %v2198
      %2261 = vmatpush.bf16.msra.mxu0 %v2196
      %2262 = vmatpush.bf16.msra.mxu0 %v2194
      %2263 = vmatmul.bf16.gmra.mxu0 %v2079
      %v2264 = vpop.f32.mrf.mxu0
      %v2265 = vadd.f32 %v2252, %v2264
      %v2266 = vpop.f32.mrf.mxu0
      %2267 = vdwg.mxu0
      %2268 = vmatpush.bf16.msra.mxu0 %v2193
      %2269 = vmatpush.bf16.msra.mxu0 %v2191
      %2270 = vmatpush.bf16.msra.mxu0 %v2189
      %2271 = vmatpush.bf16.msra.mxu0 %v2187
      %2272 = vmatpush.bf16.msra.mxu0 %v2185
      %2273 = vmatpush.bf16.msra.mxu0 %v2183
      %2274 = vmatpush.bf16.msra.mxu0 %v2181
      %2275 = vmatpush.bf16.msra.mxu0 %v2179
      %2276 = vmatmul.bf16.gmra.mxu0 %v2078
      %v2277 = vpop.f32.mrf.mxu0
      %v2278 = vadd.f32 0.0, %v2277
      %v2279 = vpop.f32.mrf.mxu0
      %2280 = vdwg.mxu0
      %2281 = vmatpush.bf16.msra.mxu0 %v2209
      %2282 = vmatpush.bf16.msra.mxu0 %v2207
      %2283 = vmatpush.bf16.msra.mxu0 %v2205
      %2284 = vmatpush.bf16.msra.mxu0 %v2203
      %2285 = vmatpush.bf16.msra.mxu0 %v2201
      %2286 = vmatpush.bf16.msra.mxu0 %v2199
      %2287 = vmatpush.bf16.msra.mxu0 %v2197
      %2288 = vmatpush.bf16.msra.mxu0 %v2195
      %2289 = vmatmul.bf16.gmra.mxu0 %v2079
      %v2290 = vpop.f32.mrf.mxu0
      %v2291 = vadd.f32 %v2278, %v2290
      %v2292 = vpop.f32.mrf.mxu0
      %2293 = vdwg.mxu0
      %v2294 = vadd.f32 %v2014, %v2265
      %v2295 = vadd.f32 %v2040, %v2291
      %v2296 = vld [vmem:[%s7] sm:$0x3]
      %v2298 = vperm.slane %v2296, 0
      %v2299 = vperm.slane %v2296, 1
      %v2302 = vadd.f32 %v2294, %v2298
      %v2303 = vadd.f32 %v2295, %v2299
      %v2304 = vmul.f32 %v2302, 0.5
      %v2305 = vmul.f32 %v2303, 0.5
      %v2306 = vmul.f32 %v2302, %v1425
      %v2307 = vmul.f32 %v2303, %v1425
      %v2308 = vmul.f32 %v2306, %v2306
      %v2309 = vmin.f32 16.0, %v2308
      %v2310 = vmul.f32 %v2309, 2.1237322e-06
      %v2311 = vadd.f32 %v2310, 0.00028619796
      %v2312 = vmul.f32 %v2309, %v2311
      %v2313 = vadd.f32 %v2312, 0.0036580483
      %v2314 = vmul.f32 %v2309, %v2313
      %v2315 = vadd.f32 %v2314, 0.05243302
      %v2316 = vmul.f32 %v2309, %v2315
      %v2317 = vadd.f32 %v2316, 0.18741608
      %v2318 = vmul.f32 %v2309, %v2317
      %v2319 = vadd.f32 %v2318, 1.1283791
      %v2320 = vmul.f32 %v2306, %v2319
      %v2321 = vmul.f32 %v2309, 3.8918573e-05
      %v2322 = vadd.f32 %v2321, 0.001143296
      %v2323 = vmul.f32 %v2309, %v2322
      %v2324 = vadd.f32 %v2323, 0.014752088
      %v2325 = vmul.f32 %v2309, %v2324
      %v2326 = vadd.f32 %v2325, 0.112945676
      %v2327 = vmul.f32 %v2309, %v2326
      %v2328 = vadd.f32 %v2327, 0.4994258
      %v2329 = vmul.f32 %v2309, %v2328
      %v2330 = vadd.f32 %v2329, 1.0
      %v2331 = vrcp.pop %v2330
      %v2332 = vmul.f32 %v2330, %v2331
      %v2333 = vsub.f32 1.0, %v2332
      %v2334 = vmul.f32 %v2331, %v2333
      %v2335 = vadd.f32 %v2331, %v2334
      %vm2336 = vweird.f32 %v2330
      %vm2337 = vweird.f32 %v2331
      %vm2338 = vmor %vm2336, %vm2337
      %v2339 = vsel %vm2338, %v2331, %v2335
      %v2340 = vand.u32 2147483647, %v2330
      %vm2341 = vcmp.eq.f32.partialorder %v2340, 8.507059e+37
      %v2342 = vand.u32 %v2330, 2147483648
      %v2343 = vor.u32 1.1754944e-38, %v2342
      %v2344 = vsel %vm2341, %v2343, %v2339
      %v2345 = vmul.f32 %v2320, %v2344
      %v2346 = vmin.f32 %v2345, 1.0
      %v2347 = vmax.f32 %v2346, -1.0
      %v2348 = vmul.f32 %v2307, %v2307
      %v2349 = vmin.f32 16.0, %v2348
      %v2350 = vmul.f32 %v2349, 2.1237322e-06
      %v2351 = vadd.f32 %v2350, 0.00028619796
      %v2352 = vmul.f32 %v2349, %v2351
      %v2353 = vadd.f32 %v2352, 0.0036580483
      %v2354 = vmul.f32 %v2349, %v2353
      %v2355 = vadd.f32 %v2354, 0.05243302
      %v2356 = vmul.f32 %v2349, %v2355
      %v2357 = vadd.f32 %v2356, 0.18741608
      %v2358 = vmul.f32 %v2349, %v2357
      %v2359 = vadd.f32 %v2358, 1.1283791
      %v2360 = vmul.f32 %v2307, %v2359
      %v2361 = vmul.f32 %v2349, 3.8918573e-05
      %v2362 = vadd.f32 %v2361, 0.001143296
      %v2363 = vmul.f32 %v2349, %v2362
      %v2364 = vadd.f32 %v2363, 0.014752088
      %v2365 = vmul.f32 %v2349, %v2364
      %v2366 = vadd.f32 %v2365, 0.112945676
      %v2367 = vmul.f32 %v2349, %v2366
      %v2368 = vadd.f32 %v2367, 0.4994258
      %v2369 = vmul.f32 %v2349, %v2368
      %v2370 = vadd.f32 %v2369, 1.0
      %v2371 = vrcp.pop %v2370
      %v2372 = vmul.f32 %v2370, %v2371
      %v2373 = vsub.f32 1.0, %v2372
      %v2374 = vmul.f32 %v2371, %v2373
      %v2375 = vadd.f32 %v2371, %v2374
      %vm2376 = vweird.f32 %v2370
      %vm2377 = vweird.f32 %v2371
      %vm2378 = vmor %vm2376, %vm2377
      %v2379 = vsel %vm2378, %v2371, %v2375
      %v2380 = vand.u32 2147483647, %v2370
      %vm2381 = vcmp.eq.f32.partialorder %v2380, 8.507059e+37
      %v2382 = vand.u32 %v2370, 2147483648
      %v2383 = vor.u32 1.1754944e-38, %v2382
      %v2384 = vsel %vm2381, %v2383, %v2379
      %v2385 = vmul.f32 %v2360, %v2384
      %v2386 = vmin.f32 %v2385, 1.0
      %v2387 = vmax.f32 %v2386, -1.0
      %v2388 = vadd.f32 %v2347, 1.0
      %v2389 = vadd.f32 %v2387, 1.0
      %v2390 = vmul.f32 %v2304, %v2388
      %v2391 = vmul.f32 %v2305, %v2389
      %v2392 = vpack.c.bf16 %v2391, %v2390
      %2393 = vst [vmem:[%s322] sm:$0xff] %v2392
      %p2394 = scmp.lt.s32.totalorder %s19, 1
      %s2395 = scalar_select %p2394, %s19, 1
      %s2396 = smul.addr %s2395, 2
      %s2397 = smul.addr %s2396, 4
      %s2398 = scalar_lea.vmem %s8, %s2397
      // Predicated region
      $region53: #{decoder_cup_forward.4} parent=51 // pred_check
        %p2399 = pneg %p215
      $region54: #{decoder_cup_forward.4} parent=51 // pred_check_branch
        %2401 = sbr.rel (%p2399) target = $region56
      $region55: #{decoder_cup_forward.4} parent=51 // pred_region
        _
      $region56: #{decoder_cup_forward.4} parent=51 // pred_fallthru
        _
    $region52: #{decoder_cup_forward.4} parent=5 // pred_fallthru
      _
    %p2402 = scmp.le.s32.totalorder 2, %s14
    // Predicated region
    $region57: #{decoder_cup_forward.4} parent=5 // pred_check
      %p2403 = pneg %p2402
    $region58: #{decoder_cup_forward.4} parent=5 // pred_check_branch
      %2405 = sbr.rel (%p2403) target = $region60
    $region59: #{decoder_cup_forward.4} parent=5 // pred_region
      %s2406 = ssub.s32 %s14, 2
      // Predicated region
      $region61: #{decoder_cup_forward.4} parent=59 // pred_check
        %p2407 = pneg %p221
      $region62: #{decoder_cup_forward.4} parent=59 // pred_check_branch
        %2409 = sbr.rel (%p2407) target = $region64
      $region63: #{decoder_cup_forward.4} parent=59 // pred_region
        %p2410 = scmp.lt.s32.totalorder %s20, 1
        %s2411 = scalar_select %p2410, %s20, 1
        %s2412 = smul.addr %s2411, 2
        %s2413 = smul.addr %s2412, 4
        %s2414 = scalar_lea.vmem %s8, %s2413
      $region64: #{decoder_cup_forward.4} parent=59 // pred_fallthru
        _
    $region60: #{decoder_cup_forward.4} parent=5 // pred_fallthru
      _
  $region6: #{decoder_cup_forward.4} parent=0 // loop_footer
    %s18 = sadd.s32 1, %s14
  $region7: #{decoder_cup_forward.4} parent=0 // loop_footer_branch
    %13 = sbr.rel target = $region3
  $region8: #{decoder_cup_forward.4} parent=0 // loop_exit
    _

// kernel: tile.43
$region0: #{tile.43}
  #allocation0 [shape = 's32[1]{0}', space=sflag, size = 0x4, scoped, tag = 'scoped memory for tile.43']
  %s0 = inlined_call_operand.vmem [shape: f32[16], index: 0, kind: input, shape index: {}]
  %s1 = inlined_call_operand.vmem [shape: f32[16,16], index: 1, kind: output, shape index: {}]
  // Predicated region
  $region2: #{tile.43} parent=0 // pred_check
    _
  $region3: #{tile.43} parent=0 // pred_check_branch
    %3 = sbr.rel (0) target = $region5
  $region4: #{tile.43} parent=0 // pred_region
    _
  $region5: #{tile.43} parent=0 // pred_fallthru
    _
  %v4 = vld [vmem:[%s0] ss:$0 sm:$0xff]
  %5 = vst [vmem:[%s1] sm:$0xff] %v4
  %s6 = scalar_lea.vmem %s1, 8
  %7 = vst [vmem:[%s6] sm:$0xff] %v4

// kernel: tile.44
$region0: #{tile.44}
  %s0 = inlined_call_operand.vmem [shape: f32[16,16], index: 0, kind: input, shape index: {}]
  %s1 = inlined_call_operand.vmem [shape: f32[1,256], index: 1, kind: output, shape index: {}]
  $region1: #{tile.44} parent=0
    #allocation0 [shape = 'u8[8192]{0}', space=vmem, size = 0x2000, scoped, tag = 'scoped mem for output reshape']
    %s2 = smov 3
    %v3 = vld [vmem:[%s0] ss:$8 sm:%s2]
    %vm4 = vcmask 130048
    %5 = vst.msk [vmem:[#allocation0] ss:$8 sm:$0x3] %vm4, %v3
    %s6 = scalar_lea.vmem %s0, 7
    %s7 = smov 3
    %v8 = vld [vmem:[%s6] ss:$8 sm:%s7]
    %9 = vrot.lane.b32.xlu0 %v8, 112
    %v10 = vpop.permute.xlu0 %9
    %vm11 = vcmask 1048448
    %12 = vst.msk [vmem:[#allocation0] ss:$8 sm:$0x3] %vm11, %v10
    %s13 = scalar_lea.vmem %s0, 6
    %s14 = smov 3
    %v15 = vld [vmem:[%s13] ss:$8 sm:%s14]
    %16 = vrot.lane.b32.xlu0 %v15, 96
    %v17 = vpop.permute.xlu0 %16
    %vm18 = vcmask 917248
    %19 = vst.msk [vmem:[#allocation0] ss:$8 sm:$0x3] %vm18, %v17
    %s20 = scalar_lea.vmem %s0, 5
    %s21 = smov 3
    %v22 = vld [vmem:[%s20] ss:$8 sm:%s21]
    %23 = vrot.lane.b32.xlu0 %v22, 80
    %v24 = vpop.permute.xlu0 %23
    %vm25 = vcmask 786048
    %26 = vst.msk [vmem:[#allocation0] ss:$8 sm:$0x3] %vm25, %v24
    %s27 = scalar_lea.vmem %s0, 4
    %s28 = smov 3
    %v29 = vld [vmem:[%s27] ss:$8 sm:%s28]
    %30 = vrot.lane.b32.xlu0 %v29, 64
    %v31 = vpop.permute.xlu0 %30
    %vm32 = vcmask 654848
    %33 = vst.msk [vmem:[#allocation0] ss:$8 sm:$0x3] %vm32, %v31
    %s34 = scalar_lea.vmem %s0, 3
    %s35 = smov 3
    %v36 = vld [vmem:[%s34] ss:$8 sm:%s35]
    %37 = vrot.lane.b32.xlu0 %v36, 48
    %v38 = vpop.permute.xlu0 %37
    %vm39 = vcmask 523648
    %40 = vst.msk [vmem:[#allocation0] ss:$8 sm:$0x3] %vm39, %v38
    %s41 = scalar_lea.vmem %s0, 2
    %s42 = smov 3
    %v43 = vld [vmem:[%s41] ss:$8 sm:%s42]
    %44 = vrot.lane.b32.xlu0 %v43, 32
    %v45 = vpop.permute.xlu0 %44
    %vm46 = vcmask 392448
    %47 = vst.msk [vmem:[#allocation0] ss:$8 sm:$0x3] %vm46, %v45
    %s48 = scalar_lea.vmem %s0, 1
    %s49 = smov 3
    %v50 = vld [vmem:[%s48] ss:$8 sm:%s49]
    %51 = vrot.lane.b32.xlu0 %v50, 16
    %v52 = vpop.permute.xlu0 %51
    %vm53 = vcmask 261248
    %54 = vst.msk [vmem:[#allocation0] ss:$8 sm:$0x3] %vm53, %v52
    %s56 = ssub.s32 2, 1
    %v57 = vld [vmem:[#allocation0] sm:%s56]
    %s59 = ssub.s32 2, 1
    %60 = vst [vmem:[%s1] sm:%s59] %v57
    %s61 = scalar_lea.vmem [#allocation0], 8
    %v62 = vld [vmem:[%s61] sm:%s56]
    %s64 = ssub.s32 2, 1
    %s65 = scalar_lea.vmem %s1, 1
    %66 = vst [vmem:[%s65] sm:%s64] %v62

// kernel: decoder_cup_forward.5
$region0: #{decoder_cup_forward.5}
  #allocation0 [shape = 'u32[]', space=smem, size = 0x4, offset = 0x4, fixed_abs, tag = 'smem constant byte address 0x4 - core index']
  #allocation1 [shape = 'u32[72,128]{1,0:T(1,128)}', space=vmem, size = 0x9000, scoped, tag = 'internal scratch']
  %s0 = inlined_call_operand.vmem [shape: bf16[2,8,256], index: 0, kind: input, shape index: {}]
  %s1 = inlined_call_operand.vmem [shape: bf16[18,8], index: 1, kind: input, shape index: {}]
  %s2 = inlined_call_operand.vmem [shape: bf16[3,256,256], index: 2, kind: input, shape index: {}]
  %s3 = inlined_call_operand.vmem [shape: f32[1,256], index: 3, kind: input, shape index: {}]
  %s4 = inlined_call_operand.vmem [shape: bf16[3,256,256], index: 4, kind: input, shape index: {}]
  %s5 = inlined_call_operand.vmem [shape: f32[1,256], index: 5, kind: input, shape index: {}]
  %s6 = inlined_call_operand.vmem [shape: bf16[2,16,256], index: 6, kind: output, shape index: {}]
  %s7 = sld [smem:[#allocation0]]
  $region57: #{decoder_cup_forward.5} parent=0
    _
  %s9 = ssub.s32 1, %s7
  %s10 = scalar_select 0, %s9, %s7
  loop: start=0, step=1, limit=4
  $region2: #{decoder_cup_forward.5} parent=0 // loop_pre_header
    _
  $region3: #{decoder_cup_forward.5} parent=0 // loop_header
    %s12 = sphi 0, %s16
    %p13 = scmp.ge.s32.totalorder %s12, 4
    %s22 = sphi 0, %s24
    %s25 = sphi 0, %s22
    %s26 = sphi 0, %s25
    %s42 = sphi 0, %s26
    %s46 = sphi 0, %s46
    %s48 = sphi 0, %s46
    %s49 = sphi 0, %s48
    %s63 = sphi 0, %s49
    %s67 = sphi 0, %s67
    %s69 = sphi 0, %s67
    %s70 = sphi 0, %s69
    %s84 = sphi 0, %s70
    %s88 = sphi 0, %s88
    %s90 = sphi 0, %s88
    %s91 = sphi 0, %s90
    %s105 = sphi 0, %s91
    %s109 = sphi 0, %s109
    %s111 = sphi 0, %s109
    %s112 = sphi 0, %s111
    %s126 = sphi 0, %s112
    %s130 = sphi 0, %s130
    %s132 = sphi 0, %s130
    %s133 = sphi 0, %s132
    %s147 = sphi 0, %s133
    %s153 = sphi 0, %s155
    %s156 = sphi 0, %s153
    %s157 = sphi 0, %s156
    %s173 = sphi 0, %s157
  $region4: #{decoder_cup_forward.5} parent=0 // loop_header_branch
    %15 = sbr.rel (%p13) target = $region8
  $region5: #{decoder_cup_forward.5} parent=0 // loop_body
    %s17 = ssub.s32 %s12, 1
    %s18 = ssub.s32 %s12, 2
    %s19 = sadd.s32 %s12, 1
    %s20 = ssub.s32 %s12, %s19
    %p21 = scmp.eq.s32.totalorder %s20, 0
    %s23 = sadd.s32 %s22, 1
    %s24 = scalar_select %p21, %s22, %s23
    %p27 = pneg %p21
    %p28 = scmp.eq.s32.totalorder %s12, 1
    %p29 = por %p27, %p28
    %p30 = scmp.ne.s32.totalorder %s22, %s25
    %p31 = scmp.eq.s32.totalorder %s12, 0
    %p32 = por %p30, %p31
    %p33 = scmp.ne.s32.totalorder %s22, %s25
    %p34 = scmp.eq.s32.totalorder %s17, 1
    %p35 = por %p33, %p34
    %p36 = scmp.ne.s32.totalorder %s25, %s26
    %p37 = scmp.eq.s32.totalorder %s17, 0
    %p38 = por %p36, %p37
    %p39 = scmp.ne.s32.totalorder %s25, %s26
    %p40 = scmp.eq.s32.totalorder %s18, 1
    %p41 = por %p39, %p40
    %p43 = scmp.ne.s32.totalorder %s26, %s42
    %p44 = scmp.eq.s32.totalorder %s18, 0
    %p45 = por %p43, %p44
    %s47 = sadd.s32 %s46, 1
    %p50 = scmp.eq.s32.totalorder %s12, 1
    %p51 = scmp.ne.s32.totalorder %s46, %s48
    %p52 = scmp.eq.s32.totalorder %s12, 0
    %p53 = por %p51, %p52
    %p54 = scmp.ne.s32.totalorder %s46, %s48
    %p55 = scmp.eq.s32.totalorder %s17, 1
    %p56 = por %p54, %p55
    %p57 = scmp.ne.s32.totalorder %s48, %s49
    %p58 = scmp.eq.s32.totalorder %s17, 0
    %p59 = por %p57, %p58
    %p60 = scmp.ne.s32.totalorder %s48, %s49
    %p61 = scmp.eq.s32.totalorder %s18, 1
    %p62 = por %p60, %p61
    %p64 = scmp.ne.s32.totalorder %s49, %s63
    %p65 = scmp.eq.s32.totalorder %s18, 0
    %p66 = por %p64, %p65
    %s68 = sadd.s32 %s67, 1
    %p71 = scmp.eq.s32.totalorder %s12, 1
    %p72 = scmp.ne.s32.totalorder %s67, %s69
    %p73 = scmp.eq.s32.totalorder %s12, 0
    %p74 = por %p72, %p73
    %p75 = scmp.ne.s32.totalorder %s67, %s69
    %p76 = scmp.eq.s32.totalorder %s17, 1
    %p77 = por %p75, %p76
    %p78 = scmp.ne.s32.totalorder %s69, %s70
    %p79 = scmp.eq.s32.totalorder %s17, 0
    %p80 = por %p78, %p79
    %p81 = scmp.ne.s32.totalorder %s69, %s70
    %p82 = scmp.eq.s32.totalorder %s18, 1
    %p83 = por %p81, %p82
    %p85 = scmp.ne.s32.totalorder %s70, %s84
    %p86 = scmp.eq.s32.totalorder %s18, 0
    %p87 = por %p85, %p86
    %s89 = sadd.s32 %s88, 1
    %p92 = scmp.eq.s32.totalorder %s12, 1
    %p93 = scmp.ne.s32.totalorder %s88, %s90
    %p94 = scmp.eq.s32.totalorder %s12, 0
    %p95 = por %p93, %p94
    %p96 = scmp.ne.s32.totalorder %s88, %s90
    %p97 = scmp.eq.s32.totalorder %s17, 1
    %p98 = por %p96, %p97
    %p99 = scmp.ne.s32.totalorder %s90, %s91
    %p100 = scmp.eq.s32.totalorder %s17, 0
    %p101 = por %p99, %p100
    %p102 = scmp.ne.s32.totalorder %s90, %s91
    %p103 = scmp.eq.s32.totalorder %s18, 1
    %p104 = por %p102, %p103
    %p106 = scmp.ne.s32.totalorder %s91, %s105
    %p107 = scmp.eq.s32.totalorder %s18, 0
    %p108 = por %p106, %p107
    %s110 = sadd.s32 %s109, 1
    %p113 = scmp.eq.s32.totalorder %s12, 1
    %p114 = scmp.ne.s32.totalorder %s109, %s111
    %p115 = scmp.eq.s32.totalorder %s12, 0
    %p116 = por %p114, %p115
    %p117 = scmp.ne.s32.totalorder %s109, %s111
    %p118 = scmp.eq.s32.totalorder %s17, 1
    %p119 = por %p117, %p118
    %p120 = scmp.ne.s32.totalorder %s111, %s112
    %p121 = scmp.eq.s32.totalorder %s17, 0
    %p122 = por %p120, %p121
    %p123 = scmp.ne.s32.totalorder %s111, %s112
    %p124 = scmp.eq.s32.totalorder %s18, 1
    %p125 = por %p123, %p124
    %p127 = scmp.ne.s32.totalorder %s112, %s126
    %p128 = scmp.eq.s32.totalorder %s18, 0
    %p129 = por %p127, %p128
    %s131 = sadd.s32 %s130, 1
    %p134 = scmp.eq.s32.totalorder %s12, 1
    %p135 = scmp.ne.s32.totalorder %s130, %s132
    %p136 = scmp.eq.s32.totalorder %s12, 0
    %p137 = por %p135, %p136
    %p138 = scmp.ne.s32.totalorder %s130, %s132
    %p139 = scmp.eq.s32.totalorder %s17, 1
    %p140 = por %p138, %p139
    %p141 = scmp.ne.s32.totalorder %s132, %s133
    %p142 = scmp.eq.s32.totalorder %s17, 0
    %p143 = por %p141, %p142
    %p144 = scmp.ne.s32.totalorder %s132, %s133
    %p145 = scmp.eq.s32.totalorder %s18, 1
    %p146 = por %p144, %p145
    %p148 = scmp.ne.s32.totalorder %s133, %s147
    %p149 = scmp.eq.s32.totalorder %s18, 0
    %p150 = por %p148, %p149
    %s151 = ssub.s32 %s12, %s19
    %p152 = scmp.eq.s32.totalorder %s151, 0
    %s154 = sadd.s32 %s153, 1
    %s155 = scalar_select %p152, %s153, %s154
    %p158 = pneg %p152
    %p159 = scmp.eq.s32.totalorder %s12, 1
    %p160 = por %p158, %p159
    %p161 = scmp.ne.s32.totalorder %s153, %s156
    %p162 = scmp.eq.s32.totalorder %s12, 0
    %p163 = por %p161, %p162
    %p164 = scmp.ne.s32.totalorder %s153, %s156
    %p165 = scmp.eq.s32.totalorder %s17, 1
    %p166 = por %p164, %p165
    %p167 = scmp.ne.s32.totalorder %s156, %s157
    %p168 = scmp.eq.s32.totalorder %s17, 0
    %p169 = por %p167, %p168
    %p170 = scmp.ne.s32.totalorder %s156, %s157
    %p171 = scmp.eq.s32.totalorder %s18, 1
    %p172 = por %p170, %p171
    %p174 = scmp.ne.s32.totalorder %s157, %s173
    %p175 = scmp.eq.s32.totalorder %s18, 0
    %p176 = por %p174, %p175
    %p177 = scmp.le.s32.totalorder 1, %s12
    %p178 = scmp.lt.s32.totalorder %s12, 3
    %p179 = pnand %p177, %p178
    %p180 = pneg %p179
    // Predicated region
    $region9: #{decoder_cup_forward.5} parent=5 // pred_check
      _
    $region10: #{decoder_cup_forward.5} parent=5 // pred_check_branch
      %182 = sbr.rel (%p179) target = $region12
    $region11: #{decoder_cup_forward.5} parent=5 // pred_region
      %s183 = ssub.s32 %s12, 1
      // Predicated region
      $region13: #{decoder_cup_forward.5} parent=11 // pred_check
        %p184 = pneg %p59
      $region14: #{decoder_cup_forward.5} parent=11 // pred_check_branch
        %186 = sbr.rel (%p184) target = $region16
      $region15: #{decoder_cup_forward.5} parent=11 // pred_region
        _
      $region16: #{decoder_cup_forward.5} parent=11 // pred_fallthru
        _
      // Predicated region
      $region17: #{decoder_cup_forward.5} parent=11 // pred_check
        %p187 = pneg %p80
      $region18: #{decoder_cup_forward.5} parent=11 // pred_check_branch
        %189 = sbr.rel (%p187) target = $region20
      $region19: #{decoder_cup_forward.5} parent=11 // pred_region
        _
      $region20: #{decoder_cup_forward.5} parent=11 // pred_fallthru
        _
      // Predicated region
      $region21: #{decoder_cup_forward.5} parent=11 // pred_check
        %p190 = pneg %p101
      $region22: #{decoder_cup_forward.5} parent=11 // pred_check_branch
        %192 = sbr.rel (%p190) target = $region24
      $region23: #{decoder_cup_forward.5} parent=11 // pred_region
        _
      $region24: #{decoder_cup_forward.5} parent=11 // pred_fallthru
        _
      // Predicated region
      $region25: #{decoder_cup_forward.5} parent=11 // pred_check
        %p193 = pneg %p122
      $region26: #{decoder_cup_forward.5} parent=11 // pred_check_branch
        %195 = sbr.rel (%p193) target = $region28
      $region27: #{decoder_cup_forward.5} parent=11 // pred_region
        _
      $region28: #{decoder_cup_forward.5} parent=11 // pred_fallthru
        _
      // Predicated region
      $region29: #{decoder_cup_forward.5} parent=11 // pred_check
        %p196 = pneg %p143
      $region30: #{decoder_cup_forward.5} parent=11 // pred_check_branch
        %198 = sbr.rel (%p196) target = $region32
      $region31: #{decoder_cup_forward.5} parent=11 // pred_region
        _
      $region32: #{decoder_cup_forward.5} parent=11 // pred_fallthru
        _
    $region12: #{decoder_cup_forward.5} parent=5 // pred_fallthru
      _
    %p199 = scmp.lt.s32.totalorder %s12, 2
    // Predicated region
    $region33: #{decoder_cup_forward.5} parent=5 // pred_check
      %p200 = pneg %p199
    $region34: #{decoder_cup_forward.5} parent=5 // pred_check_branch
      %202 = sbr.rel (%p200) target = $region36
    $region35: #{decoder_cup_forward.5} parent=5 // pred_region
      // Predicated region
      $region37: #{decoder_cup_forward.5} parent=35 // pred_check
        %p203 = pneg %p32
      $region38: #{decoder_cup_forward.5} parent=35 // pred_check_branch
        %205 = sbr.rel (%p203) target = $region40
      $region39: #{decoder_cup_forward.5} parent=35 // pred_region
        %p206 = scmp.lt.s32.totalorder %s12, 1
        %s207 = scalar_select %p206, %s12, 1
        %s208 = smul.addr %s207, 2
        %s209 = smul.addr %s208, 4
        %s210 = scalar_lea.vmem %s0, %s209
      $region40: #{decoder_cup_forward.5} parent=35 // pred_fallthru
        _
    $region36: #{decoder_cup_forward.5} parent=5 // pred_fallthru
      _
    %p211 = scmp.le.s32.totalorder 1, %s12
    %p212 = scmp.lt.s32.totalorder %s12, 3
    %p213 = pnand %p211, %p212
    %p214 = pneg %p213
    // Predicated region
    $region41: #{decoder_cup_forward.5} parent=5 // pred_check
      _
    $region42: #{decoder_cup_forward.5} parent=5 // pred_check_branch
      %216 = sbr.rel (%p213) target = $region44
    $region43: #{decoder_cup_forward.5} parent=5 // pred_region
      %s217 = ssub.s32 %s12, 1
      %p218 = scmp.lt.s32.totalorder %s17, 1
      %s219 = scalar_select %p218, %s17, 1
      %s220 = smul.addr %s219, 2
      %s221 = smul.addr %s220, 4
      %s222 = scalar_lea.vmem %s0, %s221
      %p223 = pneg %p38
      %p224 = pneg %p35
      %p225 = pneg %p59
      %p226 = pneg %p56
      %p227 = pneg %p80
      %p228 = pneg %p77
      %p229 = pneg %p101
      %p230 = pneg %p98
      %p231 = pneg %p122
      %p232 = pneg %p119
      %p233 = pneg %p143
      %p234 = pneg %p140
      %p235 = pneg %p169
      %p236 = pneg %p166
      %p237 = scmp.lt.s32.totalorder %s17, 1
      %s238 = scalar_select %p237, %s17, 1
      %s239 = smul.addr %s238, 4
      %s240 = smul.addr %s239, 4
      %s241 = scalar_lea.vmem %s6, %s240
      %p242 = scmp.lt.s32.totalorder %s17, 1
      %s243 = scalar_select %p242, %s17, 1
      %s244 = smul.addr %s243, 2
      %s245 = smul.addr %s244, 4
      %s246 = scalar_lea.vmem %s0, %s245
      %p247 = scmp.lt.s32.totalorder %s17, 1
      %s248 = scalar_select %p247, %s17, 1
      %s249 = smul.addr %s248, 4
      %s250 = smul.addr %s249, 4
      %s251 = scalar_lea.vmem %s6, %s250
      %v253 = vld [vmem:[%s1] sm:$0xf]
      %v254 = vld [vmem:[%s1 + $0x4] sm:$0xf]
      %v255 = vld [vmem:[%s1 + $0x8] sm:$0x1]
      %v256 = vld [vmem:[%s246] sm:$0xff]
      %v260 = vunpack.c.l.b16 %v253
      %v261 = vunpack.c.l.b16 %v254
      %v262 = vunpack.c.l.b16 %v255
      %v263 = vpack.c.b16 %v261, %v260
      %v264 = vpack.c.b16 %v262, %v262
      %v266 = vunpack.c.l.b16 %v256
      %v267 = vunpack.c.h.b16 %v256
      %v268 = vpack.c.b16 %v266, %v266
      %v269 = vpack.c.b16 %v267, %v267
      %vm270 = vcmask 64512
      %v272 = vsel %vm270, %v263, 0
      %v275 = vsel %vm270, %v264, 0
      %vm277 = vcmask 1043456
      %v279 = vsel %vm277, %v268, 0
      %v282 = vsel %vm277, %v269, 0
      %284 = vmatpush.bf16.msra.mxu0 0
      %285 = vmatpush.bf16.msra.mxu0 0
      %286 = vmatpush.bf16.msra.mxu0 0
      %287 = vmatpush.bf16.msra.mxu0 0
      %288 = vmatpush.bf16.msra.mxu0 0
      %289 = vmatpush.bf16.msra.mxu0 0
      %290 = vmatpush.bf16.msra.mxu0 0
      %291 = vmatpush.bf16.msra.mxu0 %v279
      %292 = vmatmul.bf16.gmra.mxu0 %v272
      %v293 = vpop.f32.mrf.mxu0
      %v294 = vadd.f32 0.0, %v293
      %v295 = vpop.f32.mrf.mxu0
      %v296 = vadd.f32 0.0, %v295
      %297 = vmatmul.bf16.gmra.mxu0 %v275
      %v298 = vpop.f32.mrf.mxu0
      %v299 = vadd.f32 0.0, %v298
      %v300 = vpop.f32.mrf.mxu0
      %301 = vdwg.mxu0
      %302 = vmatpush.bf16.msra.mxu0 0
      %303 = vmatpush.bf16.msra.mxu0 0
      %304 = vmatpush.bf16.msra.mxu0 0
      %305 = vmatpush.bf16.msra.mxu0 0
      %306 = vmatpush.bf16.msra.mxu0 0
      %307 = vmatpush.bf16.msra.mxu0 0
      %308 = vmatpush.bf16.msra.mxu0 0
      %309 = vmatpush.bf16.msra.mxu0 %v282
      %310 = vmatmul.bf16.gmra.mxu0 %v272
      %v311 = vpop.f32.mrf.mxu0
      %v312 = vadd.f32 0.0, %v311
      %v313 = vpop.f32.mrf.mxu0
      %v314 = vadd.f32 0.0, %v313
      %315 = vmatmul.bf16.gmra.mxu0 %v275
      %v316 = vpop.f32.mrf.mxu0
      %v317 = vadd.f32 0.0, %v316
      %v318 = vpop.f32.mrf.mxu0
      %319 = vdwg.mxu0
      %v320 = vpack.c.bf16 %v312, %v294
      %v321 = vpack.c.bf16 %v314, %v296
      %v322 = vpack.c.bf16 %v317, %v299
      %v323 = vld [vmem:[%s2] sm:$0xff]
      %v324 = vld [vmem:[%s2 + $0x8] sm:$0xff]
      %v325 = vld [vmem:[%s2 + $0x10] sm:$0xff]
      %v326 = vld [vmem:[%s2 + $0x18] sm:$0xff]
      %v327 = vld [vmem:[%s2 + $0x20] sm:$0xff]
      %v328 = vld [vmem:[%s2 + $0x28] sm:$0xff]
      %v329 = vld [vmem:[%s2 + $0x30] sm:$0xff]
      %v330 = vld [vmem:[%s2 + $0x38] sm:$0xff]
      %v331 = vld [vmem:[%s2 + $0x40] sm:$0xff]
      %v332 = vld [vmem:[%s2 + $0x48] sm:$0xff]
      %v333 = vld [vmem:[%s2 + $0x50] sm:$0xff]
      %v334 = vld [vmem:[%s2 + $0x58] sm:$0xff]
      %v335 = vld [vmem:[%s2 + $0x60] sm:$0xff]
      %v336 = vld [vmem:[%s2 + $0x68] sm:$0xff]
      %v337 = vld [vmem:[%s2 + $0x70] sm:$0xff]
      %v338 = vld [vmem:[%s2 + $0x78] sm:$0xff]
      %v339 = vld [vmem:[%s2 + $0x80] sm:$0xff]
      %v340 = vld [vmem:[%s2 + $0x88] sm:$0xff]
      %v341 = vld [vmem:[%s2 + $0x90] sm:$0xff]
      %v342 = vld [vmem:[%s2 + $0x98] sm:$0xff]
      %v343 = vld [vmem:[%s2 + $0xa0] sm:$0xff]
      %v344 = vld [vmem:[%s2 + $0xa8] sm:$0xff]
      %v345 = vld [vmem:[%s2 + $0xb0] sm:$0xff]
      %v346 = vld [vmem:[%s2 + $0xb8] sm:$0xff]
      %v347 = vld [vmem:[%s2 + $0xc0] sm:$0xff]
      %v348 = vld [vmem:[%s2 + $0xc8] sm:$0xff]
      %v349 = vld [vmem:[%s2 + $0xd0] sm:$0xff]
      %v350 = vld [vmem:[%s2 + $0xd8] sm:$0xff]
      %v351 = vld [vmem:[%s2 + $0xe0] sm:$0xff]
      %v352 = vld [vmem:[%s2 + $0xe8] sm:$0xff]
      %v353 = vld [vmem:[%s2 + $0xf0] sm:$0xff]
      %v354 = vld [vmem:[%s2 + $0xf8] sm:$0xff]
      %s355 = scalar_lea.vmem %s2, 256
      %v356 = vld [vmem:[%s355] sm:$0xff]
      %v357 = vld [vmem:[%s355 + $0x8] sm:$0xff]
      %v358 = vld [vmem:[%s355 + $0x10] sm:$0xff]
      %v359 = vld [vmem:[%s355 + $0x18] sm:$0xff]
      %v360 = vld [vmem:[%s355 + $0x20] sm:$0xff]
      %v361 = vld [vmem:[%s355 + $0x28] sm:$0xff]
      %v362 = vld [vmem:[%s355 + $0x30] sm:$0xff]
      %v363 = vld [vmem:[%s355 + $0x38] sm:$0xff]
      %v364 = vld [vmem:[%s355 + $0x40] sm:$0xff]
      %v365 = vld [vmem:[%s355 + $0x48] sm:$0xff]
      %v366 = vld [vmem:[%s355 + $0x50] sm:$0xff]
      %v367 = vld [vmem:[%s355 + $0x58] sm:$0xff]
      %v368 = vld [vmem:[%s355 + $0x60] sm:$0xff]
      %v369 = vld [vmem:[%s355 + $0x68] sm:$0xff]
      %v370 = vld [vmem:[%s355 + $0x70] sm:$0xff]
      %v371 = vld [vmem:[%s355 + $0x78] sm:$0xff]
      %v372 = vld [vmem:[%s355 + $0x80] sm:$0xff]
      %v373 = vld [vmem:[%s355 + $0x88] sm:$0xff]
      %v374 = vld [vmem:[%s355 + $0x90] sm:$0xff]
      %v375 = vld [vmem:[%s355 + $0x98] sm:$0xff]
      %v376 = vld [vmem:[%s355 + $0xa0] sm:$0xff]
      %v377 = vld [vmem:[%s355 + $0xa8] sm:$0xff]
      %v378 = vld [vmem:[%s355 + $0xb0] sm:$0xff]
      %v379 = vld [vmem:[%s355 + $0xb8] sm:$0xff]
      %v380 = vld [vmem:[%s355 + $0xc0] sm:$0xff]
      %v381 = vld [vmem:[%s355 + $0xc8] sm:$0xff]
      %v382 = vld [vmem:[%s355 + $0xd0] sm:$0xff]
      %v383 = vld [vmem:[%s355 + $0xd8] sm:$0xff]
      %v384 = vld [vmem:[%s355 + $0xe0] sm:$0xff]
      %v385 = vld [vmem:[%s355 + $0xe8] sm:$0xff]
      %v386 = vld [vmem:[%s355 + $0xf0] sm:$0xff]
      %v387 = vld [vmem:[%s355 + $0xf8] sm:$0xff]
      %v391 = vunpack.c.l.b16 %v320
      %v392 = vunpack.c.h.b16 %v320
      %v393 = vunpack.c.l.b16 %v321
      %v394 = vunpack.c.h.b16 %v321
      %v395 = vunpack.c.l.b16 %v322
      %v396 = vunpack.c.h.b16 %v322
      %v397 = vpack.c.b16 %v393, %v391
      %v398 = vpack.c.b16 %v394, %v392
      %v399 = vpack.c.b16 %v395, %v395
      %v400 = vpack.c.b16 %v396, %v396
      %vm401 = vsmask.f32 7424
      %v403 = vshrl.u32 %v397, 16
      %v405 = vshll.u32 %v397, 16
      %v407 = vrot.slane %v405, 1
      %v408 = vor.u32 %v403, %v407
      %v410 = vshll.u32 %v399, 16
      %v412 = vrot.slane %v410, 1
      %v413 = vsel %vm401, %v408, %v412
      %v415 = vshrl.u32 %v398, 16
      %v417 = vshll.u32 %v398, 16
      %v419 = vrot.slane %v417, 1
      %v420 = vor.u32 %v415, %v419
      %v422 = vshll.u32 %v400, 16
      %v424 = vrot.slane %v422, 1
      %v425 = vsel %vm401, %v420, %v424
      %v460 = vunpack.c.l.b16 %v356
      %v461 = vunpack.c.h.b16 %v356
      %v462 = vunpack.c.l.b16 %v357
      %v463 = vunpack.c.h.b16 %v357
      %v464 = vunpack.c.l.b16 %v358
      %v465 = vunpack.c.h.b16 %v358
      %v466 = vunpack.c.l.b16 %v359
      %v467 = vunpack.c.h.b16 %v359
      %v468 = vunpack.c.l.b16 %v360
      %v469 = vunpack.c.h.b16 %v360
      %v470 = vunpack.c.l.b16 %v361
      %v471 = vunpack.c.h.b16 %v361
      %v472 = vunpack.c.l.b16 %v362
      %v473 = vunpack.c.h.b16 %v362
      %v474 = vunpack.c.l.b16 %v363
      %v475 = vunpack.c.h.b16 %v363
      %v476 = vunpack.c.l.b16 %v364
      %v477 = vunpack.c.h.b16 %v364
      %v478 = vunpack.c.l.b16 %v365
      %v479 = vunpack.c.h.b16 %v365
      %v480 = vunpack.c.l.b16 %v366
      %v481 = vunpack.c.h.b16 %v366
      %v482 = vunpack.c.l.b16 %v367
      %v483 = vunpack.c.h.b16 %v367
      %v484 = vunpack.c.l.b16 %v368
      %v485 = vunpack.c.h.b16 %v368
      %v486 = vunpack.c.l.b16 %v369
      %v487 = vunpack.c.h.b16 %v369
      %v488 = vunpack.c.l.b16 %v370
      %v489 = vunpack.c.h.b16 %v370
      %v490 = vunpack.c.l.b16 %v371
      %v491 = vunpack.c.h.b16 %v371
      %v492 = vunpack.c.l.b16 %v372
      %v493 = vunpack.c.h.b16 %v372
      %v494 = vunpack.c.l.b16 %v373
      %v495 = vunpack.c.h.b16 %v373
      %v496 = vunpack.c.l.b16 %v374
      %v497 = vunpack.c.h.b16 %v374
      %v498 = vunpack.c.l.b16 %v375
      %v499 = vunpack.c.h.b16 %v375
      %v500 = vunpack.c.l.b16 %v376
      %v501 = vunpack.c.h.b16 %v376
      %v502 = vunpack.c.l.b16 %v377
      %v503 = vunpack.c.h.b16 %v377
      %v504 = vunpack.c.l.b16 %v378
      %v505 = vunpack.c.h.b16 %v378
      %v506 = vunpack.c.l.b16 %v379
      %v507 = vunpack.c.h.b16 %v379
      %v508 = vunpack.c.l.b16 %v380
      %v509 = vunpack.c.h.b16 %v380
      %v510 = vunpack.c.l.b16 %v381
      %v511 = vunpack.c.h.b16 %v381
      %v512 = vunpack.c.l.b16 %v382
      %v513 = vunpack.c.h.b16 %v382
      %v514 = vunpack.c.l.b16 %v383
      %v515 = vunpack.c.h.b16 %v383
      %v516 = vunpack.c.l.b16 %v384
      %v517 = vunpack.c.h.b16 %v384
      %v518 = vunpack.c.l.b16 %v385
      %v519 = vunpack.c.h.b16 %v385
      %v520 = vunpack.c.l.b16 %v386
      %v521 = vunpack.c.h.b16 %v386
      %v522 = vunpack.c.l.b16 %v387
      %v523 = vunpack.c.h.b16 %v387
      %v524 = vpack.c.b16 %v462, %v460
      %v525 = vpack.c.b16 %v463, %v461
      %v526 = vpack.c.b16 %v466, %v464
      %v527 = vpack.c.b16 %v467, %v465
      %v528 = vpack.c.b16 %v470, %v468
      %v529 = vpack.c.b16 %v471, %v469
      %v530 = vpack.c.b16 %v474, %v472
      %v531 = vpack.c.b16 %v475, %v473
      %v532 = vpack.c.b16 %v478, %v476
      %v533 = vpack.c.b16 %v479, %v477
      %v534 = vpack.c.b16 %v482, %v480
      %v535 = vpack.c.b16 %v483, %v481
      %v536 = vpack.c.b16 %v486, %v484
      %v537 = vpack.c.b16 %v487, %v485
      %v538 = vpack.c.b16 %v490, %v488
      %v539 = vpack.c.b16 %v491, %v489
      %v540 = vpack.c.b16 %v494, %v492
      %v541 = vpack.c.b16 %v495, %v493
      %v542 = vpack.c.b16 %v498, %v496
      %v543 = vpack.c.b16 %v499, %v497
      %v544 = vpack.c.b16 %v502, %v500
      %v545 = vpack.c.b16 %v503, %v501
      %v546 = vpack.c.b16 %v506, %v504
      %v547 = vpack.c.b16 %v507, %v505
      %v548 = vpack.c.b16 %v510, %v508
      %v549 = vpack.c.b16 %v511, %v509
      %v550 = vpack.c.b16 %v514, %v512
      %v551 = vpack.c.b16 %v515, %v513
      %v552 = vpack.c.b16 %v518, %v516
      %v553 = vpack.c.b16 %v519, %v517
      %v554 = vpack.c.b16 %v522, %v520
      %v555 = vpack.c.b16 %v523, %v521
      %588 = vmatpush.bf16.msra.mxu0 %v538
      %589 = vmatpush.bf16.msra.mxu0 %v536
      %590 = vmatpush.bf16.msra.mxu0 %v534
      %591 = vmatpush.bf16.msra.mxu0 %v532
      %592 = vmatpush.bf16.msra.mxu0 %v530
      %593 = vmatpush.bf16.msra.mxu0 %v528
      %594 = vmatpush.bf16.msra.mxu0 %v526
      %595 = vmatpush.bf16.msra.mxu0 %v524
      %596 = vmatmul.bf16.gmra.mxu0 %v413
      %v597 = vpop.f32.mrf.mxu0
      %v598 = vadd.f32 0.0, %v597
      %v599 = vpop.f32.mrf.mxu0
      %v600 = vadd.f32 0.0, %v599
      %601 = vdwg.mxu0
      %602 = vmatpush.bf16.msra.mxu0 %v554
      %603 = vmatpush.bf16.msra.mxu0 %v552
      %604 = vmatpush.bf16.msra.mxu0 %v550
      %605 = vmatpush.bf16.msra.mxu0 %v548
      %606 = vmatpush.bf16.msra.mxu0 %v546
      %607 = vmatpush.bf16.msra.mxu0 %v544
      %608 = vmatpush.bf16.msra.mxu0 %v542
      %609 = vmatpush.bf16.msra.mxu0 %v540
      %610 = vmatmul.bf16.gmra.mxu0 %v425
      %v611 = vpop.f32.mrf.mxu0
      %v612 = vadd.f32 %v598, %v611
      %v613 = vpop.f32.mrf.mxu0
      %v614 = vadd.f32 %v600, %v613
      %615 = vdwg.mxu0
      %616 = vmatpush.bf16.msra.mxu0 %v539
      %617 = vmatpush.bf16.msra.mxu0 %v537
      %618 = vmatpush.bf16.msra.mxu0 %v535
      %619 = vmatpush.bf16.msra.mxu0 %v533
      %620 = vmatpush.bf16.msra.mxu0 %v531
      %621 = vmatpush.bf16.msra.mxu0 %v529
      %622 = vmatpush.bf16.msra.mxu0 %v527
      %623 = vmatpush.bf16.msra.mxu0 %v525
      %624 = vmatmul.bf16.gmra.mxu0 %v413
      %v625 = vpop.f32.mrf.mxu0
      %v626 = vadd.f32 0.0, %v625
      %v627 = vpop.f32.mrf.mxu0
      %v628 = vadd.f32 0.0, %v627
      %629 = vdwg.mxu0
      %630 = vmatpush.bf16.msra.mxu0 %v555
      %631 = vmatpush.bf16.msra.mxu0 %v553
      %632 = vmatpush.bf16.msra.mxu0 %v551
      %633 = vmatpush.bf16.msra.mxu0 %v549
      %634 = vmatpush.bf16.msra.mxu0 %v547
      %635 = vmatpush.bf16.msra.mxu0 %v545
      %636 = vmatpush.bf16.msra.mxu0 %v543
      %637 = vmatpush.bf16.msra.mxu0 %v541
      %638 = vmatmul.bf16.gmra.mxu0 %v425
      %v639 = vpop.f32.mrf.mxu0
      %v640 = vadd.f32 %v626, %v639
      %v641 = vpop.f32.mrf.mxu0
      %v642 = vadd.f32 %v628, %v641
      %643 = vdwg.mxu0
      %v678 = vunpack.c.l.b16 %v323
      %v679 = vunpack.c.h.b16 %v323
      %v680 = vunpack.c.l.b16 %v324
      %v681 = vunpack.c.h.b16 %v324
      %v682 = vunpack.c.l.b16 %v325
      %v683 = vunpack.c.h.b16 %v325
      %v684 = vunpack.c.l.b16 %v326
      %v685 = vunpack.c.h.b16 %v326
      %v686 = vunpack.c.l.b16 %v327
      %v687 = vunpack.c.h.b16 %v327
      %v688 = vunpack.c.l.b16 %v328
      %v689 = vunpack.c.h.b16 %v328
      %v690 = vunpack.c.l.b16 %v329
      %v691 = vunpack.c.h.b16 %v329
      %v692 = vunpack.c.l.b16 %v330
      %v693 = vunpack.c.h.b16 %v330
      %v694 = vunpack.c.l.b16 %v331
      %v695 = vunpack.c.h.b16 %v331
      %v696 = vunpack.c.l.b16 %v332
      %v697 = vunpack.c.h.b16 %v332
      %v698 = vunpack.c.l.b16 %v333
      %v699 = vunpack.c.h.b16 %v333
      %v700 = vunpack.c.l.b16 %v334
      %v701 = vunpack.c.h.b16 %v334
      %v702 = vunpack.c.l.b16 %v335
      %v703 = vunpack.c.h.b16 %v335
      %v704 = vunpack.c.l.b16 %v336
      %v705 = vunpack.c.h.b16 %v336
      %v706 = vunpack.c.l.b16 %v337
      %v707 = vunpack.c.h.b16 %v337
      %v708 = vunpack.c.l.b16 %v338
      %v709 = vunpack.c.h.b16 %v338
      %v710 = vunpack.c.l.b16 %v339
      %v711 = vunpack.c.h.b16 %v339
      %v712 = vunpack.c.l.b16 %v340
      %v713 = vunpack.c.h.b16 %v340
      %v714 = vunpack.c.l.b16 %v341
      %v715 = vunpack.c.h.b16 %v341
      %v716 = vunpack.c.l.b16 %v342
      %v717 = vunpack.c.h.b16 %v342
      %v718 = vunpack.c.l.b16 %v343
      %v719 = vunpack.c.h.b16 %v343
      %v720 = vunpack.c.l.b16 %v344
      %v721 = vunpack.c.h.b16 %v344
      %v722 = vunpack.c.l.b16 %v345
      %v723 = vunpack.c.h.b16 %v345
      %v724 = vunpack.c.l.b16 %v346
      %v725 = vunpack.c.h.b16 %v346
      %v726 = vunpack.c.l.b16 %v347
      %v727 = vunpack.c.h.b16 %v347
      %v728 = vunpack.c.l.b16 %v348
      %v729 = vunpack.c.h.b16 %v348
      %v730 = vunpack.c.l.b16 %v349
      %v731 = vunpack.c.h.b16 %v349
      %v732 = vunpack.c.l.b16 %v350
      %v733 = vunpack.c.h.b16 %v350
      %v734 = vunpack.c.l.b16 %v351
      %v735 = vunpack.c.h.b16 %v351
      %v736 = vunpack.c.l.b16 %v352
      %v737 = vunpack.c.h.b16 %v352
      %v738 = vunpack.c.l.b16 %v353
      %v739 = vunpack.c.h.b16 %v353
      %v740 = vunpack.c.l.b16 %v354
      %v741 = vunpack.c.h.b16 %v354
      %v742 = vpack.c.b16 %v680, %v678
      %v743 = vpack.c.b16 %v681, %v679
      %v744 = vpack.c.b16 %v684, %v682
      %v745 = vpack.c.b16 %v685, %v683
      %v746 = vpack.c.b16 %v688, %v686
      %v747 = vpack.c.b16 %v689, %v687
      %v748 = vpack.c.b16 %v692, %v690
      %v749 = vpack.c.b16 %v693, %v691
      %v750 = vpack.c.b16 %v696, %v694
      %v751 = vpack.c.b16 %v697, %v695
      %v752 = vpack.c.b16 %v700, %v698
      %v753 = vpack.c.b16 %v701, %v699
      %v754 = vpack.c.b16 %v704, %v702
      %v755 = vpack.c.b16 %v705, %v703
      %v756 = vpack.c.b16 %v708, %v706
      %v757 = vpack.c.b16 %v709, %v707
      %v758 = vpack.c.b16 %v712, %v710
      %v759 = vpack.c.b16 %v713, %v711
      %v760 = vpack.c.b16 %v716, %v714
      %v761 = vpack.c.b16 %v717, %v715
      %v762 = vpack.c.b16 %v720, %v718
      %v763 = vpack.c.b16 %v721, %v719
      %v764 = vpack.c.b16 %v724, %v722
      %v765 = vpack.c.b16 %v725, %v723
      %v766 = vpack.c.b16 %v728, %v726
      %v767 = vpack.c.b16 %v729, %v727
      %v768 = vpack.c.b16 %v732, %v730
      %v769 = vpack.c.b16 %v733, %v731
      %v770 = vpack.c.b16 %v736, %v734
      %v771 = vpack.c.b16 %v737, %v735
      %v772 = vpack.c.b16 %v740, %v738
      %v773 = vpack.c.b16 %v741, %v739
      %806 = vmatpush.bf16.msra.mxu0 %v756
      %807 = vmatpush.bf16.msra.mxu0 %v754
      %808 = vmatpush.bf16.msra.mxu0 %v752
      %809 = vmatpush.bf16.msra.mxu0 %v750
      %810 = vmatpush.bf16.msra.mxu0 %v748
      %811 = vmatpush.bf16.msra.mxu0 %v746
      %812 = vmatpush.bf16.msra.mxu0 %v744
      %813 = vmatpush.bf16.msra.mxu0 %v742
      %814 = vmatmul.bf16.gmra.mxu0 %v397
      %v815 = vpop.f32.mrf.mxu0
      %v816 = vadd.f32 %v612, %v815
      %v817 = vpop.f32.mrf.mxu0
      %v818 = vadd.f32 %v614, %v817
      %819 = vdwg.mxu0
      %820 = vmatpush.bf16.msra.mxu0 %v772
      %821 = vmatpush.bf16.msra.mxu0 %v770
      %822 = vmatpush.bf16.msra.mxu0 %v768
      %823 = vmatpush.bf16.msra.mxu0 %v766
      %824 = vmatpush.bf16.msra.mxu0 %v764
      %825 = vmatpush.bf16.msra.mxu0 %v762
      %826 = vmatpush.bf16.msra.mxu0 %v760
      %827 = vmatpush.bf16.msra.mxu0 %v758
      %828 = vmatmul.bf16.gmra.mxu0 %v398
      %v829 = vpop.f32.mrf.mxu0
      %v830 = vadd.f32 %v816, %v829
      %v831 = vpop.f32.mrf.mxu0
      %v832 = vadd.f32 %v818, %v831
      %833 = vdwg.mxu0
      %834 = vmatpush.bf16.msra.mxu0 %v757
      %835 = vmatpush.bf16.msra.mxu0 %v755
      %836 = vmatpush.bf16.msra.mxu0 %v753
      %837 = vmatpush.bf16.msra.mxu0 %v751
      %838 = vmatpush.bf16.msra.mxu0 %v749
      %839 = vmatpush.bf16.msra.mxu0 %v747
      %840 = vmatpush.bf16.msra.mxu0 %v745
      %841 = vmatpush.bf16.msra.mxu0 %v743
      %842 = vmatmul.bf16.gmra.mxu0 %v397
      %v843 = vpop.f32.mrf.mxu0
      %v844 = vadd.f32 %v640, %v843
      %v845 = vpop.f32.mrf.mxu0
      %v846 = vadd.f32 %v642, %v845
      %847 = vdwg.mxu0
      %848 = vmatpush.bf16.msra.mxu0 %v773
      %849 = vmatpush.bf16.msra.mxu0 %v771
      %850 = vmatpush.bf16.msra.mxu0 %v769
      %851 = vmatpush.bf16.msra.mxu0 %v767
      %852 = vmatpush.bf16.msra.mxu0 %v765
      %853 = vmatpush.bf16.msra.mxu0 %v763
      %854 = vmatpush.bf16.msra.mxu0 %v761
      %855 = vmatpush.bf16.msra.mxu0 %v759
      %856 = vmatmul.bf16.gmra.mxu0 %v398
      %v857 = vpop.f32.mrf.mxu0
      %v858 = vadd.f32 %v844, %v857
      %v859 = vpop.f32.mrf.mxu0
      %v860 = vadd.f32 %v846, %v859
      %861 = vdwg.mxu0
      %s862 = scalar_lea.vmem %s2, 512
      %v863 = vld [vmem:[%s862] sm:$0xff]
      %v864 = vld [vmem:[%s862 + $0x8] sm:$0xff]
      %v865 = vld [vmem:[%s862 + $0x10] sm:$0xff]
      %v866 = vld [vmem:[%s862 + $0x18] sm:$0xff]
      %v867 = vld [vmem:[%s862 + $0x20] sm:$0xff]
      %v868 = vld [vmem:[%s862 + $0x28] sm:$0xff]
      %v869 = vld [vmem:[%s862 + $0x30] sm:$0xff]
      %v870 = vld [vmem:[%s862 + $0x38] sm:$0xff]
      %v871 = vld [vmem:[%s862 + $0x40] sm:$0xff]
      %v872 = vld [vmem:[%s862 + $0x48] sm:$0xff]
      %v873 = vld [vmem:[%s862 + $0x50] sm:$0xff]
      %v874 = vld [vmem:[%s862 + $0x58] sm:$0xff]
      %v875 = vld [vmem:[%s862 + $0x60] sm:$0xff]
      %v876 = vld [vmem:[%s862 + $0x68] sm:$0xff]
      %v877 = vld [vmem:[%s862 + $0x70] sm:$0xff]
      %v878 = vld [vmem:[%s862 + $0x78] sm:$0xff]
      %v879 = vld [vmem:[%s862 + $0x80] sm:$0xff]
      %v880 = vld [vmem:[%s862 + $0x88] sm:$0xff]
      %v881 = vld [vmem:[%s862 + $0x90] sm:$0xff]
      %v882 = vld [vmem:[%s862 + $0x98] sm:$0xff]
      %v883 = vld [vmem:[%s862 + $0xa0] sm:$0xff]
      %v884 = vld [vmem:[%s862 + $0xa8] sm:$0xff]
      %v885 = vld [vmem:[%s862 + $0xb0] sm:$0xff]
      %v886 = vld [vmem:[%s862 + $0xb8] sm:$0xff]
      %v887 = vld [vmem:[%s862 + $0xc0] sm:$0xff]
      %v888 = vld [vmem:[%s862 + $0xc8] sm:$0xff]
      %v889 = vld [vmem:[%s862 + $0xd0] sm:$0xff]
      %v890 = vld [vmem:[%s862 + $0xd8] sm:$0xff]
      %v891 = vld [vmem:[%s862 + $0xe0] sm:$0xff]
      %v892 = vld [vmem:[%s862 + $0xe8] sm:$0xff]
      %v893 = vld [vmem:[%s862 + $0xf0] sm:$0xff]
      %v894 = vld [vmem:[%s862 + $0xf8] sm:$0xff]
      %vm895 = vcmask 1046528
      %v896 = vrot.slane %v397, 1
      %v897 = vrot.slane %v399, 1
      %v898 = vsel %vm895, %v896, %v897
      %v899 = vrot.slane %v398, 1
      %v900 = vrot.slane %v400, 1
      %v901 = vsel %vm895, %v899, %v900
      %v936 = vunpack.c.l.b16 %v863
      %v937 = vunpack.c.h.b16 %v863
      %v938 = vunpack.c.l.b16 %v864
      %v939 = vunpack.c.h.b16 %v864
      %v940 = vunpack.c.l.b16 %v865
      %v941 = vunpack.c.h.b16 %v865
      %v942 = vunpack.c.l.b16 %v866
      %v943 = vunpack.c.h.b16 %v866
      %v944 = vunpack.c.l.b16 %v867
      %v945 = vunpack.c.h.b16 %v867
      %v946 = vunpack.c.l.b16 %v868
      %v947 = vunpack.c.h.b16 %v868
      %v948 = vunpack.c.l.b16 %v869
      %v949 = vunpack.c.h.b16 %v869
      %v950 = vunpack.c.l.b16 %v870
      %v951 = vunpack.c.h.b16 %v870
      %v952 = vunpack.c.l.b16 %v871
      %v953 = vunpack.c.h.b16 %v871
      %v954 = vunpack.c.l.b16 %v872
      %v955 = vunpack.c.h.b16 %v872
      %v956 = vunpack.c.l.b16 %v873
      %v957 = vunpack.c.h.b16 %v873
      %v958 = vunpack.c.l.b16 %v874
      %v959 = vunpack.c.h.b16 %v874
      %v960 = vunpack.c.l.b16 %v875
      %v961 = vunpack.c.h.b16 %v875
      %v962 = vunpack.c.l.b16 %v876
      %v963 = vunpack.c.h.b16 %v876
      %v964 = vunpack.c.l.b16 %v877
      %v965 = vunpack.c.h.b16 %v877
      %v966 = vunpack.c.l.b16 %v878
      %v967 = vunpack.c.h.b16 %v878
      %v968 = vunpack.c.l.b16 %v879
      %v969 = vunpack.c.h.b16 %v879
      %v970 = vunpack.c.l.b16 %v880
      %v971 = vunpack.c.h.b16 %v880
      %v972 = vunpack.c.l.b16 %v881
      %v973 = vunpack.c.h.b16 %v881
      %v974 = vunpack.c.l.b16 %v882
      %v975 = vunpack.c.h.b16 %v882
      %v976 = vunpack.c.l.b16 %v883
      %v977 = vunpack.c.h.b16 %v883
      %v978 = vunpack.c.l.b16 %v884
      %v979 = vunpack.c.h.b16 %v884
      %v980 = vunpack.c.l.b16 %v885
      %v981 = vunpack.c.h.b16 %v885
      %v982 = vunpack.c.l.b16 %v886
      %v983 = vunpack.c.h.b16 %v886
      %v984 = vunpack.c.l.b16 %v887
      %v985 = vunpack.c.h.b16 %v887
      %v986 = vunpack.c.l.b16 %v888
      %v987 = vunpack.c.h.b16 %v888
      %v988 = vunpack.c.l.b16 %v889
      %v989 = vunpack.c.h.b16 %v889
      %v990 = vunpack.c.l.b16 %v890
      %v991 = vunpack.c.h.b16 %v890
      %v992 = vunpack.c.l.b16 %v891
      %v993 = vunpack.c.h.b16 %v891
      %v994 = vunpack.c.l.b16 %v892
      %v995 = vunpack.c.h.b16 %v892
      %v996 = vunpack.c.l.b16 %v893
      %v997 = vunpack.c.h.b16 %v893
      %v998 = vunpack.c.l.b16 %v894
      %v999 = vunpack.c.h.b16 %v894
      %v1000 = vpack.c.b16 %v938, %v936
      %v1001 = vpack.c.b16 %v939, %v937
      %v1002 = vpack.c.b16 %v942, %v940
      %v1003 = vpack.c.b16 %v943, %v941
      %v1004 = vpack.c.b16 %v946, %v944
      %v1005 = vpack.c.b16 %v947, %v945
      %v1006 = vpack.c.b16 %v950, %v948
      %v1007 = vpack.c.b16 %v951, %v949
      %v1008 = vpack.c.b16 %v954, %v952
      %v1009 = vpack.c.b16 %v955, %v953
      %v1010 = vpack.c.b16 %v958, %v956
      %v1011 = vpack.c.b16 %v959, %v957
      %v1012 = vpack.c.b16 %v962, %v960
      %v1013 = vpack.c.b16 %v963, %v961
      %v1014 = vpack.c.b16 %v966, %v964
      %v1015 = vpack.c.b16 %v967, %v965
      %v1016 = vpack.c.b16 %v970, %v968
      %v1017 = vpack.c.b16 %v971, %v969
      %v1018 = vpack.c.b16 %v974, %v972
      %v1019 = vpack.c.b16 %v975, %v973
      %v1020 = vpack.c.b16 %v978, %v976
      %v1021 = vpack.c.b16 %v979, %v977
      %v1022 = vpack.c.b16 %v982, %v980
      %v1023 = vpack.c.b16 %v983, %v981
      %v1024 = vpack.c.b16 %v986, %v984
      %v1025 = vpack.c.b16 %v987, %v985
      %v1026 = vpack.c.b16 %v990, %v988
      %v1027 = vpack.c.b16 %v991, %v989
      %v1028 = vpack.c.b16 %v994, %v992
      %v1029 = vpack.c.b16 %v995, %v993
      %v1030 = vpack.c.b16 %v998, %v996
      %v1031 = vpack.c.b16 %v999, %v997
      %1064 = vmatpush.bf16.msra.mxu0 %v1014
      %1065 = vmatpush.bf16.msra.mxu0 %v1012
      %1066 = vmatpush.bf16.msra.mxu0 %v1010
      %1067 = vmatpush.bf16.msra.mxu0 %v1008
      %1068 = vmatpush.bf16.msra.mxu0 %v1006
      %1069 = vmatpush.bf16.msra.mxu0 %v1004
      %1070 = vmatpush.bf16.msra.mxu0 %v1002
      %1071 = vmatpush.bf16.msra.mxu0 %v1000
      %1072 = vmatmul.bf16.gmra.mxu0 %v898
      %v1073 = vpop.f32.mrf.mxu0
      %v1074 = vadd.f32 0.0, %v1073
      %v1075 = vpop.f32.mrf.mxu0
      %v1076 = vadd.f32 0.0, %v1075
      %1077 = vdwg.mxu0
      %1078 = vmatpush.bf16.msra.mxu0 %v1030
      %1079 = vmatpush.bf16.msra.mxu0 %v1028
      %1080 = vmatpush.bf16.msra.mxu0 %v1026
      %1081 = vmatpush.bf16.msra.mxu0 %v1024
      %1082 = vmatpush.bf16.msra.mxu0 %v1022
      %1083 = vmatpush.bf16.msra.mxu0 %v1020
      %1084 = vmatpush.bf16.msra.mxu0 %v1018
      %1085 = vmatpush.bf16.msra.mxu0 %v1016
      %1086 = vmatmul.bf16.gmra.mxu0 %v901
      %v1087 = vpop.f32.mrf.mxu0
      %v1088 = vadd.f32 %v1074, %v1087
      %v1089 = vpop.f32.mrf.mxu0
      %v1090 = vadd.f32 %v1076, %v1089
      %1091 = vdwg.mxu0
      %1092 = vmatpush.bf16.msra.mxu0 %v1015
      %1093 = vmatpush.bf16.msra.mxu0 %v1013
      %1094 = vmatpush.bf16.msra.mxu0 %v1011
      %1095 = vmatpush.bf16.msra.mxu0 %v1009
      %1096 = vmatpush.bf16.msra.mxu0 %v1007
      %1097 = vmatpush.bf16.msra.mxu0 %v1005
      %1098 = vmatpush.bf16.msra.mxu0 %v1003
      %1099 = vmatpush.bf16.msra.mxu0 %v1001
      %1100 = vmatmul.bf16.gmra.mxu0 %v898
      %v1101 = vpop.f32.mrf.mxu0
      %v1102 = vadd.f32 0.0, %v1101
      %v1103 = vpop.f32.mrf.mxu0
      %v1104 = vadd.f32 0.0, %v1103
      %1105 = vdwg.mxu0
      %1106 = vmatpush.bf16.msra.mxu0 %v1031
      %1107 = vmatpush.bf16.msra.mxu0 %v1029
      %1108 = vmatpush.bf16.msra.mxu0 %v1027
      %1109 = vmatpush.bf16.msra.mxu0 %v1025
      %1110 = vmatpush.bf16.msra.mxu0 %v1023
      %1111 = vmatpush.bf16.msra.mxu0 %v1021
      %1112 = vmatpush.bf16.msra.mxu0 %v1019
      %1113 = vmatpush.bf16.msra.mxu0 %v1017
      %1114 = vmatmul.bf16.gmra.mxu0 %v901
      %v1115 = vpop.f32.mrf.mxu0
      %v1116 = vadd.f32 %v1102, %v1115
      %v1117 = vpop.f32.mrf.mxu0
      %v1118 = vadd.f32 %v1104, %v1117
      %1119 = vdwg.mxu0
      %v1120 = vadd.f32 %v830, %v1088
      %v1121 = vadd.f32 %v858, %v1116
      %v1122 = vadd.f32 %v832, %v1090
      %v1123 = vadd.f32 %v860, %v1118
      %v1124 = vld [vmem:[%s3] sm:$0x3]
      %v1126 = vperm.slane %v1124, 0
      %v1127 = vperm.slane %v1124, 1
      %v1130 = vadd.f32 %v1120, %v1126
      %v1131 = vadd.f32 %v1121, %v1127
      %v1132 = vadd.f32 %v1122, %v1126
      %v1133 = vadd.f32 %v1123, %v1127
      %v1134 = vmul.f32 %v1130, 0.5
      %v1135 = vmul.f32 %v1131, 0.5
      %v1136 = vmul.f32 %v1132, 0.5
      %v1137 = vmul.f32 %v1133, 0.5
      %v1138 = vrcp.pop 1.4142135
      %v1139 = vmul.f32 1.4142135, %v1138
      %v1140 = vsub.f32 1.0, %v1139
      %v1141 = vmul.f32 %v1138, %v1140
      %v1142 = vadd.f32 %v1138, %v1141
      %vm1143 = vweird.f32 %v1138
      %v1144 = vsel %vm1143, %v1138, %v1142
      %v1145 = vmul.f32 %v1130, %v1144
      %v1146 = vmul.f32 %v1131, %v1144
      %v1147 = vmul.f32 %v1132, %v1144
      %v1148 = vmul.f32 %v1133, %v1144
      %v1149 = vmul.f32 %v1145, %v1145
      %v1150 = vmin.f32 16.0, %v1149
      %v1151 = vmul.f32 %v1150, 2.1237322e-06
      %v1152 = vadd.f32 %v1151, 0.00028619796
      %v1153 = vmul.f32 %v1150, %v1152
      %v1154 = vadd.f32 %v1153, 0.0036580483
      %v1155 = vmul.f32 %v1150, %v1154
      %v1156 = vadd.f32 %v1155, 0.05243302
      %v1157 = vmul.f32 %v1150, %v1156
      %v1158 = vadd.f32 %v1157, 0.18741608
      %v1159 = vmul.f32 %v1150, %v1158
      %v1160 = vadd.f32 %v1159, 1.1283791
      %v1161 = vmul.f32 %v1145, %v1160
      %v1162 = vmul.f32 %v1150, 3.8918573e-05
      %v1163 = vadd.f32 %v1162, 0.001143296
      %v1164 = vmul.f32 %v1150, %v1163
      %v1165 = vadd.f32 %v1164, 0.014752088
      %v1166 = vmul.f32 %v1150, %v1165
      %v1167 = vadd.f32 %v1166, 0.112945676
      %v1168 = vmul.f32 %v1150, %v1167
      %v1169 = vadd.f32 %v1168, 0.4994258
      %v1170 = vmul.f32 %v1150, %v1169
      %v1171 = vadd.f32 %v1170, 1.0
      %v1172 = vrcp.pop %v1171
      %v1173 = vmul.f32 %v1171, %v1172
      %v1174 = vsub.f32 1.0, %v1173
      %v1175 = vmul.f32 %v1172, %v1174
      %v1176 = vadd.f32 %v1172, %v1175
      %vm1177 = vweird.f32 %v1171
      %vm1178 = vweird.f32 %v1172
      %vm1179 = vmor %vm1177, %vm1178
      %v1180 = vsel %vm1179, %v1172, %v1176
      %v1181 = vand.u32 2147483647, %v1171
      %vm1182 = vcmp.eq.f32.partialorder %v1181, 8.507059e+37
      %v1183 = vand.u32 %v1171, 2147483648
      %v1184 = vor.u32 1.1754944e-38, %v1183
      %v1185 = vsel %vm1182, %v1184, %v1180
      %v1186 = vmul.f32 %v1161, %v1185
      %v1187 = vmin.f32 %v1186, 1.0
      %v1188 = vmax.f32 %v1187, -1.0
      %v1189 = vmul.f32 %v1146, %v1146
      %v1190 = vmin.f32 16.0, %v1189
      %v1191 = vmul.f32 %v1190, 2.1237322e-06
      %v1192 = vadd.f32 %v1191, 0.00028619796
      %v1193 = vmul.f32 %v1190, %v1192
      %v1194 = vadd.f32 %v1193, 0.0036580483
      %v1195 = vmul.f32 %v1190, %v1194
      %v1196 = vadd.f32 %v1195, 0.05243302
      %v1197 = vmul.f32 %v1190, %v1196
      %v1198 = vadd.f32 %v1197, 0.18741608
      %v1199 = vmul.f32 %v1190, %v1198
      %v1200 = vadd.f32 %v1199, 1.1283791
      %v1201 = vmul.f32 %v1146, %v1200
      %v1202 = vmul.f32 %v1190, 3.8918573e-05
      %v1203 = vadd.f32 %v1202, 0.001143296
      %v1204 = vmul.f32 %v1190, %v1203
      %v1205 = vadd.f32 %v1204, 0.014752088
      %v1206 = vmul.f32 %v1190, %v1205
      %v1207 = vadd.f32 %v1206, 0.112945676
      %v1208 = vmul.f32 %v1190, %v1207
      %v1209 = vadd.f32 %v1208, 0.4994258
      %v1210 = vmul.f32 %v1190, %v1209
      %v1211 = vadd.f32 %v1210, 1.0
      %v1212 = vrcp.pop %v1211
      %v1213 = vmul.f32 %v1211, %v1212
      %v1214 = vsub.f32 1.0, %v1213
      %v1215 = vmul.f32 %v1212, %v1214
      %v1216 = vadd.f32 %v1212, %v1215
      %vm1217 = vweird.f32 %v1211
      %vm1218 = vweird.f32 %v1212
      %vm1219 = vmor %vm1217, %vm1218
      %v1220 = vsel %vm1219, %v1212, %v1216
      %v1221 = vand.u32 2147483647, %v1211
      %vm1222 = vcmp.eq.f32.partialorder %v1221, 8.507059e+37
      %v1223 = vand.u32 %v1211, 2147483648
      %v1224 = vor.u32 1.1754944e-38, %v1223
      %v1225 = vsel %vm1222, %v1224, %v1220
      %v1226 = vmul.f32 %v1201, %v1225
      %v1227 = vmin.f32 %v1226, 1.0
      %v1228 = vmax.f32 %v1227, -1.0
      %v1229 = vmul.f32 %v1147, %v1147
      %v1230 = vmin.f32 16.0, %v1229
      %v1231 = vmul.f32 %v1230, 2.1237322e-06
      %v1232 = vadd.f32 %v1231, 0.00028619796
      %v1233 = vmul.f32 %v1230, %v1232
      %v1234 = vadd.f32 %v1233, 0.0036580483
      %v1235 = vmul.f32 %v1230, %v1234
      %v1236 = vadd.f32 %v1235, 0.05243302
      %v1237 = vmul.f32 %v1230, %v1236
      %v1238 = vadd.f32 %v1237, 0.18741608
      %v1239 = vmul.f32 %v1230, %v1238
      %v1240 = vadd.f32 %v1239, 1.1283791
      %v1241 = vmul.f32 %v1147, %v1240
      %v1242 = vmul.f32 %v1230, 3.8918573e-05
      %v1243 = vadd.f32 %v1242, 0.001143296
      %v1244 = vmul.f32 %v1230, %v1243
      %v1245 = vadd.f32 %v1244, 0.014752088
      %v1246 = vmul.f32 %v1230, %v1245
      %v1247 = vadd.f32 %v1246, 0.112945676
      %v1248 = vmul.f32 %v1230, %v1247
      %v1249 = vadd.f32 %v1248, 0.4994258
      %v1250 = vmul.f32 %v1230, %v1249
      %v1251 = vadd.f32 %v1250, 1.0
      %v1252 = vrcp.pop %v1251
      %v1253 = vmul.f32 %v1251, %v1252
      %v1254 = vsub.f32 1.0, %v1253
      %v1255 = vmul.f32 %v1252, %v1254
      %v1256 = vadd.f32 %v1252, %v1255
      %vm1257 = vweird.f32 %v1251
      %vm1258 = vweird.f32 %v1252
      %vm1259 = vmor %vm1257, %vm1258
      %v1260 = vsel %vm1259, %v1252, %v1256
      %v1261 = vand.u32 2147483647, %v1251
      %vm1262 = vcmp.eq.f32.partialorder %v1261, 8.507059e+37
      %v1263 = vand.u32 %v1251, 2147483648
      %v1264 = vor.u32 1.1754944e-38, %v1263
      %v1265 = vsel %vm1262, %v1264, %v1260
      %v1266 = vmul.f32 %v1241, %v1265
      %v1267 = vmin.f32 %v1266, 1.0
      %v1268 = vmax.f32 %v1267, -1.0
      %v1269 = vmul.f32 %v1148, %v1148
      %v1270 = vmin.f32 16.0, %v1269
      %v1271 = vmul.f32 %v1270, 2.1237322e-06
      %v1272 = vadd.f32 %v1271, 0.00028619796
      %v1273 = vmul.f32 %v1270, %v1272
      %v1274 = vadd.f32 %v1273, 0.0036580483
      %v1275 = vmul.f32 %v1270, %v1274
      %v1276 = vadd.f32 %v1275, 0.05243302
      %v1277 = vmul.f32 %v1270, %v1276
      %v1278 = vadd.f32 %v1277, 0.18741608
      %v1279 = vmul.f32 %v1270, %v1278
      %v1280 = vadd.f32 %v1279, 1.1283791
      %v1281 = vmul.f32 %v1148, %v1280
      %v1282 = vmul.f32 %v1270, 3.8918573e-05
      %v1283 = vadd.f32 %v1282, 0.001143296
      %v1284 = vmul.f32 %v1270, %v1283
      %v1285 = vadd.f32 %v1284, 0.014752088
      %v1286 = vmul.f32 %v1270, %v1285
      %v1287 = vadd.f32 %v1286, 0.112945676
      %v1288 = vmul.f32 %v1270, %v1287
      %v1289 = vadd.f32 %v1288, 0.4994258
      %v1290 = vmul.f32 %v1270, %v1289
      %v1291 = vadd.f32 %v1290, 1.0
      %v1292 = vrcp.pop %v1291
      %v1293 = vmul.f32 %v1291, %v1292
      %v1294 = vsub.f32 1.0, %v1293
      %v1295 = vmul.f32 %v1292, %v1294
      %v1296 = vadd.f32 %v1292, %v1295
      %vm1297 = vweird.f32 %v1291
      %vm1298 = vweird.f32 %v1292
      %vm1299 = vmor %vm1297, %vm1298
      %v1300 = vsel %vm1299, %v1292, %v1296
      %v1301 = vand.u32 2147483647, %v1291
      %vm1302 = vcmp.eq.f32.partialorder %v1301, 8.507059e+37
      %v1303 = vand.u32 %v1291, 2147483648
      %v1304 = vor.u32 1.1754944e-38, %v1303
      %v1305 = vsel %vm1302, %v1304, %v1300
      %v1306 = vmul.f32 %v1281, %v1305
      %v1307 = vmin.f32 %v1306, 1.0
      %v1308 = vmax.f32 %v1307, -1.0
      %v1309 = vadd.f32 %v1188, 1.0
      %v1310 = vadd.f32 %v1228, 1.0
      %v1311 = vadd.f32 %v1268, 1.0
      %v1312 = vadd.f32 %v1308, 1.0
      %v1313 = vmul.f32 %v1134, %v1309
      %v1314 = vmul.f32 %v1135, %v1310
      %v1315 = vmul.f32 %v1136, %v1311
      %v1316 = vmul.f32 %v1137, %v1312
      %v1317 = vpack.c.bf16 %v1314, %v1313
      %v1318 = vpack.c.bf16 %v1316, %v1315
      %v1321 = vunpack.c.l.b16 %v1317
      %v1322 = vunpack.c.h.b16 %v1317
      %v1323 = vunpack.c.l.b16 %v1318
      %v1324 = vunpack.c.h.b16 %v1318
      %v1325 = vpack.c.b16 %v1323, %v1321
      %v1326 = vpack.c.b16 %v1324, %v1322
      %v1328 = vshrl.u32 %v1325, 16
      %v1330 = vrot.slane %v1328, 7
      %v1331 = vshll.u32 %v1325, 16
      %v1333 = vor.u32 %v1330, %v1331
      %v1335 = vshrl.u32 %v1326, 16
      %v1337 = vrot.slane %v1335, 7
      %v1338 = vshll.u32 %v1326, 16
      %v1340 = vor.u32 %v1337, %v1338
      %vm1345 = vcmask 1040384
      %vm1346 = vsmask.f32 256
      %vm1347 = vmand %vm1345, %vm1346
      %v1348 = vsel %vm1347, 0, %v1333
      %v1349 = vsel %vm1347, 0, %v1340
      %v1350 = vsel %vm1347, %v1330, 0
      %v1351 = vsel %vm1347, %v1337, 0
      %v1352 = vld [vmem:[%s4] sm:$0xff]
      %v1353 = vld [vmem:[%s4 + $0x8] sm:$0xff]
      %v1354 = vld [vmem:[%s4 + $0x10] sm:$0xff]
      %v1355 = vld [vmem:[%s4 + $0x18] sm:$0xff]
      %v1356 = vld [vmem:[%s4 + $0x20] sm:$0xff]
      %v1357 = vld [vmem:[%s4 + $0x28] sm:$0xff]
      %v1358 = vld [vmem:[%s4 + $0x30] sm:$0xff]
      %v1359 = vld [vmem:[%s4 + $0x38] sm:$0xff]
      %v1360 = vld [vmem:[%s4 + $0x40] sm:$0xff]
      %v1361 = vld [vmem:[%s4 + $0x48] sm:$0xff]
      %v1362 = vld [vmem:[%s4 + $0x50] sm:$0xff]
      %v1363 = vld [vmem:[%s4 + $0x58] sm:$0xff]
      %v1364 = vld [vmem:[%s4 + $0x60] sm:$0xff]
      %v1365 = vld [vmem:[%s4 + $0x68] sm:$0xff]
      %v1366 = vld [vmem:[%s4 + $0x70] sm:$0xff]
      %v1367 = vld [vmem:[%s4 + $0x78] sm:$0xff]
      %v1368 = vld [vmem:[%s4 + $0x80] sm:$0xff]
      %v1369 = vld [vmem:[%s4 + $0x88] sm:$0xff]
      %v1370 = vld [vmem:[%s4 + $0x90] sm:$0xff]
      %v1371 = vld [vmem:[%s4 + $0x98] sm:$0xff]
      %v1372 = vld [vmem:[%s4 + $0xa0] sm:$0xff]
      %v1373 = vld [vmem:[%s4 + $0xa8] sm:$0xff]
      %v1374 = vld [vmem:[%s4 + $0xb0] sm:$0xff]
      %v1375 = vld [vmem:[%s4 + $0xb8] sm:$0xff]
      %v1376 = vld [vmem:[%s4 + $0xc0] sm:$0xff]
      %v1377 = vld [vmem:[%s4 + $0xc8] sm:$0xff]
      %v1378 = vld [vmem:[%s4 + $0xd0] sm:$0xff]
      %v1379 = vld [vmem:[%s4 + $0xd8] sm:$0xff]
      %v1380 = vld [vmem:[%s4 + $0xe0] sm:$0xff]
      %v1381 = vld [vmem:[%s4 + $0xe8] sm:$0xff]
      %v1382 = vld [vmem:[%s4 + $0xf0] sm:$0xff]
      %v1383 = vld [vmem:[%s4 + $0xf8] sm:$0xff]
      %s1384 = scalar_lea.vmem %s4, 256
      %v1385 = vld [vmem:[%s1384] sm:$0xff]
      %v1386 = vld [vmem:[%s1384 + $0x8] sm:$0xff]
      %v1387 = vld [vmem:[%s1384 + $0x10] sm:$0xff]
      %v1388 = vld [vmem:[%s1384 + $0x18] sm:$0xff]
      %v1389 = vld [vmem:[%s1384 + $0x20] sm:$0xff]
      %v1390 = vld [vmem:[%s1384 + $0x28] sm:$0xff]
      %v1391 = vld [vmem:[%s1384 + $0x30] sm:$0xff]
      %v1392 = vld [vmem:[%s1384 + $0x38] sm:$0xff]
      %v1393 = vld [vmem:[%s1384 + $0x40] sm:$0xff]
      %v1394 = vld [vmem:[%s1384 + $0x48] sm:$0xff]
      %v1395 = vld [vmem:[%s1384 + $0x50] sm:$0xff]
      %v1396 = vld [vmem:[%s1384 + $0x58] sm:$0xff]
      %v1397 = vld [vmem:[%s1384 + $0x60] sm:$0xff]
      %v1398 = vld [vmem:[%s1384 + $0x68] sm:$0xff]
      %v1399 = vld [vmem:[%s1384 + $0x70] sm:$0xff]
      %v1400 = vld [vmem:[%s1384 + $0x78] sm:$0xff]
      %v1401 = vld [vmem:[%s1384 + $0x80] sm:$0xff]
      %v1402 = vld [vmem:[%s1384 + $0x88] sm:$0xff]
      %v1403 = vld [vmem:[%s1384 + $0x90] sm:$0xff]
      %v1404 = vld [vmem:[%s1384 + $0x98] sm:$0xff]
      %v1405 = vld [vmem:[%s1384 + $0xa0] sm:$0xff]
      %v1406 = vld [vmem:[%s1384 + $0xa8] sm:$0xff]
      %v1407 = vld [vmem:[%s1384 + $0xb0] sm:$0xff]
      %v1408 = vld [vmem:[%s1384 + $0xb8] sm:$0xff]
      %v1409 = vld [vmem:[%s1384 + $0xc0] sm:$0xff]
      %v1410 = vld [vmem:[%s1384 + $0xc8] sm:$0xff]
      %v1411 = vld [vmem:[%s1384 + $0xd0] sm:$0xff]
      %v1412 = vld [vmem:[%s1384 + $0xd8] sm:$0xff]
      %v1413 = vld [vmem:[%s1384 + $0xe0] sm:$0xff]
      %v1414 = vld [vmem:[%s1384 + $0xe8] sm:$0xff]
      %v1415 = vld [vmem:[%s1384 + $0xf0] sm:$0xff]
      %v1416 = vld [vmem:[%s1384 + $0xf8] sm:$0xff]
      %v1418 = vshrl.u32 %v1348, 16
      %v1420 = vshll.u32 %v1348, 16
      %v1422 = vrot.slane %v1420, 1
      %v1423 = vor.u32 %v1418, %v1422
      %v1425 = vshll.u32 %v1350, 16
      %v1427 = vrot.slane %v1425, 1
      %v1428 = vsel %vm401, %v1423, %v1427
      %v1430 = vshrl.u32 %v1349, 16
      %v1432 = vshll.u32 %v1349, 16
      %v1434 = vrot.slane %v1432, 1
      %v1435 = vor.u32 %v1430, %v1434
      %v1437 = vshll.u32 %v1351, 16
      %v1439 = vrot.slane %v1437, 1
      %v1440 = vsel %vm401, %v1435, %v1439
      %v1475 = vunpack.c.l.b16 %v1385
      %v1476 = vunpack.c.h.b16 %v1385
      %v1477 = vunpack.c.l.b16 %v1386
      %v1478 = vunpack.c.h.b16 %v1386
      %v1479 = vunpack.c.l.b16 %v1387
      %v1480 = vunpack.c.h.b16 %v1387
      %v1481 = vunpack.c.l.b16 %v1388
      %v1482 = vunpack.c.h.b16 %v1388
      %v1483 = vunpack.c.l.b16 %v1389
      %v1484 = vunpack.c.h.b16 %v1389
      %v1485 = vunpack.c.l.b16 %v1390
      %v1486 = vunpack.c.h.b16 %v1390
      %v1487 = vunpack.c.l.b16 %v1391
      %v1488 = vunpack.c.h.b16 %v1391
      %v1489 = vunpack.c.l.b16 %v1392
      %v1490 = vunpack.c.h.b16 %v1392
      %v1491 = vunpack.c.l.b16 %v1393
      %v1492 = vunpack.c.h.b16 %v1393
      %v1493 = vunpack.c.l.b16 %v1394
      %v1494 = vunpack.c.h.b16 %v1394
      %v1495 = vunpack.c.l.b16 %v1395
      %v1496 = vunpack.c.h.b16 %v1395
      %v1497 = vunpack.c.l.b16 %v1396
      %v1498 = vunpack.c.h.b16 %v1396
      %v1499 = vunpack.c.l.b16 %v1397
      %v1500 = vunpack.c.h.b16 %v1397
      %v1501 = vunpack.c.l.b16 %v1398
      %v1502 = vunpack.c.h.b16 %v1398
      %v1503 = vunpack.c.l.b16 %v1399
      %v1504 = vunpack.c.h.b16 %v1399
      %v1505 = vunpack.c.l.b16 %v1400
      %v1506 = vunpack.c.h.b16 %v1400
      %v1507 = vunpack.c.l.b16 %v1401
      %v1508 = vunpack.c.h.b16 %v1401
      %v1509 = vunpack.c.l.b16 %v1402
      %v1510 = vunpack.c.h.b16 %v1402
      %v1511 = vunpack.c.l.b16 %v1403
      %v1512 = vunpack.c.h.b16 %v1403
      %v1513 = vunpack.c.l.b16 %v1404
      %v1514 = vunpack.c.h.b16 %v1404
      %v1515 = vunpack.c.l.b16 %v1405
      %v1516 = vunpack.c.h.b16 %v1405
      %v1517 = vunpack.c.l.b16 %v1406
      %v1518 = vunpack.c.h.b16 %v1406
      %v1519 = vunpack.c.l.b16 %v1407
      %v1520 = vunpack.c.h.b16 %v1407
      %v1521 = vunpack.c.l.b16 %v1408
      %v1522 = vunpack.c.h.b16 %v1408
      %v1523 = vunpack.c.l.b16 %v1409
      %v1524 = vunpack.c.h.b16 %v1409
      %v1525 = vunpack.c.l.b16 %v1410
      %v1526 = vunpack.c.h.b16 %v1410
      %v1527 = vunpack.c.l.b16 %v1411
      %v1528 = vunpack.c.h.b16 %v1411
      %v1529 = vunpack.c.l.b16 %v1412
      %v1530 = vunpack.c.h.b16 %v1412
      %v1531 = vunpack.c.l.b16 %v1413
      %v1532 = vunpack.c.h.b16 %v1413
      %v1533 = vunpack.c.l.b16 %v1414
      %v1534 = vunpack.c.h.b16 %v1414
      %v1535 = vunpack.c.l.b16 %v1415
      %v1536 = vunpack.c.h.b16 %v1415
      %v1537 = vunpack.c.l.b16 %v1416
      %v1538 = vunpack.c.h.b16 %v1416
      %v1539 = vpack.c.b16 %v1477, %v1475
      %v1540 = vpack.c.b16 %v1478, %v1476
      %v1541 = vpack.c.b16 %v1481, %v1479
      %v1542 = vpack.c.b16 %v1482, %v1480
      %v1543 = vpack.c.b16 %v1485, %v1483
      %v1544 = vpack.c.b16 %v1486, %v1484
      %v1545 = vpack.c.b16 %v1489, %v1487
      %v1546 = vpack.c.b16 %v1490, %v1488
      %v1547 = vpack.c.b16 %v1493, %v1491
      %v1548 = vpack.c.b16 %v1494, %v1492
      %v1549 = vpack.c.b16 %v1497, %v1495
      %v1550 = vpack.c.b16 %v1498, %v1496
      %v1551 = vpack.c.b16 %v1501, %v1499
      %v1552 = vpack.c.b16 %v1502, %v1500
      %v1553 = vpack.c.b16 %v1505, %v1503
      %v1554 = vpack.c.b16 %v1506, %v1504
      %v1555 = vpack.c.b16 %v1509, %v1507
      %v1556 = vpack.c.b16 %v1510, %v1508
      %v1557 = vpack.c.b16 %v1513, %v1511
      %v1558 = vpack.c.b16 %v1514, %v1512
      %v1559 = vpack.c.b16 %v1517, %v1515
      %v1560 = vpack.c.b16 %v1518, %v1516
      %v1561 = vpack.c.b16 %v1521, %v1519
      %v1562 = vpack.c.b16 %v1522, %v1520
      %v1563 = vpack.c.b16 %v1525, %v1523
      %v1564 = vpack.c.b16 %v1526, %v1524
      %v1565 = vpack.c.b16 %v1529, %v1527
      %v1566 = vpack.c.b16 %v1530, %v1528
      %v1567 = vpack.c.b16 %v1533, %v1531
      %v1568 = vpack.c.b16 %v1534, %v1532
      %v1569 = vpack.c.b16 %v1537, %v1535
      %v1570 = vpack.c.b16 %v1538, %v1536
      %1603 = vmatpush.bf16.msra.mxu0 %v1553
      %1604 = vmatpush.bf16.msra.mxu0 %v1551
      %1605 = vmatpush.bf16.msra.mxu0 %v1549
      %1606 = vmatpush.bf16.msra.mxu0 %v1547
      %1607 = vmatpush.bf16.msra.mxu0 %v1545
      %1608 = vmatpush.bf16.msra.mxu0 %v1543
      %1609 = vmatpush.bf16.msra.mxu0 %v1541
      %1610 = vmatpush.bf16.msra.mxu0 %v1539
      %1611 = vmatmul.bf16.gmra.mxu0 %v1428
      %v1612 = vpop.f32.mrf.mxu0
      %v1613 = vadd.f32 0.0, %v1612
      %v1614 = vpop.f32.mrf.mxu0
      %v1615 = vadd.f32 0.0, %v1614
      %1616 = vdwg.mxu0
      %1617 = vmatpush.bf16.msra.mxu0 %v1569
      %1618 = vmatpush.bf16.msra.mxu0 %v1567
      %1619 = vmatpush.bf16.msra.mxu0 %v1565
      %1620 = vmatpush.bf16.msra.mxu0 %v1563
      %1621 = vmatpush.bf16.msra.mxu0 %v1561
      %1622 = vmatpush.bf16.msra.mxu0 %v1559
      %1623 = vmatpush.bf16.msra.mxu0 %v1557
      %1624 = vmatpush.bf16.msra.mxu0 %v1555
      %1625 = vmatmul.bf16.gmra.mxu0 %v1440
      %v1626 = vpop.f32.mrf.mxu0
      %v1627 = vadd.f32 %v1613, %v1626
      %v1628 = vpop.f32.mrf.mxu0
      %v1629 = vadd.f32 %v1615, %v1628
      %1630 = vdwg.mxu0
      %1631 = vmatpush.bf16.msra.mxu0 %v1554
      %1632 = vmatpush.bf16.msra.mxu0 %v1552
      %1633 = vmatpush.bf16.msra.mxu0 %v1550
      %1634 = vmatpush.bf16.msra.mxu0 %v1548
      %1635 = vmatpush.bf16.msra.mxu0 %v1546
      %1636 = vmatpush.bf16.msra.mxu0 %v1544
      %1637 = vmatpush.bf16.msra.mxu0 %v1542
      %1638 = vmatpush.bf16.msra.mxu0 %v1540
      %1639 = vmatmul.bf16.gmra.mxu0 %v1428
      %v1640 = vpop.f32.mrf.mxu0
      %v1641 = vadd.f32 0.0, %v1640
      %v1642 = vpop.f32.mrf.mxu0
      %v1643 = vadd.f32 0.0, %v1642
      %1644 = vdwg.mxu0
      %1645 = vmatpush.bf16.msra.mxu0 %v1570
      %1646 = vmatpush.bf16.msra.mxu0 %v1568
      %1647 = vmatpush.bf16.msra.mxu0 %v1566
      %1648 = vmatpush.bf16.msra.mxu0 %v1564
      %1649 = vmatpush.bf16.msra.mxu0 %v1562
      %1650 = vmatpush.bf16.msra.mxu0 %v1560
      %1651 = vmatpush.bf16.msra.mxu0 %v1558
      %1652 = vmatpush.bf16.msra.mxu0 %v1556
      %1653 = vmatmul.bf16.gmra.mxu0 %v1440
      %v1654 = vpop.f32.mrf.mxu0
      %v1655 = vadd.f32 %v1641, %v1654
      %v1656 = vpop.f32.mrf.mxu0
      %v1657 = vadd.f32 %v1643, %v1656
      %1658 = vdwg.mxu0
      %v1691 = vunpack.c.l.b16 %v1352
      %v1692 = vunpack.c.h.b16 %v1352
      %v1693 = vunpack.c.l.b16 %v1353
      %v1694 = vunpack.c.h.b16 %v1353
      %v1695 = vunpack.c.l.b16 %v1354
      %v1696 = vunpack.c.h.b16 %v1354
      %v1697 = vunpack.c.l.b16 %v1355
      %v1698 = vunpack.c.h.b16 %v1355
      %v1699 = vunpack.c.l.b16 %v1356
      %v1700 = vunpack.c.h.b16 %v1356
      %v1701 = vunpack.c.l.b16 %v1357
      %v1702 = vunpack.c.h.b16 %v1357
      %v1703 = vunpack.c.l.b16 %v1358
      %v1704 = vunpack.c.h.b16 %v1358
      %v1705 = vunpack.c.l.b16 %v1359
      %v1706 = vunpack.c.h.b16 %v1359
      %v1707 = vunpack.c.l.b16 %v1360
      %v1708 = vunpack.c.h.b16 %v1360
      %v1709 = vunpack.c.l.b16 %v1361
      %v1710 = vunpack.c.h.b16 %v1361
      %v1711 = vunpack.c.l.b16 %v1362
      %v1712 = vunpack.c.h.b16 %v1362
      %v1713 = vunpack.c.l.b16 %v1363
      %v1714 = vunpack.c.h.b16 %v1363
      %v1715 = vunpack.c.l.b16 %v1364
      %v1716 = vunpack.c.h.b16 %v1364
      %v1717 = vunpack.c.l.b16 %v1365
      %v1718 = vunpack.c.h.b16 %v1365
      %v1719 = vunpack.c.l.b16 %v1366
      %v1720 = vunpack.c.h.b16 %v1366
      %v1721 = vunpack.c.l.b16 %v1367
      %v1722 = vunpack.c.h.b16 %v1367
      %v1723 = vunpack.c.l.b16 %v1368
      %v1724 = vunpack.c.h.b16 %v1368
      %v1725 = vunpack.c.l.b16 %v1369
      %v1726 = vunpack.c.h.b16 %v1369
      %v1727 = vunpack.c.l.b16 %v1370
      %v1728 = vunpack.c.h.b16 %v1370
      %v1729 = vunpack.c.l.b16 %v1371
      %v1730 = vunpack.c.h.b16 %v1371
      %v1731 = vunpack.c.l.b16 %v1372
      %v1732 = vunpack.c.h.b16 %v1372
      %v1733 = vunpack.c.l.b16 %v1373
      %v1734 = vunpack.c.h.b16 %v1373
      %v1735 = vunpack.c.l.b16 %v1374
      %v1736 = vunpack.c.h.b16 %v1374
      %v1737 = vunpack.c.l.b16 %v1375
      %v1738 = vunpack.c.h.b16 %v1375
      %v1739 = vunpack.c.l.b16 %v1376
      %v1740 = vunpack.c.h.b16 %v1376
      %v1741 = vunpack.c.l.b16 %v1377
      %v1742 = vunpack.c.h.b16 %v1377
      %v1743 = vunpack.c.l.b16 %v1378
      %v1744 = vunpack.c.h.b16 %v1378
      %v1745 = vunpack.c.l.b16 %v1379
      %v1746 = vunpack.c.h.b16 %v1379
      %v1747 = vunpack.c.l.b16 %v1380
      %v1748 = vunpack.c.h.b16 %v1380
      %v1749 = vunpack.c.l.b16 %v1381
      %v1750 = vunpack.c.h.b16 %v1381
      %v1751 = vunpack.c.l.b16 %v1382
      %v1752 = vunpack.c.h.b16 %v1382
      %v1753 = vunpack.c.l.b16 %v1383
      %v1754 = vunpack.c.h.b16 %v1383
      %v1755 = vpack.c.b16 %v1693, %v1691
      %v1756 = vpack.c.b16 %v1694, %v1692
      %v1757 = vpack.c.b16 %v1697, %v1695
      %v1758 = vpack.c.b16 %v1698, %v1696
      %v1759 = vpack.c.b16 %v1701, %v1699
      %v1760 = vpack.c.b16 %v1702, %v1700
      %v1761 = vpack.c.b16 %v1705, %v1703
      %v1762 = vpack.c.b16 %v1706, %v1704
      %v1763 = vpack.c.b16 %v1709, %v1707
      %v1764 = vpack.c.b16 %v1710, %v1708
      %v1765 = vpack.c.b16 %v1713, %v1711
      %v1766 = vpack.c.b16 %v1714, %v1712
      %v1767 = vpack.c.b16 %v1717, %v1715
      %v1768 = vpack.c.b16 %v1718, %v1716
      %v1769 = vpack.c.b16 %v1721, %v1719
      %v1770 = vpack.c.b16 %v1722, %v1720
      %v1771 = vpack.c.b16 %v1725, %v1723
      %v1772 = vpack.c.b16 %v1726, %v1724
      %v1773 = vpack.c.b16 %v1729, %v1727
      %v1774 = vpack.c.b16 %v1730, %v1728
      %v1775 = vpack.c.b16 %v1733, %v1731
      %v1776 = vpack.c.b16 %v1734, %v1732
      %v1777 = vpack.c.b16 %v1737, %v1735
      %v1778 = vpack.c.b16 %v1738, %v1736
      %v1779 = vpack.c.b16 %v1741, %v1739
      %v1780 = vpack.c.b16 %v1742, %v1740
      %v1781 = vpack.c.b16 %v1745, %v1743
      %v1782 = vpack.c.b16 %v1746, %v1744
      %v1783 = vpack.c.b16 %v1749, %v1747
      %v1784 = vpack.c.b16 %v1750, %v1748
      %v1785 = vpack.c.b16 %v1753, %v1751
      %v1786 = vpack.c.b16 %v1754, %v1752
      %1819 = vmatpush.bf16.msra.mxu0 %v1769
      %1820 = vmatpush.bf16.msra.mxu0 %v1767
      %1821 = vmatpush.bf16.msra.mxu0 %v1765
      %1822 = vmatpush.bf16.msra.mxu0 %v1763
      %1823 = vmatpush.bf16.msra.mxu0 %v1761
      %1824 = vmatpush.bf16.msra.mxu0 %v1759
      %1825 = vmatpush.bf16.msra.mxu0 %v1757
      %1826 = vmatpush.bf16.msra.mxu0 %v1755
      %1827 = vmatmul.bf16.gmra.mxu0 %v1348
      %v1828 = vpop.f32.mrf.mxu0
      %v1829 = vadd.f32 %v1627, %v1828
      %v1830 = vpop.f32.mrf.mxu0
      %v1831 = vadd.f32 %v1629, %v1830
      %1832 = vdwg.mxu0
      %1833 = vmatpush.bf16.msra.mxu0 %v1785
      %1834 = vmatpush.bf16.msra.mxu0 %v1783
      %1835 = vmatpush.bf16.msra.mxu0 %v1781
      %1836 = vmatpush.bf16.msra.mxu0 %v1779
      %1837 = vmatpush.bf16.msra.mxu0 %v1777
      %1838 = vmatpush.bf16.msra.mxu0 %v1775
      %1839 = vmatpush.bf16.msra.mxu0 %v1773
      %1840 = vmatpush.bf16.msra.mxu0 %v1771
      %1841 = vmatmul.bf16.gmra.mxu0 %v1349
      %v1842 = vpop.f32.mrf.mxu0
      %v1843 = vadd.f32 %v1829, %v1842
      %v1844 = vpop.f32.mrf.mxu0
      %v1845 = vadd.f32 %v1831, %v1844
      %1846 = vdwg.mxu0
      %1847 = vmatpush.bf16.msra.mxu0 %v1770
      %1848 = vmatpush.bf16.msra.mxu0 %v1768
      %1849 = vmatpush.bf16.msra.mxu0 %v1766
      %1850 = vmatpush.bf16.msra.mxu0 %v1764
      %1851 = vmatpush.bf16.msra.mxu0 %v1762
      %1852 = vmatpush.bf16.msra.mxu0 %v1760
      %1853 = vmatpush.bf16.msra.mxu0 %v1758
      %1854 = vmatpush.bf16.msra.mxu0 %v1756
      %1855 = vmatmul.bf16.gmra.mxu0 %v1348
      %v1856 = vpop.f32.mrf.mxu0
      %v1857 = vadd.f32 %v1655, %v1856
      %v1858 = vpop.f32.mrf.mxu0
      %v1859 = vadd.f32 %v1657, %v1858
      %1860 = vdwg.mxu0
      %1861 = vmatpush.bf16.msra.mxu0 %v1786
      %1862 = vmatpush.bf16.msra.mxu0 %v1784
      %1863 = vmatpush.bf16.msra.mxu0 %v1782
      %1864 = vmatpush.bf16.msra.mxu0 %v1780
      %1865 = vmatpush.bf16.msra.mxu0 %v1778
      %1866 = vmatpush.bf16.msra.mxu0 %v1776
      %1867 = vmatpush.bf16.msra.mxu0 %v1774
      %1868 = vmatpush.bf16.msra.mxu0 %v1772
      %1869 = vmatmul.bf16.gmra.mxu0 %v1349
      %v1870 = vpop.f32.mrf.mxu0
      %v1871 = vadd.f32 %v1857, %v1870
      %v1872 = vpop.f32.mrf.mxu0
      %v1873 = vadd.f32 %v1859, %v1872
      %1874 = vdwg.mxu0
      %s1875 = scalar_lea.vmem %s4, 512
      %v1876 = vld [vmem:[%s1875] sm:$0xff]
      %v1877 = vld [vmem:[%s1875 + $0x8] sm:$0xff]
      %v1878 = vld [vmem:[%s1875 + $0x10] sm:$0xff]
      %v1879 = vld [vmem:[%s1875 + $0x18] sm:$0xff]
      %v1880 = vld [vmem:[%s1875 + $0x20] sm:$0xff]
      %v1881 = vld [vmem:[%s1875 + $0x28] sm:$0xff]
      %v1882 = vld [vmem:[%s1875 + $0x30] sm:$0xff]
      %v1883 = vld [vmem:[%s1875 + $0x38] sm:$0xff]
      %v1884 = vld [vmem:[%s1875 + $0x40] sm:$0xff]
      %v1885 = vld [vmem:[%s1875 + $0x48] sm:$0xff]
      %v1886 = vld [vmem:[%s1875 + $0x50] sm:$0xff]
      %v1887 = vld [vmem:[%s1875 + $0x58] sm:$0xff]
      %v1888 = vld [vmem:[%s1875 + $0x60] sm:$0xff]
      %v1889 = vld [vmem:[%s1875 + $0x68] sm:$0xff]
      %v1890 = vld [vmem:[%s1875 + $0x70] sm:$0xff]
      %v1891 = vld [vmem:[%s1875 + $0x78] sm:$0xff]
      %v1892 = vld [vmem:[%s1875 + $0x80] sm:$0xff]
      %v1893 = vld [vmem:[%s1875 + $0x88] sm:$0xff]
      %v1894 = vld [vmem:[%s1875 + $0x90] sm:$0xff]
      %v1895 = vld [vmem:[%s1875 + $0x98] sm:$0xff]
      %v1896 = vld [vmem:[%s1875 + $0xa0] sm:$0xff]
      %v1897 = vld [vmem:[%s1875 + $0xa8] sm:$0xff]
      %v1898 = vld [vmem:[%s1875 + $0xb0] sm:$0xff]
      %v1899 = vld [vmem:[%s1875 + $0xb8] sm:$0xff]
      %v1900 = vld [vmem:[%s1875 + $0xc0] sm:$0xff]
      %v1901 = vld [vmem:[%s1875 + $0xc8] sm:$0xff]
      %v1902 = vld [vmem:[%s1875 + $0xd0] sm:$0xff]
      %v1903 = vld [vmem:[%s1875 + $0xd8] sm:$0xff]
      %v1904 = vld [vmem:[%s1875 + $0xe0] sm:$0xff]
      %v1905 = vld [vmem:[%s1875 + $0xe8] sm:$0xff]
      %v1906 = vld [vmem:[%s1875 + $0xf0] sm:$0xff]
      %v1907 = vld [vmem:[%s1875 + $0xf8] sm:$0xff]
      %v1912 = vrot.slane %v1348, 1
      %v1913 = vrot.slane %v1350, 1
      %v1914 = vsel %vm895, %v1912, %v1913
      %v1915 = vrot.slane %v1349, 1
      %v1916 = vrot.slane %v1351, 1
      %v1917 = vsel %vm895, %v1915, %v1916
      %v1952 = vunpack.c.l.b16 %v1876
      %v1953 = vunpack.c.h.b16 %v1876
      %v1954 = vunpack.c.l.b16 %v1877
      %v1955 = vunpack.c.h.b16 %v1877
      %v1956 = vunpack.c.l.b16 %v1878
      %v1957 = vunpack.c.h.b16 %v1878
      %v1958 = vunpack.c.l.b16 %v1879
      %v1959 = vunpack.c.h.b16 %v1879
      %v1960 = vunpack.c.l.b16 %v1880
      %v1961 = vunpack.c.h.b16 %v1880
      %v1962 = vunpack.c.l.b16 %v1881
      %v1963 = vunpack.c.h.b16 %v1881
      %v1964 = vunpack.c.l.b16 %v1882
      %v1965 = vunpack.c.h.b16 %v1882
      %v1966 = vunpack.c.l.b16 %v1883
      %v1967 = vunpack.c.h.b16 %v1883
      %v1968 = vunpack.c.l.b16 %v1884
      %v1969 = vunpack.c.h.b16 %v1884
      %v1970 = vunpack.c.l.b16 %v1885
      %v1971 = vunpack.c.h.b16 %v1885
      %v1972 = vunpack.c.l.b16 %v1886
      %v1973 = vunpack.c.h.b16 %v1886
      %v1974 = vunpack.c.l.b16 %v1887
      %v1975 = vunpack.c.h.b16 %v1887
      %v1976 = vunpack.c.l.b16 %v1888
      %v1977 = vunpack.c.h.b16 %v1888
      %v1978 = vunpack.c.l.b16 %v1889
      %v1979 = vunpack.c.h.b16 %v1889
      %v1980 = vunpack.c.l.b16 %v1890
      %v1981 = vunpack.c.h.b16 %v1890
      %v1982 = vunpack.c.l.b16 %v1891
      %v1983 = vunpack.c.h.b16 %v1891
      %v1984 = vunpack.c.l.b16 %v1892
      %v1985 = vunpack.c.h.b16 %v1892
      %v1986 = vunpack.c.l.b16 %v1893
      %v1987 = vunpack.c.h.b16 %v1893
      %v1988 = vunpack.c.l.b16 %v1894
      %v1989 = vunpack.c.h.b16 %v1894
      %v1990 = vunpack.c.l.b16 %v1895
      %v1991 = vunpack.c.h.b16 %v1895
      %v1992 = vunpack.c.l.b16 %v1896
      %v1993 = vunpack.c.h.b16 %v1896
      %v1994 = vunpack.c.l.b16 %v1897
      %v1995 = vunpack.c.h.b16 %v1897
      %v1996 = vunpack.c.l.b16 %v1898
      %v1997 = vunpack.c.h.b16 %v1898
      %v1998 = vunpack.c.l.b16 %v1899
      %v1999 = vunpack.c.h.b16 %v1899
      %v2000 = vunpack.c.l.b16 %v1900
      %v2001 = vunpack.c.h.b16 %v1900
      %v2002 = vunpack.c.l.b16 %v1901
      %v2003 = vunpack.c.h.b16 %v1901
      %v2004 = vunpack.c.l.b16 %v1902
      %v2005 = vunpack.c.h.b16 %v1902
      %v2006 = vunpack.c.l.b16 %v1903
      %v2007 = vunpack.c.h.b16 %v1903
      %v2008 = vunpack.c.l.b16 %v1904
      %v2009 = vunpack.c.h.b16 %v1904
      %v2010 = vunpack.c.l.b16 %v1905
      %v2011 = vunpack.c.h.b16 %v1905
      %v2012 = vunpack.c.l.b16 %v1906
      %v2013 = vunpack.c.h.b16 %v1906
      %v2014 = vunpack.c.l.b16 %v1907
      %v2015 = vunpack.c.h.b16 %v1907
      %v2016 = vpack.c.b16 %v1954, %v1952
      %v2017 = vpack.c.b16 %v1955, %v1953
      %v2018 = vpack.c.b16 %v1958, %v1956
      %v2019 = vpack.c.b16 %v1959, %v1957
      %v2020 = vpack.c.b16 %v1962, %v1960
      %v2021 = vpack.c.b16 %v1963, %v1961
      %v2022 = vpack.c.b16 %v1966, %v1964
      %v2023 = vpack.c.b16 %v1967, %v1965
      %v2024 = vpack.c.b16 %v1970, %v1968
      %v2025 = vpack.c.b16 %v1971, %v1969
      %v2026 = vpack.c.b16 %v1974, %v1972
      %v2027 = vpack.c.b16 %v1975, %v1973
      %v2028 = vpack.c.b16 %v1978, %v1976
      %v2029 = vpack.c.b16 %v1979, %v1977
      %v2030 = vpack.c.b16 %v1982, %v1980
      %v2031 = vpack.c.b16 %v1983, %v1981
      %v2032 = vpack.c.b16 %v1986, %v1984
      %v2033 = vpack.c.b16 %v1987, %v1985
      %v2034 = vpack.c.b16 %v1990, %v1988
      %v2035 = vpack.c.b16 %v1991, %v1989
      %v2036 = vpack.c.b16 %v1994, %v1992
      %v2037 = vpack.c.b16 %v1995, %v1993
      %v2038 = vpack.c.b16 %v1998, %v1996
      %v2039 = vpack.c.b16 %v1999, %v1997
      %v2040 = vpack.c.b16 %v2002, %v2000
      %v2041 = vpack.c.b16 %v2003, %v2001
      %v2042 = vpack.c.b16 %v2006, %v2004
      %v2043 = vpack.c.b16 %v2007, %v2005
      %v2044 = vpack.c.b16 %v2010, %v2008
      %v2045 = vpack.c.b16 %v2011, %v2009
      %v2046 = vpack.c.b16 %v2014, %v2012
      %v2047 = vpack.c.b16 %v2015, %v2013
      %2080 = vmatpush.bf16.msra.mxu0 %v2030
      %2081 = vmatpush.bf16.msra.mxu0 %v2028
      %2082 = vmatpush.bf16.msra.mxu0 %v2026
      %2083 = vmatpush.bf16.msra.mxu0 %v2024
      %2084 = vmatpush.bf16.msra.mxu0 %v2022
      %2085 = vmatpush.bf16.msra.mxu0 %v2020
      %2086 = vmatpush.bf16.msra.mxu0 %v2018
      %2087 = vmatpush.bf16.msra.mxu0 %v2016
      %2088 = vmatmul.bf16.gmra.mxu0 %v1914
      %v2089 = vpop.f32.mrf.mxu0
      %v2090 = vadd.f32 0.0, %v2089
      %v2091 = vpop.f32.mrf.mxu0
      %v2092 = vadd.f32 0.0, %v2091
      %2093 = vdwg.mxu0
      %2094 = vmatpush.bf16.msra.mxu0 %v2046
      %2095 = vmatpush.bf16.msra.mxu0 %v2044
      %2096 = vmatpush.bf16.msra.mxu0 %v2042
      %2097 = vmatpush.bf16.msra.mxu0 %v2040
      %2098 = vmatpush.bf16.msra.mxu0 %v2038
      %2099 = vmatpush.bf16.msra.mxu0 %v2036
      %2100 = vmatpush.bf16.msra.mxu0 %v2034
      %2101 = vmatpush.bf16.msra.mxu0 %v2032
      %2102 = vmatmul.bf16.gmra.mxu0 %v1917
      %v2103 = vpop.f32.mrf.mxu0
      %v2104 = vadd.f32 %v2090, %v2103
      %v2105 = vpop.f32.mrf.mxu0
      %v2106 = vadd.f32 %v2092, %v2105
      %2107 = vdwg.mxu0
      %2108 = vmatpush.bf16.msra.mxu0 %v2031
      %2109 = vmatpush.bf16.msra.mxu0 %v2029
      %2110 = vmatpush.bf16.msra.mxu0 %v2027
      %2111 = vmatpush.bf16.msra.mxu0 %v2025
      %2112 = vmatpush.bf16.msra.mxu0 %v2023
      %2113 = vmatpush.bf16.msra.mxu0 %v2021
      %2114 = vmatpush.bf16.msra.mxu0 %v2019
      %2115 = vmatpush.bf16.msra.mxu0 %v2017
      %2116 = vmatmul.bf16.gmra.mxu0 %v1914
      %v2117 = vpop.f32.mrf.mxu0
      %v2118 = vadd.f32 0.0, %v2117
      %v2119 = vpop.f32.mrf.mxu0
      %v2120 = vadd.f32 0.0, %v2119
      %2121 = vdwg.mxu0
      %2122 = vmatpush.bf16.msra.mxu0 %v2047
      %2123 = vmatpush.bf16.msra.mxu0 %v2045
      %2124 = vmatpush.bf16.msra.mxu0 %v2043
      %2125 = vmatpush.bf16.msra.mxu0 %v2041
      %2126 = vmatpush.bf16.msra.mxu0 %v2039
      %2127 = vmatpush.bf16.msra.mxu0 %v2037
      %2128 = vmatpush.bf16.msra.mxu0 %v2035
      %2129 = vmatpush.bf16.msra.mxu0 %v2033
      %2130 = vmatmul.bf16.gmra.mxu0 %v1917
      %v2131 = vpop.f32.mrf.mxu0
      %v2132 = vadd.f32 %v2118, %v2131
      %v2133 = vpop.f32.mrf.mxu0
      %v2134 = vadd.f32 %v2120, %v2133
      %2135 = vdwg.mxu0
      %v2136 = vadd.f32 %v1843, %v2104
      %v2137 = vadd.f32 %v1871, %v2132
      %v2138 = vadd.f32 %v1845, %v2106
      %v2139 = vadd.f32 %v1873, %v2134
      %v2140 = vld [vmem:[%s5] sm:$0x3]
      %v2142 = vperm.slane %v2140, 0
      %v2143 = vperm.slane %v2140, 1
      %v2146 = vadd.f32 %v2136, %v2142
      %v2147 = vadd.f32 %v2137, %v2143
      %v2148 = vadd.f32 %v2138, %v2142
      %v2149 = vadd.f32 %v2139, %v2143
      %v2150 = vmul.f32 %v2146, 0.5
      %v2151 = vmul.f32 %v2147, 0.5
      %v2152 = vmul.f32 %v2148, 0.5
      %v2153 = vmul.f32 %v2149, 0.5
      %v2154 = vmul.f32 %v2146, %v1144
      %v2155 = vmul.f32 %v2147, %v1144
      %v2156 = vmul.f32 %v2148, %v1144
      %v2157 = vmul.f32 %v2149, %v1144
      %v2158 = vmul.f32 %v2154, %v2154
      %v2159 = vmin.f32 16.0, %v2158
      %v2160 = vmul.f32 %v2159, 2.1237322e-06
      %v2161 = vadd.f32 %v2160, 0.00028619796
      %v2162 = vmul.f32 %v2159, %v2161
      %v2163 = vadd.f32 %v2162, 0.0036580483
      %v2164 = vmul.f32 %v2159, %v2163
      %v2165 = vadd.f32 %v2164, 0.05243302
      %v2166 = vmul.f32 %v2159, %v2165
      %v2167 = vadd.f32 %v2166, 0.18741608
      %v2168 = vmul.f32 %v2159, %v2167
      %v2169 = vadd.f32 %v2168, 1.1283791
      %v2170 = vmul.f32 %v2154, %v2169
      %v2171 = vmul.f32 %v2159, 3.8918573e-05
      %v2172 = vadd.f32 %v2171, 0.001143296
      %v2173 = vmul.f32 %v2159, %v2172
      %v2174 = vadd.f32 %v2173, 0.014752088
      %v2175 = vmul.f32 %v2159, %v2174
      %v2176 = vadd.f32 %v2175, 0.112945676
      %v2177 = vmul.f32 %v2159, %v2176
      %v2178 = vadd.f32 %v2177, 0.4994258
      %v2179 = vmul.f32 %v2159, %v2178
      %v2180 = vadd.f32 %v2179, 1.0
      %v2181 = vrcp.pop %v2180
      %v2182 = vmul.f32 %v2180, %v2181
      %v2183 = vsub.f32 1.0, %v2182
      %v2184 = vmul.f32 %v2181, %v2183
      %v2185 = vadd.f32 %v2181, %v2184
      %vm2186 = vweird.f32 %v2180
      %vm2187 = vweird.f32 %v2181
      %vm2188 = vmor %vm2186, %vm2187
      %v2189 = vsel %vm2188, %v2181, %v2185
      %v2190 = vand.u32 2147483647, %v2180
      %vm2191 = vcmp.eq.f32.partialorder %v2190, 8.507059e+37
      %v2192 = vand.u32 %v2180, 2147483648
      %v2193 = vor.u32 1.1754944e-38, %v2192
      %v2194 = vsel %vm2191, %v2193, %v2189
      %v2195 = vmul.f32 %v2170, %v2194
      %v2196 = vmin.f32 %v2195, 1.0
      %v2197 = vmax.f32 %v2196, -1.0
      %v2198 = vmul.f32 %v2155, %v2155
      %v2199 = vmin.f32 16.0, %v2198
      %v2200 = vmul.f32 %v2199, 2.1237322e-06
      %v2201 = vadd.f32 %v2200, 0.00028619796
      %v2202 = vmul.f32 %v2199, %v2201
      %v2203 = vadd.f32 %v2202, 0.0036580483
      %v2204 = vmul.f32 %v2199, %v2203
      %v2205 = vadd.f32 %v2204, 0.05243302
      %v2206 = vmul.f32 %v2199, %v2205
      %v2207 = vadd.f32 %v2206, 0.18741608
      %v2208 = vmul.f32 %v2199, %v2207
      %v2209 = vadd.f32 %v2208, 1.1283791
      %v2210 = vmul.f32 %v2155, %v2209
      %v2211 = vmul.f32 %v2199, 3.8918573e-05
      %v2212 = vadd.f32 %v2211, 0.001143296
      %v2213 = vmul.f32 %v2199, %v2212
      %v2214 = vadd.f32 %v2213, 0.014752088
      %v2215 = vmul.f32 %v2199, %v2214
      %v2216 = vadd.f32 %v2215, 0.112945676
      %v2217 = vmul.f32 %v2199, %v2216
      %v2218 = vadd.f32 %v2217, 0.4994258
      %v2219 = vmul.f32 %v2199, %v2218
      %v2220 = vadd.f32 %v2219, 1.0
      %v2221 = vrcp.pop %v2220
      %v2222 = vmul.f32 %v2220, %v2221
      %v2223 = vsub.f32 1.0, %v2222
      %v2224 = vmul.f32 %v2221, %v2223
      %v2225 = vadd.f32 %v2221, %v2224
      %vm2226 = vweird.f32 %v2220
      %vm2227 = vweird.f32 %v2221
      %vm2228 = vmor %vm2226, %vm2227
      %v2229 = vsel %vm2228, %v2221, %v2225
      %v2230 = vand.u32 2147483647, %v2220
      %vm2231 = vcmp.eq.f32.partialorder %v2230, 8.507059e+37
      %v2232 = vand.u32 %v2220, 2147483648
      %v2233 = vor.u32 1.1754944e-38, %v2232
      %v2234 = vsel %vm2231, %v2233, %v2229
      %v2235 = vmul.f32 %v2210, %v2234
      %v2236 = vmin.f32 %v2235, 1.0
      %v2237 = vmax.f32 %v2236, -1.0
      %v2238 = vmul.f32 %v2156, %v2156
      %v2239 = vmin.f32 16.0, %v2238
      %v2240 = vmul.f32 %v2239, 2.1237322e-06
      %v2241 = vadd.f32 %v2240, 0.00028619796
      %v2242 = vmul.f32 %v2239, %v2241
      %v2243 = vadd.f32 %v2242, 0.0036580483
      %v2244 = vmul.f32 %v2239, %v2243
      %v2245 = vadd.f32 %v2244, 0.05243302
      %v2246 = vmul.f32 %v2239, %v2245
      %v2247 = vadd.f32 %v2246, 0.18741608
      %v2248 = vmul.f32 %v2239, %v2247
      %v2249 = vadd.f32 %v2248, 1.1283791
      %v2250 = vmul.f32 %v2156, %v2249
      %v2251 = vmul.f32 %v2239, 3.8918573e-05
      %v2252 = vadd.f32 %v2251, 0.001143296
      %v2253 = vmul.f32 %v2239, %v2252
      %v2254 = vadd.f32 %v2253, 0.014752088
      %v2255 = vmul.f32 %v2239, %v2254
      %v2256 = vadd.f32 %v2255, 0.112945676
      %v2257 = vmul.f32 %v2239, %v2256
      %v2258 = vadd.f32 %v2257, 0.4994258
      %v2259 = vmul.f32 %v2239, %v2258
      %v2260 = vadd.f32 %v2259, 1.0
      %v2261 = vrcp.pop %v2260
      %v2262 = vmul.f32 %v2260, %v2261
      %v2263 = vsub.f32 1.0, %v2262
      %v2264 = vmul.f32 %v2261, %v2263
      %v2265 = vadd.f32 %v2261, %v2264
      %vm2266 = vweird.f32 %v2260
      %vm2267 = vweird.f32 %v2261
      %vm2268 = vmor %vm2266, %vm2267
      %v2269 = vsel %vm2268, %v2261, %v2265
      %v2270 = vand.u32 2147483647, %v2260
      %vm2271 = vcmp.eq.f32.partialorder %v2270, 8.507059e+37
      %v2272 = vand.u32 %v2260, 2147483648
      %v2273 = vor.u32 1.1754944e-38, %v2272
      %v2274 = vsel %vm2271, %v2273, %v2269
      %v2275 = vmul.f32 %v2250, %v2274
      %v2276 = vmin.f32 %v2275, 1.0
      %v2277 = vmax.f32 %v2276, -1.0
      %v2278 = vmul.f32 %v2157, %v2157
      %v2279 = vmin.f32 16.0, %v2278
      %v2280 = vmul.f32 %v2279, 2.1237322e-06
      %v2281 = vadd.f32 %v2280, 0.00028619796
      %v2282 = vmul.f32 %v2279, %v2281
      %v2283 = vadd.f32 %v2282, 0.0036580483
      %v2284 = vmul.f32 %v2279, %v2283
      %v2285 = vadd.f32 %v2284, 0.05243302
      %v2286 = vmul.f32 %v2279, %v2285
      %v2287 = vadd.f32 %v2286, 0.18741608
      %v2288 = vmul.f32 %v2279, %v2287
      %v2289 = vadd.f32 %v2288, 1.1283791
      %v2290 = vmul.f32 %v2157, %v2289
      %v2291 = vmul.f32 %v2279, 3.8918573e-05
      %v2292 = vadd.f32 %v2291, 0.001143296
      %v2293 = vmul.f32 %v2279, %v2292
      %v2294 = vadd.f32 %v2293, 0.014752088
      %v2295 = vmul.f32 %v2279, %v2294
      %v2296 = vadd.f32 %v2295, 0.112945676
      %v2297 = vmul.f32 %v2279, %v2296
      %v2298 = vadd.f32 %v2297, 0.4994258
      %v2299 = vmul.f32 %v2279, %v2298
      %v2300 = vadd.f32 %v2299, 1.0
      %v2301 = vrcp.pop %v2300
      %v2302 = vmul.f32 %v2300, %v2301
      %v2303 = vsub.f32 1.0, %v2302
      %v2304 = vmul.f32 %v2301, %v2303
      %v2305 = vadd.f32 %v2301, %v2304
      %vm2306 = vweird.f32 %v2300
      %vm2307 = vweird.f32 %v2301
      %vm2308 = vmor %vm2306, %vm2307
      %v2309 = vsel %vm2308, %v2301, %v2305
      %v2310 = vand.u32 2147483647, %v2300
      %vm2311 = vcmp.eq.f32.partialorder %v2310, 8.507059e+37
      %v2312 = vand.u32 %v2300, 2147483648
      %v2313 = vor.u32 1.1754944e-38, %v2312
      %v2314 = vsel %vm2311, %v2313, %v2309
      %v2315 = vmul.f32 %v2290, %v2314
      %v2316 = vmin.f32 %v2315, 1.0
      %v2317 = vmax.f32 %v2316, -1.0
      %v2318 = vadd.f32 %v2197, 1.0
      %v2319 = vadd.f32 %v2237, 1.0
      %v2320 = vadd.f32 %v2277, 1.0
      %v2321 = vadd.f32 %v2317, 1.0
      %v2322 = vmul.f32 %v2150, %v2318
      %v2323 = vmul.f32 %v2151, %v2319
      %v2324 = vmul.f32 %v2152, %v2320
      %v2325 = vmul.f32 %v2153, %v2321
      %v2326 = vpack.c.bf16 %v2323, %v2322
      %v2327 = vpack.c.bf16 %v2325, %v2324
      %2328 = vst [vmem:[%s251] sm:$0xff] %v2326
      %2329 = vst [vmem:[%s251 + $0x8] sm:$0xff] %v2327
      %p2330 = scmp.lt.s32.totalorder %s17, 1
      %s2331 = scalar_select %p2330, %s17, 1
      %s2332 = smul.addr %s2331, 4
      %s2333 = smul.addr %s2332, 4
      %s2334 = scalar_lea.vmem %s6, %s2333
      // Predicated region
      $region45: #{decoder_cup_forward.5} parent=43 // pred_check
        %p2335 = pneg %p166
      $region46: #{decoder_cup_forward.5} parent=43 // pred_check_branch
        %2337 = sbr.rel (%p2335) target = $region48
      $region47: #{decoder_cup_forward.5} parent=43 // pred_region
        _
      $region48: #{decoder_cup_forward.5} parent=43 // pred_fallthru
        _
    $region44: #{decoder_cup_forward.5} parent=5 // pred_fallthru
      _
    %p2338 = scmp.le.s32.totalorder 2, %s12
    // Predicated region
    $region49: #{decoder_cup_forward.5} parent=5 // pred_check
      %p2339 = pneg %p2338
    $region50: #{decoder_cup_forward.5} parent=5 // pred_check_branch
      %2341 = sbr.rel (%p2339) target = $region52
    $region51: #{decoder_cup_forward.5} parent=5 // pred_region
      %s2342 = ssub.s32 %s12, 2
      // Predicated region
      $region53: #{decoder_cup_forward.5} parent=51 // pred_check
        %p2343 = pneg %p172
      $region54: #{decoder_cup_forward.5} parent=51 // pred_check_branch
        %2345 = sbr.rel (%p2343) target = $region56
      $region55: #{decoder_cup_forward.5} parent=51 // pred_region
        %p2346 = scmp.lt.s32.totalorder %s18, 1
        %s2347 = scalar_select %p2346, %s18, 1
        %s2348 = smul.addr %s2347, 4
        %s2349 = smul.addr %s2348, 4
        %s2350 = scalar_lea.vmem %s6, %s2349
      $region56: #{decoder_cup_forward.5} parent=51 // pred_fallthru
        _
    $region52: #{decoder_cup_forward.5} parent=5 // pred_fallthru
      _
  $region6: #{decoder_cup_forward.5} parent=0 // loop_footer
    %s16 = sadd.s32 1, %s12
  $region7: #{decoder_cup_forward.5} parent=0 // loop_footer_branch
    %11 = sbr.rel target = $region3
  $region8: #{decoder_cup_forward.5} parent=0 // loop_exit
    _

</llo_original>
